<compile_context>
chip_gen: v7x
topology: tpu7x:2x2x1
jax: 0.10.0
libtpu: 0.0.40
codegen_flags: <defaults>
</compile_context>

<pallas_src>
import numpy as np
import jax
import jax.numpy as jnp
from jax.experimental import pallas as pl
from jax.experimental.pallas import tpu as pltpu

# ---- small synthetic config (mirrors CFG's structure at reduced sizes) ----
N_AID        = 512           # CFG.n_aid
EMB_DIM      = 32            # CFG.emb_dim
TIME_EMB_DIM = 8             # CFG.time_emb_dim
N_LENGTH     = 8             # CFG.n_length (power of two, see positional one-hot)
N_FEAT       = 2             # CFG.n_feat
N_LABEL      = 4             # CFG.n_label
BATCH        = 4
N_NEG_COEF   = 8             # CFG.n_neg_coef
NEG_TOPK     = 8             # CFG.neg_topk
TEMPERATURE  = 0.05          # CFG.temperature
H_VOCAB      = 16            # = CFG.h_max - CFG.h_min + 4
INP_DIM      = EMB_DIM + (N_FEAT + TIME_EMB_DIM + 1) + N_LENGTH   # 51
HID          = EMB_DIM // 2
N_NEG        = N_NEG_COEF * BATCH
EPS          = 1e-5

# in-kernel modular indexing uses bitwise AND (integer rem has no guaranteed lowering)
assert N_LENGTH & (N_LENGTH - 1) == 0
assert N_NEG & (N_NEG - 1) == 0

# rows of the packed "vecs" parameter slab (1-D params + the tiny emb_h table)
ROW_BN_G, ROW_BN_B, ROW_B1, ROW_B2 = 0, 1, 2, 3
ROW_LN_G, ROW_LN_B, ROW_EB1, ROW_EB2 = 4, 7, 10, 13
VECS_ROWS, VECS_COLS = 16, 64
COL_EMBH = 52                       # emb_h table lives in cols [52, 60) of every row
assert COL_EMBH >= INP_DIM and COL_EMBH + TIME_EMB_DIM <= VECS_COLS
assert H_VOCAB <= VECS_ROWS

# row offsets inside the packed dense-weight slab (all slices sublane-aligned)
OFF_MLP_W2 = ((INP_DIM + 7) // 8) * 8      # 56
OFF_E = OFF_MLP_W2 + EMB_DIM               # 88
W_ROWS = OFF_E + 3 * (2 * EMB_DIM)         # 280

# columns of the packed int32 driver slab
INT_COLS = 2 + 2 * N_LABEL                 # aid/neg | hr | y_batch | label_type


def _gelu(x):
    # TODO(synk): PyTorch nn.GELU() defaults to the exact erf formulation; erf has no
    # guaranteed Mosaic lowering, so the tanh approximation is used (<1e-3 difference).
    return jax.nn.gelu(x, approximate=True)


# ----------------------------------------------------------------------------
# Single fused kernel: query tower + contrastive head
# ----------------------------------------------------------------------------
def encoder_kernel(ints_ref, xother_ref, ylem_ref, emb_ref, w_ref, vecs_ref, out_ref):
    bsz = ylem_ref.shape[0]                 # B
    n = bsz * N_LENGTH                      # B * L flattened sequence rows
    nneg = N_NEG_COEF * bsz                 # number of sampled negatives

    aid = ints_ref[0:n, 0:1]                                             # (n, 1) i32
    hr = ints_ref[0:n, 1:2]                                              # (n, 1) i32
    tail = ints_ref[0:bsz, 2:2 + 2 * N_LABEL]                            # (B, 2*NL)
    mask = (aid != N_AID - 1).astype(jnp.float32)                        # (n, 1)

    # ---- fused embedding gather: sequence aids (rows 0:n) and negative aids
    #      (rows n:n+nneg) share one one-hot matmul -> one MXU pass over emb.
    ids = ints_ref[0:n + nneg, 0:1]                                      # (n+NNEG, 1)
    va = jax.lax.broadcasted_iota(jnp.int32, (n + nneg, N_AID), 1)
    gat = jnp.dot((va == ids).astype(jnp.float32), emb_ref[...],
                  preferred_element_type=jnp.float32)                    # (n+NNEG, D)
    em = gat[0:n, :]                                                     # (n, D)
    neg_e = gat[n:n + nneg, :]                                           # (NNEG, D)

    # ---- emb_h gather (3 shifted lookups summed); table lives inside the vecs slab
    hmax = H_VOCAB - 1
    vh = jax.lax.broadcasted_iota(jnp.int32, (n, H_VOCAB), 1)
    oh_h = ((vh == hr).astype(jnp.float32)
            + (vh == jnp.minimum(hr + 1, hmax)).astype(jnp.float32)
            + (vh == jnp.minimum(hr + 2, hmax)).astype(jnp.float32))
    embh_tab = vecs_ref[0:H_VOCAB, COL_EMBH:COL_EMBH + TIME_EMB_DIM]     # (16, TD)
    emh = jnp.dot(oh_h, embh_tab, preferred_element_type=jnp.float32)    # (n, TD)

    # positional one-hot (r % N_LENGTH as a bitwise AND; N_LENGTH is a power of two)
    r_io = jax.lax.broadcasted_iota(jnp.int32, (n, N_LENGTH), 0)
    c_io = jax.lax.broadcasted_iota(jnp.int32, (n, N_LENGTH), 1)
    pos = (c_io == (r_io & (N_LENGTH - 1))).astype(jnp.float32)          # (n, L)

    # ---- materialize the 51-channel feature tile ONCE (it pads to one 128-lane
    #      tile anyway), then one masked BatchNorm and one input matmul.
    feat = jnp.concatenate([em, xother_ref[...], emh, pos], axis=1) * mask   # (n, 51)
    mu = jnp.mean(feat, axis=0, keepdims=True)
    var = jnp.mean((feat - mu) ** 2, axis=0, keepdims=True)
    featn = ((feat - mu) * jax.lax.rsqrt(var + EPS)
             * vecs_ref[ROW_BN_G:ROW_BN_G + 1, 0:INP_DIM]
             + vecs_ref[ROW_BN_B:ROW_BN_B + 1, 0:INP_DIM])

    z = (jnp.dot(featn, w_ref[0:INP_DIM, :], preferred_element_type=jnp.float32)
         + vecs_ref[ROW_B1:ROW_B1 + 1, 0:EMB_DIM])
    h1 = _gelu(z)
    x = (jnp.dot(h1, w_ref[OFF_MLP_W2:OFF_MLP_W2 + EMB_DIM, :],
                 preferred_element_type=jnp.float32)
         + vecs_ref[ROW_B2:ROW_B2 + 1, 0:EMB_DIM])
    x = x * mask

    # ---- three E blocks: x -> LN(x) + MLP(LN(x))
    #      (reference E.forward overwrites the attention output with ln(ee), so the
    #       MultiheadAttention result is dead code and omitted).  The per-block
    #      weights are zero-padded 32x32 tiles inside w_ref (exact: gelu(0)=0 and the
    #      padded rows/cols contribute nothing).
    for i in range(3):
        mu_ln = jnp.mean(x, axis=1, keepdims=True)
        var_ln = jnp.mean((x - mu_ln) ** 2, axis=1, keepdims=True)
        xn = ((x - mu_ln) * jax.lax.rsqrt(var_ln + EPS)
              * vecs_ref[ROW_LN_G + i:ROW_LN_G + i + 1, 0:EMB_DIM]
              + vecs_ref[ROW_LN_B + i:ROW_LN_B + i + 1, 0:EMB_DIM])
        r0 = OFF_E + 2 * EMB_DIM * i
        w1p = w_ref[r0:r0 + EMB_DIM, :]
        w2p = w_ref[r0 + EMB_DIM:r0 + 2 * EMB_DIM, :]
        hh = _gelu(jnp.dot(xn, w1p, preferred_element_type=jnp.float32)
                   + vecs_ref[ROW_EB1 + i:ROW_EB1 + i + 1, 0:EMB_DIM])
        x = xn + (jnp.dot(hh, w2p, preferred_element_type=jnp.float32)
                  + vecs_ref[ROW_EB2 + i:ROW_EB2 + i + 1, 0:EMB_DIM])

    # ---- masked mean pooling; denominator folded into the same matmul
    gr = jax.lax.broadcasted_iota(jnp.int32, (bsz, n), 0)
    gc = jax.lax.broadcasted_iota(jnp.int32, (bsz, n), 1)
    off = gc - gr * N_LENGTH
    G = jnp.logical_and(off >= 0, off < N_LENGTH).astype(jnp.float32)    # (B, n)
    pooled = jnp.dot(G, jnp.concatenate([x * mask, mask], axis=1),
                     preferred_element_type=jnp.float32)                 # (B, D+1)
    xq = pooled[:, 0:EMB_DIM] / pooled[:, EMB_DIM:EMB_DIM + 1]           # exact divide

    # ================= contrastive head (fused; xq never leaves VMEM) =============
    y_b = tail[:, 0:N_LABEL]                                             # (B, NL) i32
    lt = tail[:, N_LABEL:2 * N_LABEL]                                    # (B, NL) i32
    ymask = (y_b == N_AID - 1).astype(jnp.float32)   # bool adds exactly +1.0 (torch)
    ltf = lt.astype(jnp.float32)

    y_e = ylem_ref[:, :, 0:EMB_DIM]                                      # (B, NL, D)
    lt_em = ylem_ref[:, :, EMB_DIM:2 * EMB_DIM]                          # (B, NL, D)
    x_em = jnp.broadcast_to(xq[:, None, :], lt_em.shape) + lt_em
    x_em = x_em * jax.lax.rsqrt(jnp.sum(x_em * x_em, axis=2, keepdims=True))
    y_en = y_e * jax.lax.rsqrt(jnp.sum(y_e * y_e, axis=2, keepdims=True))
    neg_en = neg_e * jax.lax.rsqrt(jnp.sum(neg_e * neg_e, axis=1, keepdims=True))

    cos_all = jnp.sum(x_em * y_en, axis=2)                               # (B, NL)
    cos_min = jnp.min(cos_all + ymask, axis=1, keepdims=True)            # (B, 1)
    cos_mean = (jnp.sum(cos_all * ltf, axis=1, keepdims=True)
                / jnp.sum(ltf, axis=1, keepdims=True))                   # exact divide
    cos_pos = (cos_mean + cos_min) * 0.5                                 # (B, 1)

    x0 = x_em[:, 0, :]                                                   # (B, D)
    cos_neg = jax.lax.dot_general(
        x0, neg_en, dimension_numbers=(((1,), (1,)), ((), ())),
        preferred_element_type=jnp.float32)                              # (B, NNEG)
    max_neg = jnp.max(cos_neg, axis=1, keepdims=True)                    # (B, 1)

    # ---- rank-based top-k selection, single pass (no serial max/where/exp chain).
    # Rows r = (b, j) pairs; all ops are 2-D lane broadcasts / lane reductions plus
    # two tiny matmuls.  Ties around the k-th value are grouped together (torch.topk
    # would keep duplicates); cosines are continuous so the difference is measure-0.
    inv_t = jnp.float32(1.0 / TEMPERATURE)
    nr = bsz * nneg
    ri = jax.lax.broadcasted_iota(jnp.int32, (nr, bsz), 0)
    ci = jax.lax.broadcasted_iota(jnp.int32, (nr, bsz), 1)
    R = jnp.logical_and(ri >= ci * nneg, ri < (ci + 1) * nneg).astype(jnp.float32)
    A2 = jnp.dot(R, cos_neg, preferred_element_type=jnp.float32)         # (nr, NNEG)
    rj = jax.lax.broadcasted_iota(jnp.int32, (nr, nneg), 0)
    cj = jax.lax.broadcasted_iota(jnp.int32, (nr, nneg), 1)
    Q = (cj == (rj & (nneg - 1))).astype(jnp.float32)                    # picks col j
    c_rj = jnp.sum(A2 * Q, axis=1, keepdims=True)                        # cos_neg[b,j]
    rank = jnp.sum((A2 >= c_rj).astype(jnp.float32), axis=1, keepdims=True)
    keep = (rank <= NEG_TOPK).astype(jnp.float32)                        # (nr, 1)
    # softmax over [pos | top-k negs].  No max shift needed: cosines are in [-1,1]
    # so exp(c/T) <= e^20, comfortably inside float32 range.
    w2 = jnp.exp(c_rj * inv_t) * keep                                    # (nr, 1)
    gi = jax.lax.broadcasted_iota(jnp.int32, (bsz, nr), 0)
    gj = jax.lax.broadcasted_iota(jnp.int32, (bsz, nr), 1)
    Gn = jnp.logical_and(gj >= gi * nneg, gj < (gi + 1) * nneg).astype(jnp.float32)
    s_neg = jnp.dot(Gn, w2, preferred_element_type=jnp.float32)          # (B, 1)

    e_pos = jnp.exp(cos_pos * inv_t)
    logp0 = cos_pos * inv_t - jnp.log(e_pos + s_neg)                     # (B, 1)
    loss = -jnp.sum(logp0, axis=0, keepdims=True) / bsz                  # (1, 1)
    acc = (jnp.sum((cos_pos >= max_neg).astype(jnp.float32),
                   axis=0, keepdims=True) / bsz)                         # (1, 1)

    out_ref[0:1, 0:1] = loss
    out_ref[0:1, 1:2] = acc


# ----------------------------------------------------------------------------
# Encoder.forward (thin glue + the single fused pallas_call; 6 operands)
# ----------------------------------------------------------------------------
_VSPEC = pl.BlockSpec(memory_space=pltpu.MemorySpace.VMEM)


def encoder_forward(params, xy_batch, neg_aids):
    b = xy_batch.shape[0]
    n = b * N_LENGTH
    n_neg = N_NEG_COEF * b
    x_batch = xy_batch[:, :-N_LABEL * 2]
    xy_tail = xy_batch[:, -N_LABEL * 2:].astype(jnp.int32)               # (B, 2*NL)

    xb = x_batch.reshape(b, N_FEAT + 1, N_LENGTH).transpose(0, 2, 1)     # (B, L, 3)
    aid = xb[:, :, 0].reshape(n).astype(jnp.int32)
    hr = xb[:, :, 1].reshape(n).astype(jnp.int32)
    feat2 = xb[:, :, 2].reshape(n)
    ang = (hr % 24).astype(jnp.float32) / 24.0 * 2.0 * np.pi
    x_other = jnp.stack([jnp.sin(ang), jnp.cos(ang),
                         feat2.astype(jnp.float32)], axis=1)             # (B*L, 3)

    y_batch = xy_tail[:, :N_LABEL]
    label_type = xy_tail[:, N_LABEL:]
    # TODO(synk): these two tiny gathers stay in XLA glue; doing them in-kernel would
    # need a (B*NL, D) -> (B, NL, D) reshape of a one-hot matmul result, which has no
    # guaranteed Mosaic lowering.
    y_em = params['emb'][y_batch]                                        # (B, NL, D)
    lt_em = params['emb_label_type'][label_type]                         # (B, NL, D)
    yl_em = jnp.concatenate([y_em, lt_em], axis=2)                       # (B, NL, 2D)

    # packed int32 driver slab: col0 = aid rows then neg rows, col1 = hour,
    # cols 2: = [y_batch | label_type] in the first B rows.
    ints = jnp.zeros((n + n_neg, INT_COLS), jnp.int32)
    ints = ints.at[:n, 0].set(aid)
    ints = ints.at[n:, 0].set(neg_aids.astype(jnp.int32))
    ints = ints.at[:n, 1].set(hr)
    ints = ints.at[:b, 2:].set(xy_tail)

    out = pl.pallas_call(
        encoder_kernel,
        out_shape=jax.ShapeDtypeStruct((1, 2), jnp.float32),
        in_specs=[_VSPEC] * 6,
        out_specs=_VSPEC,
    )(ints, x_other, yl_em, params['emb'], params['w_all'], params['vecs'])
    return out[0, 0], out[0, 1]


# ----------------------------------------------------------------------------
# deterministic parameter init (shapes per Encoder.__init__, small config, packed)
# ----------------------------------------------------------------------------
def init_params(key):
    ks = jax.random.split(key, 20)

    def lin(kw, kb, fan_in, fan_out):
        bound = 1.0 / np.sqrt(fan_in)
        w = jax.random.uniform(kw, (fan_in, fan_out), jnp.float32, -bound, bound)
        bb = jax.random.uniform(kb, (fan_out,), jnp.float32, -bound, bound)
        return w, bb

    emb = jax.random.uniform(ks[0], (N_AID, EMB_DIM), jnp.float32, -1.0, 1.0)
    emb_h = jax.random.uniform(ks[1], (H_VOCAB, TIME_EMB_DIM), jnp.float32, -1.0, 1.0)
    emb_lt = jax.random.normal(ks[2], (7, EMB_DIM), jnp.float32)
    emb_lt = emb_lt.at[0].set(0.0)                                       # padding_idx=0

    mlp_w1, mlp_b1 = lin(ks[3], ks[4], INP_DIM, EMB_DIM)
    mlp_w2, mlp_b2 = lin(ks[5], ks[6], EMB_DIM, EMB_DIM)

    ew1, eb1, ew2, eb2 = [], [], [], []
    for i in range(3):
        w1i, b1i = lin(ks[7 + 4 * i], ks[8 + 4 * i], EMB_DIM, HID)
        w2i, b2i = lin(ks[9 + 4 * i], ks[10 + 4 * i], HID, EMB_DIM)
        ew1.append(w1i); eb1.append(b1i); ew2.append(w2i); eb2.append(b2i)

    # pack: ONE slab for every dense weight (E-block weights zero-padded to aligned
    # 32x32 tiles -- exact) and ONE (16, 64) "vecs" slab for every 1-D parameter plus
    # the tiny emb_h table (fewer DMA descriptors per call).
    w_all = jnp.zeros((W_ROWS, EMB_DIM), jnp.float32)
    w_all = w_all.at[0:INP_DIM, :].set(mlp_w1)
    w_all = w_all.at[OFF_MLP_W2:OFF_MLP_W2 + EMB_DIM, :].set(mlp_w2)
    for i in range(3):
        r0 = OFF_E + 2 * EMB_DIM * i
        w_all = w_all.at[r0:r0 + EMB_DIM, 0:HID].set(ew1[i])
        w_all = w_all.at[r0 + EMB_DIM:r0 + EMB_DIM + HID, :].set(ew2[i])

    vecs = jnp.zeros((VECS_ROWS, VECS_COLS), jnp.float32)
    vecs = vecs.at[ROW_BN_G, :INP_DIM].set(1.0)                          # bn gamma
    # bn beta / ln beta rows stay zero
    vecs = vecs.at[ROW_B1, :EMB_DIM].set(mlp_b1)
    vecs = vecs.at[ROW_B2, :EMB_DIM].set(mlp_b2)
    for i in range(3):
        vecs = vecs.at[ROW_LN_G + i, :EMB_DIM].set(1.0)                  # ln gamma
        vecs = vecs.at[ROW_EB1 + i, :HID].set(eb1[i])
        vecs = vecs.at[ROW_EB2 + i, :EMB_DIM].set(eb2[i])
    vecs = vecs.at[0:H_VOCAB, COL_EMBH:COL_EMBH + TIME_EMB_DIM].set(emb_h)

    return dict(emb=emb, emb_label_type=emb_lt, w_all=w_all, vecs=vecs)


if __name__ == "__main__":
    key = jax.random.PRNGKey(0)
    kp, kd, kn = jax.random.split(key, 3)
    params = init_params(kp)

    k1, k2, k3, k4, k5 = jax.random.split(kd, 5)
    aid = jax.random.randint(k1, (BATCH, N_LENGTH), 0, N_AID - 1)
    aid = aid.at[0, -2:].set(N_AID - 1)                 # a couple of padded positions
    hr = jax.random.randint(k2, (BATCH, N_LENGTH), 0, H_VOCAB - 3)
    feat = jax.random.randint(k3, (BATCH, N_LENGTH), 0, 5)
    y_batch = jax.random.randint(k4, (BATCH, N_LABEL), 0, N_AID - 1)
    y_batch = y_batch.at[1, -1].set(N_AID - 1)          # one padded label
    label_type = jax.random.randint(k5, (BATCH, N_LABEL), 0, 7)
    label_type = label_type.at[:, 0].set(jnp.maximum(label_type[:, 0], 1))

    x_part = jnp.concatenate([aid, hr, feat], axis=1)   # matches reshape(-1, 3, L)
    xy_batch = jnp.concatenate([x_part, y_batch, label_type], axis=1).astype(jnp.int32)

    # torch.randperm(n_aid)[:n_neg_coef*B]  -> deterministic JAX permutation (host glue)
    neg_aids = jax.random.permutation(kn, N_AID)[:N_NEG]

    loss, acc = jax.jit(encoder_forward)(params, xy_batch, neg_aids)
    loss = jax.block_until_ready(loss)
    acc = jax.block_until_ready(acc)
    assert bool(jnp.isfinite(loss)) and bool(jnp.isfinite(acc))
    print("KERNEL_OK")
</pallas_src>

<mosaic_0001>
module attributes {stable_mosaic.version = 11 : i64} {
  func.func @encoder_kernel(%arg0: memref<64x10xi32, #tpu.memory_space<vmem>>, %arg1: memref<32x3xf32, #tpu.memory_space<vmem>>, %arg2: memref<4x4x64xf32, #tpu.memory_space<vmem>>, %arg3: memref<512x32xf32, #tpu.memory_space<vmem>>, %arg4: memref<280x32xf32, #tpu.memory_space<vmem>>, %arg5: memref<16x64xf32, #tpu.memory_space<vmem>>, %arg6: memref<1x2xf32, #tpu.memory_space<vmem>>) attributes {dimension_semantics = [], scalar_prefetch = 0 : i64, scratch_operands = 0 : i64, tpu.core_type = #tpu.core_type<tc>} {
    %c0 = arith.constant 0 : index
    %c0_0 = arith.constant 0 : index
    %0 = vector.load %arg0[%c0, %c0_0] : memref<64x10xi32, #tpu.memory_space<vmem>>, vector<32x1xi32>
    %c0_1 = arith.constant 0 : index
    %c1 = arith.constant 1 : index
    %1 = vector.load %arg0[%c0_1, %c1] : memref<64x10xi32, #tpu.memory_space<vmem>>, vector<32x1xi32>
    %c0_2 = arith.constant 0 : index
    %c2 = arith.constant 2 : index
    %2 = vector.load %arg0[%c0_2, %c2] : memref<64x10xi32, #tpu.memory_space<vmem>>, vector<4x8xi32>
    %c511_i32 = arith.constant 511 : i32
    %3 = vector.broadcast %c511_i32 : i32 to vector<32x1xi32>
    %4 = arith.cmpi ne, %0, %3 : vector<32x1xi32>
    %5 = arith.extui %4 : vector<32x1xi1> to vector<32x1xi32>
    %6 = arith.sitofp %5 : vector<32x1xi32> to vector<32x1xf32>
    %c0_3 = arith.constant 0 : index
    %c0_4 = arith.constant 0 : index
    %7 = vector.load %arg0[%c0_3, %c0_4] : memref<64x10xi32, #tpu.memory_space<vmem>>, vector<64x1xi32>
    %8 = tpu.iota {dimensions = array<i32: 1>} : vector<64x512xi32>
    %9 = vector.broadcast %7 : vector<64x1xi32> to vector<64x512xi32>
    %10 = arith.cmpi eq, %8, %9 : vector<64x512xi32>
    %11 = arith.extui %10 : vector<64x512xi1> to vector<64x512xi32>
    %12 = arith.sitofp %11 : vector<64x512xi32> to vector<64x512xf32>
    %c0_5 = arith.constant 0 : index
    %c0_6 = arith.constant 0 : index
    %13 = vector.load %arg3[%c0_5, %c0_6] : memref<512x32xf32, #tpu.memory_space<vmem>>, vector<512x32xf32>
    %cst = arith.constant dense<0.000000e+00> : vector<64x32xf32>
    %14 = tpu.matmul %12, %13, %cst {dimension_numbers = #tpu.dot_dimension_numbers<[1], [0], [0], [1], [0, 0, 1, 1], [], []>} : vector<64x512xf32>, vector<512x32xf32>, vector<64x32xf32> -> vector<64x32xf32>
    %15 = vector.extract_strided_slice %14 {offsets = [0, 0], sizes = [32, 32], strides = [1, 1]} : vector<64x32xf32> to vector<32x32xf32>
    %16 = vector.extract_strided_slice %14 {offsets = [32, 0], sizes = [32, 32], strides = [1, 1]} : vector<64x32xf32> to vector<32x32xf32>
    %17 = tpu.iota {dimensions = array<i32: 1>} : vector<32x16xi32>
    %18 = vector.broadcast %1 : vector<32x1xi32> to vector<32x16xi32>
    %19 = arith.cmpi eq, %17, %18 : vector<32x16xi32>
    %20 = arith.extui %19 : vector<32x16xi1> to vector<32x16xi32>
    %21 = arith.sitofp %20 : vector<32x16xi32> to vector<32x16xf32>
    %c1_i32 = arith.constant 1 : i32
    %22 = vector.broadcast %c1_i32 : i32 to vector<32x1xi32>
    %23 = arith.addi %1, %22 : vector<32x1xi32>
    %c15_i32 = arith.constant 15 : i32
    %24 = vector.broadcast %c15_i32 : i32 to vector<32x1xi32>
    %25 = arith.minsi %23, %24 : vector<32x1xi32>
    %26 = vector.broadcast %25 : vector<32x1xi32> to vector<32x16xi32>
    %27 = arith.cmpi eq, %17, %26 : vector<32x16xi32>
    %28 = arith.extui %27 : vector<32x16xi1> to vector<32x16xi32>
    %29 = arith.sitofp %28 : vector<32x16xi32> to vector<32x16xf32>
    %30 = arith.addf %21, %29 : vector<32x16xf32>
    %c2_i32 = arith.constant 2 : i32
    %31 = vector.broadcast %c2_i32 : i32 to vector<32x1xi32>
    %32 = arith.addi %1, %31 : vector<32x1xi32>
    %c15_i32_7 = arith.constant 15 : i32
    %33 = vector.broadcast %c15_i32_7 : i32 to vector<32x1xi32>
    %34 = arith.minsi %32, %33 : vector<32x1xi32>
    %35 = vector.broadcast %34 : vector<32x1xi32> to vector<32x16xi32>
    %36 = arith.cmpi eq, %17, %35 : vector<32x16xi32>
    %37 = arith.extui %36 : vector<32x16xi1> to vector<32x16xi32>
    %38 = arith.sitofp %37 : vector<32x16xi32> to vector<32x16xf32>
    %39 = arith.addf %30, %38 : vector<32x16xf32>
    %c0_8 = arith.constant 0 : index
    %c52 = arith.constant 52 : index
    %40 = vector.load %arg5[%c0_8, %c52] : memref<16x64xf32, #tpu.memory_space<vmem>>, vector<16x8xf32>
    %cst_9 = arith.constant dense<0.000000e+00> : vector<32x8xf32>
    %41 = tpu.matmul %39, %40, %cst_9 {dimension_numbers = #tpu.dot_dimension_numbers<[1], [0], [0], [1], [0, 0, 1, 1], [], []>} : vector<32x16xf32>, vector<16x8xf32>, vector<32x8xf32> -> vector<32x8xf32>
    %42 = tpu.iota {dimensions = array<i32: 0>} : vector<32x8xi32>
    %43 = tpu.iota {dimensions = array<i32: 1>} : vector<32x8xi32>
    %c7_i32 = arith.constant 7 : i32
    %44 = vector.broadcast %c7_i32 : i32 to vector<32x8xi32>
    %45 = arith.andi %42, %44 : vector<32x8xi32>
    %46 = arith.cmpi eq, %43, %45 : vector<32x8xi32>
    %47 = arith.extui %46 : vector<32x8xi1> to vector<32x8xi32>
    %48 = arith.sitofp %47 : vector<32x8xi32> to vector<32x8xf32>
    %c0_10 = arith.constant 0 : index
    %c0_11 = arith.constant 0 : index
    %49 = vector.load %arg1[%c0_10, %c0_11] : memref<32x3xf32, #tpu.memory_space<vmem>>, vector<32x3xf32>
    %50 = tpu.concatenate %15, %49, %41, %48 in 1 : vector<32x32xf32>, vector<32x3xf32>, vector<32x8xf32>, vector<32x8xf32> -> vector<32x51xf32>
    %51 = vector.broadcast %6 : vector<32x1xf32> to vector<32x51xf32>
    %52 = arith.mulf %50, %51 : vector<32x51xf32>
    %cst_12 = arith.constant dense<0.000000e+00> : vector<51xf32>
    %53 = vector.multi_reduction <add>, %52, %cst_12 [0] : vector<32x51xf32> to vector<51xf32>
    %54 = vector.shape_cast %53 : vector<51xf32> to vector<1x51xf32>
    %cst_13 = arith.constant 3.200000e+01 : f32
    %55 = vector.broadcast %cst_13 : f32 to vector<1x51xf32>
    %56 = arith.divf %54, %55 : vector<1x51xf32>
    %57 = vector.broadcast %56 : vector<1x51xf32> to vector<32x51xf32>
    %58 = arith.subf %52, %57 : vector<32x51xf32>
    %59 = arith.mulf %58, %58 : vector<32x51xf32>
    %cst_14 = arith.constant dense<0.000000e+00> : vector<51xf32>
    %60 = vector.multi_reduction <add>, %59, %cst_14 [0] : vector<32x51xf32> to vector<51xf32>
    %61 = vector.shape_cast %60 : vector<51xf32> to vector<1x51xf32>
    %cst_15 = arith.constant 3.200000e+01 : f32
    %62 = vector.broadcast %cst_15 : f32 to vector<1x51xf32>
    %63 = arith.divf %61, %62 : vector<1x51xf32>
    %64 = vector.broadcast %56 : vector<1x51xf32> to vector<32x51xf32>
    %65 = arith.subf %52, %64 : vector<32x51xf32>
    %cst_16 = arith.constant 9.99999974E-6 : f32
    %66 = vector.broadcast %cst_16 : f32 to vector<1x51xf32>
    %67 = arith.addf %63, %66 : vector<1x51xf32>
    %68 = math.rsqrt %67 : vector<1x51xf32>
    %69 = vector.broadcast %68 : vector<1x51xf32> to vector<32x51xf32>
    %70 = arith.mulf %65, %69 : vector<32x51xf32>
    %c0_17 = arith.constant 0 : index
    %c0_18 = arith.constant 0 : index
    %71 = vector.load %arg5[%c0_17, %c0_18] : memref<16x64xf32, #tpu.memory_space<vmem>>, vector<1x51xf32>
    %72 = vector.broadcast %71 : vector<1x51xf32> to vector<32x51xf32>
    %73 = arith.mulf %70, %72 : vector<32x51xf32>
    %c1_19 = arith.constant 1 : index
    %c0_20 = arith.constant 0 : index
    %74 = vector.load %arg5[%c1_19, %c0_20] : memref<16x64xf32, #tpu.memory_space<vmem>>, vector<1x51xf32>
    %75 = vector.broadcast %74 : vector<1x51xf32> to vector<32x51xf32>
    %76 = arith.addf %73, %75 : vector<32x51xf32>
    %c0_21 = arith.constant 0 : index
    %c0_22 = arith.constant 0 : index
    %77 = vector.load %arg4[%c0_21, %c0_22] : memref<280x32xf32, #tpu.memory_space<vmem>>, vector<51x32xf32>
    %cst_23 = arith.constant dense<0.000000e+00> : vector<32x32xf32>
    %78 = tpu.matmul %76, %77, %cst_23 {dimension_numbers = #tpu.dot_dimension_numbers<[1], [0], [0], [1], [0, 0, 1, 1], [], []>} : vector<32x51xf32>, vector<51x32xf32>, vector<32x32xf32> -> vector<32x32xf32>
    %c2_24 = arith.constant 2 : index
    %c0_25 = arith.constant 0 : index
    %79 = vector.load %arg5[%c2_24, %c0_25] : memref<16x64xf32, #tpu.memory_space<vmem>>, vector<1x32xf32>
    %80 = vector.broadcast %79 : vector<1x32xf32> to vector<32x32xf32>
    %81 = arith.addf %78, %80 : vector<32x32xf32>
    %82 = arith.mulf %81, %81 : vector<32x32xf32>
    %83 = arith.mulf %81, %82 : vector<32x32xf32>
    %cst_26 = arith.constant 4.471500e-02 : f32
    %84 = vector.broadcast %cst_26 : f32 to vector<32x32xf32>
    %85 = arith.mulf %84, %83 : vector<32x32xf32>
    %86 = arith.addf %81, %85 : vector<32x32xf32>
    %cst_27 = arith.constant 0.797884583 : f32
    %87 = vector.broadcast %cst_27 : f32 to vector<32x32xf32>
    %88 = arith.mulf %87, %86 : vector<32x32xf32>
    %89 = math.tanh %88 : vector<32x32xf32>
    %cst_28 = arith.constant 1.000000e+00 : f32
    %90 = vector.broadcast %cst_28 : f32 to vector<32x32xf32>
    %91 = arith.addf %90, %89 : vector<32x32xf32>
    %cst_29 = arith.constant 5.000000e-01 : f32
    %92 = vector.broadcast %cst_29 : f32 to vector<32x32xf32>
    %93 = arith.mulf %92, %91 : vector<32x32xf32>
    %94 = arith.mulf %81, %93 : vector<32x32xf32>
    %c56 = arith.constant 56 : index
    %c0_30 = arith.constant 0 : index
    %95 = vector.load %arg4[%c56, %c0_30] : memref<280x32xf32, #tpu.memory_space<vmem>>, vector<32x32xf32>
    %cst_31 = arith.constant dense<0.000000e+00> : vector<32x32xf32>
    %96 = tpu.matmul %94, %95, %cst_31 {dimension_numbers = #tpu.dot_dimension_numbers<[1], [0], [0], [1], [0, 0, 1, 1], [], []>} : vector<32x32xf32>, vector<32x32xf32>, vector<32x32xf32> -> vector<32x32xf32>
    %c3 = arith.constant 3 : index
    %c0_32 = arith.constant 0 : index
    %97 = vector.load %arg5[%c3, %c0_32] : memref<16x64xf32, #tpu.memory_space<vmem>>, vector<1x32xf32>
    %98 = vector.broadcast %97 : vector<1x32xf32> to vector<32x32xf32>
    %99 = arith.addf %96, %98 : vector<32x32xf32>
    %100 = vector.broadcast %6 : vector<32x1xf32> to vector<32x32xf32>
    %101 = arith.mulf %99, %100 : vector<32x32xf32>
    %cst_33 = arith.constant dense<0.000000e+00> : vector<32xf32>
    %102 = vector.multi_reduction <add>, %101, %cst_33 [1] : vector<32x32xf32> to vector<32xf32>
    %103 = vector.shape_cast %102 : vector<32xf32> to vector<32x1xf32>
    %cst_34 = arith.constant 3.200000e+01 : f32
    %104 = vector.broadcast %cst_34 : f32 to vector<32x1xf32>
    %105 = arith.divf %103, %104 : vector<32x1xf32>
    %106 = vector.broadcast %105 : vector<32x1xf32> to vector<32x32xf32>
    %107 = arith.subf %101, %106 : vector<32x32xf32>
    %108 = arith.mulf %107, %107 : vector<32x32xf32>
    %cst_35 = arith.constant dense<0.000000e+00> : vector<32xf32>
    %109 = vector.multi_reduction <add>, %108, %cst_35 [1] : vector<32x32xf32> to vector<32xf32>
    %110 = vector.shape_cast %109 : vector<32xf32> to vector<32x1xf32>
    %cst_36 = arith.constant 3.200000e+01 : f32
    %111 = vector.broadcast %cst_36 : f32 to vector<32x1xf32>
    %112 = arith.divf %110, %111 : vector<32x1xf32>
    %113 = vector.broadcast %105 : vector<32x1xf32> to vector<32x32xf32>
    %114 = arith.subf %101, %113 : vector<32x32xf32>
    %cst_37 = arith.constant 9.99999974E-6 : f32
    %115 = vector.broadcast %cst_37 : f32 to vector<32x1xf32>
    %116 = arith.addf %112, %115 : vector<32x1xf32>
    %117 = math.rsqrt %116 : vector<32x1xf32>
    %118 = vector.broadcast %117 : vector<32x1xf32> to vector<32x32xf32>
    %119 = arith.mulf %114, %118 : vector<32x32xf32>
    %c4 = arith.constant 4 : index
    %c0_38 = arith.constant 0 : index
    %120 = vector.load %arg5[%c4, %c0_38] : memref<16x64xf32, #tpu.memory_space<vmem>>, vector<1x32xf32>
    %121 = vector.broadcast %120 : vector<1x32xf32> to vector<32x32xf32>
    %122 = arith.mulf %119, %121 : vector<32x32xf32>
    %c7 = arith.constant 7 : index
    %c0_39 = arith.constant 0 : index
    %123 = vector.load %arg5[%c7, %c0_39] : memref<16x64xf32, #tpu.memory_space<vmem>>, vector<1x32xf32>
    %124 = vector.broadcast %123 : vector<1x32xf32> to vector<32x32xf32>
    %125 = arith.addf %122, %124 : vector<32x32xf32>
    %c88 = arith.constant 88 : index
    %c0_40 = arith.constant 0 : index
    %126 = vector.load %arg4[%c88, %c0_40] : memref<280x32xf32, #tpu.memory_space<vmem>>, vector<32x32xf32>
    %c120 = arith.constant 120 : index
    %c0_41 = arith.constant 0 : index
    %127 = vector.load %arg4[%c120, %c0_41] : memref<280x32xf32, #tpu.memory_space<vmem>>, vector<32x32xf32>
    %cst_42 = arith.constant dense<0.000000e+00> : vector<32x32xf32>
    %128 = tpu.matmul %125, %126, %cst_42 {dimension_numbers = #tpu.dot_dimension_numbers<[1], [0], [0], [1], [0, 0, 1, 1], [], []>} : vector<32x32xf32>, vector<32x32xf32>, vector<32x32xf32> -> vector<32x32xf32>
    %c10 = arith.constant 10 : index
    %c0_43 = arith.constant 0 : index
    %129 = vector.load %arg5[%c10, %c0_43] : memref<16x64xf32, #tpu.memory_space<vmem>>, vector<1x32xf32>
    %130 = vector.broadcast %129 : vector<1x32xf32> to vector<32x32xf32>
    %131 = arith.addf %128, %130 : vector<32x32xf32>
    %132 = arith.mulf %131, %131 : vector<32x32xf32>
    %133 = arith.mulf %131, %132 : vector<32x32xf32>
    %cst_44 = arith.constant 4.471500e-02 : f32
    %134 = vector.broadcast %cst_44 : f32 to vector<32x32xf32>
    %135 = arith.mulf %134, %133 : vector<32x32xf32>
    %136 = arith.addf %131, %135 : vector<32x32xf32>
    %cst_45 = arith.constant 0.797884583 : f32
    %137 = vector.broadcast %cst_45 : f32 to vector<32x32xf32>
    %138 = arith.mulf %137, %136 : vector<32x32xf32>
    %139 = math.tanh %138 : vector<32x32xf32>
    %cst_46 = arith.constant 1.000000e+00 : f32
    %140 = vector.broadcast %cst_46 : f32 to vector<32x32xf32>
    %141 = arith.addf %140, %139 : vector<32x32xf32>
    %cst_47 = arith.constant 5.000000e-01 : f32
    %142 = vector.broadcast %cst_47 : f32 to vector<32x32xf32>
    %143 = arith.mulf %142, %141 : vector<32x32xf32>
    %144 = arith.mulf %131, %143 : vector<32x32xf32>
    %cst_48 = arith.constant dense<0.000000e+00> : vector<32x32xf32>
    %145 = tpu.matmul %144, %127, %cst_48 {dimension_numbers = #tpu.dot_dimension_numbers<[1], [0], [0], [1], [0, 0, 1, 1], [], []>} : vector<32x32xf32>, vector<32x32xf32>, vector<32x32xf32> -> vector<32x32xf32>
    %c13 = arith.constant 13 : index
    %c0_49 = arith.constant 0 : index
    %146 = vector.load %arg5[%c13, %c0_49] : memref<16x64xf32, #tpu.memory_space<vmem>>, vector<1x32xf32>
    %147 = vector.broadcast %146 : vector<1x32xf32> to vector<32x32xf32>
    %148 = arith.addf %145, %147 : vector<32x32xf32>
    %149 = arith.addf %125, %148 : vector<32x32xf32>
    %cst_50 = arith.constant dense<0.000000e+00> : vector<32xf32>
    %150 = vector.multi_reduction <add>, %149, %cst_50 [1] : vector<32x32xf32> to vector<32xf32>
    %151 = vector.shape_cast %150 : vector<32xf32> to vector<32x1xf32>
    %cst_51 = arith.constant 3.200000e+01 : f32
    %152 = vector.broadcast %cst_51 : f32 to vector<32x1xf32>
    %153 = arith.divf %151, %152 : vector<32x1xf32>
    %154 = vector.broadcast %153 : vector<32x1xf32> to vector<32x32xf32>
    %155 = arith.subf %149, %154 : vector<32x32xf32>
    %156 = arith.mulf %155, %155 : vector<32x32xf32>
    %cst_52 = arith.constant dense<0.000000e+00> : vector<32xf32>
    %157 = vector.multi_reduction <add>, %156, %cst_52 [1] : vector<32x32xf32> to vector<32xf32>
    %158 = vector.shape_cast %157 : vector<32xf32> to vector<32x1xf32>
    %cst_53 = arith.constant 3.200000e+01 : f32
    %159 = vector.broadcast %cst_53 : f32 to vector<32x1xf32>
    %160 = arith.divf %158, %159 : vector<32x1xf32>
    %161 = vector.broadcast %153 : vector<32x1xf32> to vector<32x32xf32>
    %162 = arith.subf %149, %161 : vector<32x32xf32>
    %cst_54 = arith.constant 9.99999974E-6 : f32
    %163 = vector.broadcast %cst_54 : f32 to vector<32x1xf32>
    %164 = arith.addf %160, %163 : vector<32x1xf32>
    %165 = math.rsqrt %164 : vector<32x1xf32>
    %166 = vector.broadcast %165 : vector<32x1xf32> to vector<32x32xf32>
    %167 = arith.mulf %162, %166 : vector<32x32xf32>
    %c5 = arith.constant 5 : index
    %c0_55 = arith.constant 0 : index
    %168 = vector.load %arg5[%c5, %c0_55] : memref<16x64xf32, #tpu.memory_space<vmem>>, vector<1x32xf32>
    %169 = vector.broadcast %168 : vector<1x32xf32> to vector<32x32xf32>
    %170 = arith.mulf %167, %169 : vector<32x32xf32>
    %c8 = arith.constant 8 : index
    %c0_56 = arith.constant 0 : index
    %171 = vector.load %arg5[%c8, %c0_56] : memref<16x64xf32, #tpu.memory_space<vmem>>, vector<1x32xf32>
    %172 = vector.broadcast %171 : vector<1x32xf32> to vector<32x32xf32>
    %173 = arith.addf %170, %172 : vector<32x32xf32>
    %c152 = arith.constant 152 : index
    %c0_57 = arith.constant 0 : index
    %174 = vector.load %arg4[%c152, %c0_57] : memref<280x32xf32, #tpu.memory_space<vmem>>, vector<32x32xf32>
    %c184 = arith.constant 184 : index
    %c0_58 = arith.constant 0 : index
    %175 = vector.load %arg4[%c184, %c0_58] : memref<280x32xf32, #tpu.memory_space<vmem>>, vector<32x32xf32>
    %cst_59 = arith.constant dense<0.000000e+00> : vector<32x32xf32>
    %176 = tpu.matmul %173, %174, %cst_59 {dimension_numbers = #tpu.dot_dimension_numbers<[1], [0], [0], [1], [0, 0, 1, 1], [], []>} : vector<32x32xf32>, vector<32x32xf32>, vector<32x32xf32> -> vector<32x32xf32>
    %c11 = arith.constant 11 : index
    %c0_60 = arith.constant 0 : index
    %177 = vector.load %arg5[%c11, %c0_60] : memref<16x64xf32, #tpu.memory_space<vmem>>, vector<1x32xf32>
    %178 = vector.broadcast %177 : vector<1x32xf32> to vector<32x32xf32>
    %179 = arith.addf %176, %178 : vector<32x32xf32>
    %180 = arith.mulf %179, %179 : vector<32x32xf32>
    %181 = arith.mulf %179, %180 : vector<32x32xf32>
    %cst_61 = arith.constant 4.471500e-02 : f32
    %182 = vector.broadcast %cst_61 : f32 to vector<32x32xf32>
    %183 = arith.mulf %182, %181 : vector<32x32xf32>
    %184 = arith.addf %179, %183 : vector<32x32xf32>
    %cst_62 = arith.constant 0.797884583 : f32
    %185 = vector.broadcast %cst_62 : f32 to vector<32x32xf32>
    %186 = arith.mulf %185, %184 : vector<32x32xf32>
    %187 = math.tanh %186 : vector<32x32xf32>
    %cst_63 = arith.constant 1.000000e+00 : f32
    %188 = vector.broadcast %cst_63 : f32 to vector<32x32xf32>
    %189 = arith.addf %188, %187 : vector<32x32xf32>
    %cst_64 = arith.constant 5.000000e-01 : f32
    %190 = vector.broadcast %cst_64 : f32 to vector<32x32xf32>
    %191 = arith.mulf %190, %189 : vector<32x32xf32>
    %192 = arith.mulf %179, %191 : vector<32x32xf32>
    %cst_65 = arith.constant dense<0.000000e+00> : vector<32x32xf32>
    %193 = tpu.matmul %192, %175, %cst_65 {dimension_numbers = #tpu.dot_dimension_numbers<[1], [0], [0], [1], [0, 0, 1, 1], [], []>} : vector<32x32xf32>, vector<32x32xf32>, vector<32x32xf32> -> vector<32x32xf32>
    %c14 = arith.constant 14 : index
    %c0_66 = arith.constant 0 : index
    %194 = vector.load %arg5[%c14, %c0_66] : memref<16x64xf32, #tpu.memory_space<vmem>>, vector<1x32xf32>
    %195 = vector.broadcast %194 : vector<1x32xf32> to vector<32x32xf32>
    %196 = arith.addf %193, %195 : vector<32x32xf32>
    %197 = arith.addf %173, %196 : vector<32x32xf32>
    %cst_67 = arith.constant dense<0.000000e+00> : vector<32xf32>
    %198 = vector.multi_reduction <add>, %197, %cst_67 [1] : vector<32x32xf32> to vector<32xf32>
    %199 = vector.shape_cast %198 : vector<32xf32> to vector<32x1xf32>
    %cst_68 = arith.constant 3.200000e+01 : f32
    %200 = vector.broadcast %cst_68 : f32 to vector<32x1xf32>
    %201 = arith.divf %199, %200 : vector<32x1xf32>
    %202 = vector.broadcast %201 : vector<32x1xf32> to vector<32x32xf32>
    %203 = arith.subf %197, %202 : vector<32x32xf32>
    %204 = arith.mulf %203, %203 : vector<32x32xf32>
    %cst_69 = arith.constant dense<0.000000e+00> : vector<32xf32>
    %205 = vector.multi_reduction <add>, %204, %cst_69 [1] : vector<32x32xf32> to vector<32xf32>
    %206 = vector.shape_cast %205 : vector<32xf32> to vector<32x1xf32>
    %cst_70 = arith.constant 3.200000e+01 : f32
    %207 = vector.broadcast %cst_70 : f32 to vector<32x1xf32>
    %208 = arith.divf %206, %207 : vector<32x1xf32>
    %209 = vector.broadcast %201 : vector<32x1xf32> to vector<32x32xf32>
    %210 = arith.subf %197, %209 : vector<32x32xf32>
    %cst_71 = arith.constant 9.99999974E-6 : f32
    %211 = vector.broadcast %cst_71 : f32 to vector<32x1xf32>
    %212 = arith.addf %208, %211 : vector<32x1xf32>
    %213 = math.rsqrt %212 : vector<32x1xf32>
    %214 = vector.broadcast %213 : vector<32x1xf32> to vector<32x32xf32>
    %215 = arith.mulf %210, %214 : vector<32x32xf32>
    %c6 = arith.constant 6 : index
    %c0_72 = arith.constant 0 : index
    %216 = vector.load %arg5[%c6, %c0_72] : memref<16x64xf32, #tpu.memory_space<vmem>>, vector<1x32xf32>
    %217 = vector.broadcast %216 : vector<1x32xf32> to vector<32x32xf32>
    %218 = arith.mulf %215, %217 : vector<32x32xf32>
    %c9 = arith.constant 9 : index
    %c0_73 = arith.constant 0 : index
    %219 = vector.load %arg5[%c9, %c0_73] : memref<16x64xf32, #tpu.memory_space<vmem>>, vector<1x32xf32>
    %220 = vector.broadcast %219 : vector<1x32xf32> to vector<32x32xf32>
    %221 = arith.addf %218, %220 : vector<32x32xf32>
    %c216 = arith.constant 216 : index
    %c0_74 = arith.constant 0 : index
    %222 = vector.load %arg4[%c216, %c0_74] : memref<280x32xf32, #tpu.memory_space<vmem>>, vector<32x32xf32>
    %c248 = arith.constant 248 : index
    %c0_75 = arith.constant 0 : index
    %223 = vector.load %arg4[%c248, %c0_75] : memref<280x32xf32, #tpu.memory_space<vmem>>, vector<32x32xf32>
    %cst_76 = arith.constant dense<0.000000e+00> : vector<32x32xf32>
    %224 = tpu.matmul %221, %222, %cst_76 {dimension_numbers = #tpu.dot_dimension_numbers<[1], [0], [0], [1], [0, 0, 1, 1], [], []>} : vector<32x32xf32>, vector<32x32xf32>, vector<32x32xf32> -> vector<32x32xf32>
    %c12 = arith.constant 12 : index
    %c0_77 = arith.constant 0 : index
    %225 = vector.load %arg5[%c12, %c0_77] : memref<16x64xf32, #tpu.memory_space<vmem>>, vector<1x32xf32>
    %226 = vector.broadcast %225 : vector<1x32xf32> to vector<32x32xf32>
    %227 = arith.addf %224, %226 : vector<32x32xf32>
    %228 = arith.mulf %227, %227 : vector<32x32xf32>
    %229 = arith.mulf %227, %228 : vector<32x32xf32>
    %cst_78 = arith.constant 4.471500e-02 : f32
    %230 = vector.broadcast %cst_78 : f32 to vector<32x32xf32>
    %231 = arith.mulf %230, %229 : vector<32x32xf32>
    %232 = arith.addf %227, %231 : vector<32x32xf32>
    %cst_79 = arith.constant 0.797884583 : f32
    %233 = vector.broadcast %cst_79 : f32 to vector<32x32xf32>
    %234 = arith.mulf %233, %232 : vector<32x32xf32>
    %235 = math.tanh %234 : vector<32x32xf32>
    %cst_80 = arith.constant 1.000000e+00 : f32
    %236 = vector.broadcast %cst_80 : f32 to vector<32x32xf32>
    %237 = arith.addf %236, %235 : vector<32x32xf32>
    %cst_81 = arith.constant 5.000000e-01 : f32
    %238 = vector.broadcast %cst_81 : f32 to vector<32x32xf32>
    %239 = arith.mulf %238, %237 : vector<32x32xf32>
    %240 = arith.mulf %227, %239 : vector<32x32xf32>
    %cst_82 = arith.constant dense<0.000000e+00> : vector<32x32xf32>
    %241 = tpu.matmul %240, %223, %cst_82 {dimension_numbers = #tpu.dot_dimension_numbers<[1], [0], [0], [1], [0, 0, 1, 1], [], []>} : vector<32x32xf32>, vector<32x32xf32>, vector<32x32xf32> -> vector<32x32xf32>
    %c15 = arith.constant 15 : index
    %c0_83 = arith.constant 0 : index
    %242 = vector.load %arg5[%c15, %c0_83] : memref<16x64xf32, #tpu.memory_space<vmem>>, vector<1x32xf32>
    %243 = vector.broadcast %242 : vector<1x32xf32> to vector<32x32xf32>
    %244 = arith.addf %241, %243 : vector<32x32xf32>
    %245 = arith.addf %221, %244 : vector<32x32xf32>
    %246 = tpu.iota {dimensions = array<i32: 0>} : vector<4x32xi32>
    %247 = tpu.iota {dimensions = array<i32: 1>} : vector<4x32xi32>
    %c8_i32 = arith.constant 8 : i32
    %248 = vector.broadcast %c8_i32 : i32 to vector<4x32xi32>
    %249 = arith.muli %246, %248 : vector<4x32xi32>
    %250 = arith.subi %247, %249 : vector<4x32xi32>
    %c0_i32 = arith.constant 0 : i32
    %251 = vector.broadcast %c0_i32 : i32 to vector<4x32xi32>
    %252 = arith.cmpi sge, %250, %251 : vector<4x32xi32>
    %c8_i32_84 = arith.constant 8 : i32
    %253 = vector.broadcast %c8_i32_84 : i32 to vector<4x32xi32>
    %254 = arith.cmpi slt, %250, %253 : vector<4x32xi32>
    %255 = arith.andi %252, %254 : vector<4x32xi1>
    %256 = arith.extui %255 : vector<4x32xi1> to vector<4x32xi32>
    %257 = arith.sitofp %256 : vector<4x32xi32> to vector<4x32xf32>
    %258 = vector.broadcast %6 : vector<32x1xf32> to vector<32x32xf32>
    %259 = arith.mulf %245, %258 : vector<32x32xf32>
    %260 = tpu.concatenate %259, %6 in 1 : vector<32x32xf32>, vector<32x1xf32> -> vector<32x33xf32>
    %cst_85 = arith.constant dense<0.000000e+00> : vector<4x33xf32>
    %261 = tpu.matmul %257, %260, %cst_85 {dimension_numbers = #tpu.dot_dimension_numbers<[1], [0], [0], [1], [0, 0, 1, 1], [], []>} : vector<4x32xf32>, vector<32x33xf32>, vector<4x33xf32> -> vector<4x33xf32>
    %262 = vector.extract_strided_slice %261 {offsets = [0, 0], sizes = [4, 32], strides = [1, 1]} : vector<4x33xf32> to vector<4x32xf32>
    %263 = vector.extract_strided_slice %261 {offsets = [0, 32], sizes = [4, 1], strides = [1, 1]} : vector<4x33xf32> to vector<4x1xf32>
    %264 = vector.broadcast %263 : vector<4x1xf32> to vector<4x32xf32>
    %265 = arith.divf %262, %264 : vector<4x32xf32>
    %266 = vector.extract_strided_slice %2 {offsets = [0, 0], sizes = [4, 4], strides = [1, 1]} : vector<4x8xi32> to vector<4x4xi32>
    %267 = vector.extract_strided_slice %2 {offsets = [0, 4], sizes = [4, 4], strides = [1, 1]} : vector<4x8xi32> to vector<4x4xi32>
    %c511_i32_86 = arith.constant 511 : i32
    %268 = vector.broadcast %c511_i32_86 : i32 to vector<4x4xi32>
    %269 = arith.cmpi eq, %266, %268 : vector<4x4xi32>
    %270 = arith.extui %269 : vector<4x4xi1> to vector<4x4xi32>
    %271 = arith.sitofp %270 : vector<4x4xi32> to vector<4x4xf32>
    %272 = arith.sitofp %267 : vector<4x4xi32> to vector<4x4xf32>
    %c0_87 = arith.constant 0 : index
    %c0_88 = arith.constant 0 : index
    %c0_89 = arith.constant 0 : index
    %273 = vector.load %arg2[%c0_87, %c0_88, %c0_89] : memref<4x4x64xf32, #tpu.memory_space<vmem>>, vector<4x4x32xf32>
    %c0_90 = arith.constant 0 : index
    %c0_91 = arith.constant 0 : index
    %c32 = arith.constant 32 : index
    %274 = vector.load %arg2[%c0_90, %c0_91, %c32] : memref<4x4x64xf32, #tpu.memory_space<vmem>>, vector<4x4x32xf32>
    %275 = vector.shape_cast %265 : vector<4x32xf32> to vector<4x1x32xf32>
    %276 = vector.shape_cast %275 : vector<4x1x32xf32> to vector<4x1x32xf32>
    %277 = vector.broadcast %276 : vector<4x1x32xf32> to vector<4x4x32xf32>
    %278 = arith.addf %277, %274 : vector<4x4x32xf32>
    %279 = arith.mulf %278, %278 : vector<4x4x32xf32>
    %cst_92 = arith.constant dense<0.000000e+00> : vector<4x4xf32>
    %280 = vector.multi_reduction <add>, %279, %cst_92 [2] : vector<4x4x32xf32> to vector<4x4xf32>
    %281 = vector.shape_cast %280 : vector<4x4xf32> to vector<4x4x1xf32>
    %282 = math.rsqrt %281 : vector<4x4x1xf32>
    %283 = vector.broadcast %282 : vector<4x4x1xf32> to vector<4x4x32xf32>
    %284 = arith.mulf %278, %283 : vector<4x4x32xf32>
    %285 = arith.mulf %273, %273 : vector<4x4x32xf32>
    %cst_93 = arith.constant dense<0.000000e+00> : vector<4x4xf32>
    %286 = vector.multi_reduction <add>, %285, %cst_93 [2] : vector<4x4x32xf32> to vector<4x4xf32>
    %287 = vector.shape_cast %286 : vector<4x4xf32> to vector<4x4x1xf32>
    %288 = math.rsqrt %287 : vector<4x4x1xf32>
    %289 = vector.broadcast %288 : vector<4x4x1xf32> to vector<4x4x32xf32>
    %290 = arith.mulf %273, %289 : vector<4x4x32xf32>
    %291 = arith.mulf %16, %16 : vector<32x32xf32>
    %cst_94 = arith.constant dense<0.000000e+00> : vector<32xf32>
    %292 = vector.multi_reduction <add>, %291, %cst_94 [1] : vector<32x32xf32> to vector<32xf32>
    %293 = vector.shape_cast %292 : vector<32xf32> to vector<32x1xf32>
    %294 = math.rsqrt %293 : vector<32x1xf32>
    %295 = vector.broadcast %294 : vector<32x1xf32> to vector<32x32xf32>
    %296 = arith.mulf %16, %295 : vector<32x32xf32>
    %297 = arith.mulf %284, %290 : vector<4x4x32xf32>
    %cst_95 = arith.constant dense<0.000000e+00> : vector<4x4xf32>
    %298 = vector.multi_reduction <add>, %297, %cst_95 [2] : vector<4x4x32xf32> to vector<4x4xf32>
    %299 = arith.addf %298, %271 : vector<4x4xf32>
    %cst_96 = arith.constant dense<0x7F800000> : vector<4xf32>
    %300 = vector.multi_reduction <minimumf>, %299, %cst_96 [1] : vector<4x4xf32> to vector<4xf32>
    %301 = vector.shape_cast %300 : vector<4xf32> to vector<4x1xf32>
    %302 = arith.mulf %298, %272 : vector<4x4xf32>
    %cst_97 = arith.constant dense<0.000000e+00> : vector<4xf32>
    %303 = vector.multi_reduction <add>, %302, %cst_97 [1] : vector<4x4xf32> to vector<4xf32>
    %304 = vector.shape_cast %303 : vector<4xf32> to vector<4x1xf32>
    %cst_98 = arith.constant dense<0.000000e+00> : vector<4xf32>
    %305 = vector.multi_reduction <add>, %272, %cst_98 [1] : vector<4x4xf32> to vector<4xf32>
    %306 = vector.shape_cast %305 : vector<4xf32> to vector<4x1xf32>
    %307 = arith.divf %304, %306 : vector<4x1xf32>
    %308 = arith.addf %307, %301 : vector<4x1xf32>
    %cst_99 = arith.constant 5.000000e-01 : f32
    %309 = vector.broadcast %cst_99 : f32 to vector<4x1xf32>
    %310 = arith.mulf %308, %309 : vector<4x1xf32>
    %311 = vector.extract_strided_slice %284 {offsets = [0, 0, 0], sizes = [4, 1, 32], strides = [1, 1, 1]} : vector<4x4x32xf32> to vector<4x1x32xf32>
    %312 = vector.shape_cast %311 : vector<4x1x32xf32> to vector<4x32xf32>
    %cst_100 = arith.constant dense<0.000000e+00> : vector<4x32xf32>
    %313 = tpu.matmul %312, %296, %cst_100 {dimension_numbers = #tpu.dot_dimension_numbers<[1], [1], [0], [0], [0, 0, 1, 0], [], []>} : vector<4x32xf32>, vector<32x32xf32>, vector<4x32xf32> -> vector<4x32xf32>
    %cst_101 = arith.constant dense<0xFF800000> : vector<4xf32>
    %314 = vector.multi_reduction <maximumf>, %313, %cst_101 [1] : vector<4x32xf32> to vector<4xf32>
    %315 = vector.shape_cast %314 : vector<4xf32> to vector<4x1xf32>
    %316 = tpu.iota {dimensions = array<i32: 0>} : vector<128x4xi32>
    %317 = tpu.iota {dimensions = array<i32: 1>} : vector<128x4xi32>
    %c32_i32 = arith.constant 32 : i32
    %318 = vector.broadcast %c32_i32 : i32 to vector<128x4xi32>
    %319 = arith.muli %317, %318 : vector<128x4xi32>
    %320 = arith.cmpi sge, %316, %319 : vector<128x4xi32>
    %c1_i32_102 = arith.constant 1 : i32
    %321 = vector.broadcast %c1_i32_102 : i32 to vector<128x4xi32>
    %322 = arith.addi %317, %321 : vector<128x4xi32>
    %c32_i32_103 = arith.constant 32 : i32
    %323 = vector.broadcast %c32_i32_103 : i32 to vector<128x4xi32>
    %324 = arith.muli %322, %323 : vector<128x4xi32>
    %325 = arith.cmpi slt, %316, %324 : vector<128x4xi32>
    %326 = arith.andi %320, %325 : vector<128x4xi1>
    %327 = arith.extui %326 : vector<128x4xi1> to vector<128x4xi32>
    %328 = arith.sitofp %327 : vector<128x4xi32> to vector<128x4xf32>
    %cst_104 = arith.constant dense<0.000000e+00> : vector<128x32xf32>
    %329 = tpu.matmul %328, %313, %cst_104 {dimension_numbers = #tpu.dot_dimension_numbers<[1], [0], [0], [1], [0, 0, 1, 1], [], []>} : vector<128x4xf32>, vector<4x32xf32>, vector<128x32xf32> -> vector<128x32xf32>
    %330 = tpu.iota {dimensions = array<i32: 0>} : vector<128x32xi32>
    %331 = tpu.iota {dimensions = array<i32: 1>} : vector<128x32xi32>
    %c31_i32 = arith.constant 31 : i32
    %332 = vector.broadcast %c31_i32 : i32 to vector<128x32xi32>
    %333 = arith.andi %330, %332 : vector<128x32xi32>
    %334 = arith.cmpi eq, %331, %333 : vector<128x32xi32>
    %335 = arith.extui %334 : vector<128x32xi1> to vector<128x32xi32>
    %336 = arith.sitofp %335 : vector<128x32xi32> to vector<128x32xf32>
    %337 = arith.mulf %329, %336 : vector<128x32xf32>
    %cst_105 = arith.constant dense<0.000000e+00> : vector<128xf32>
    %338 = vector.multi_reduction <add>, %337, %cst_105 [1] : vector<128x32xf32> to vector<128xf32>
    %339 = vector.shape_cast %338 : vector<128xf32> to vector<128x1xf32>
    %340 = vector.broadcast %339 : vector<128x1xf32> to vector<128x32xf32>
    %341 = arith.cmpf oge, %329, %340 : vector<128x32xf32>
    %342 = arith.extui %341 : vector<128x32xi1> to vector<128x32xi32>
    %343 = arith.sitofp %342 : vector<128x32xi32> to vector<128x32xf32>
    %cst_106 = arith.constant dense<0.000000e+00> : vector<128xf32>
    %344 = vector.multi_reduction <add>, %343, %cst_106 [1] : vector<128x32xf32> to vector<128xf32>
    %345 = vector.shape_cast %344 : vector<128xf32> to vector<128x1xf32>
    %cst_107 = arith.constant 8.000000e+00 : f32
    %346 = vector.broadcast %cst_107 : f32 to vector<128x1xf32>
    %347 = arith.cmpf ole, %345, %346 : vector<128x1xf32>
    %348 = arith.extui %347 : vector<128x1xi1> to vector<128x1xi32>
    %349 = arith.sitofp %348 : vector<128x1xi32> to vector<128x1xf32>
    %cst_108 = arith.constant 2.000000e+01 : f32
    %350 = vector.broadcast %cst_108 : f32 to vector<128x1xf32>
    %351 = arith.mulf %339, %350 : vector<128x1xf32>
    %352 = math.exp %351 : vector<128x1xf32>
    %353 = arith.mulf %352, %349 : vector<128x1xf32>
    %354 = tpu.iota {dimensions = array<i32: 0>} : vector<4x128xi32>
    %355 = tpu.iota {dimensions = array<i32: 1>} : vector<4x128xi32>
    %c32_i32_109 = arith.constant 32 : i32
    %356 = vector.broadcast %c32_i32_109 : i32 to vector<4x128xi32>
    %357 = arith.muli %354, %356 : vector<4x128xi32>
    %358 = arith.cmpi sge, %355, %357 : vector<4x128xi32>
    %c1_i32_110 = arith.constant 1 : i32
    %359 = vector.broadcast %c1_i32_110 : i32 to vector<4x128xi32>
    %360 = arith.addi %354, %359 : vector<4x128xi32>
    %c32_i32_111 = arith.constant 32 : i32
    %361 = vector.broadcast %c32_i32_111 : i32 to vector<4x128xi32>
    %362 = arith.muli %360, %361 : vector<4x128xi32>
    %363 = arith.cmpi slt, %355, %362 : vector<4x128xi32>
    %364 = arith.andi %358, %363 : vector<4x128xi1>
    %365 = arith.extui %364 : vector<4x128xi1> to vector<4x128xi32>
    %366 = arith.sitofp %365 : vector<4x128xi32> to vector<4x128xf32>
    %cst_112 = arith.constant dense<0.000000e+00> : vector<4x1xf32>
    %367 = tpu.matmul %366, %353, %cst_112 {dimension_numbers = #tpu.dot_dimension_numbers<[1], [0], [0], [1], [0, 0, 1, 1], [], []>} : vector<4x128xf32>, vector<128x1xf32>, vector<4x1xf32> -> vector<4x1xf32>
    %cst_113 = arith.constant 2.000000e+01 : f32
    %368 = vector.broadcast %cst_113 : f32 to vector<4x1xf32>
    %369 = arith.mulf %310, %368 : vector<4x1xf32>
    %370 = math.exp %369 : vector<4x1xf32>
    %cst_114 = arith.constant 2.000000e+01 : f32
    %371 = vector.broadcast %cst_114 : f32 to vector<4x1xf32>
    %372 = arith.mulf %310, %371 : vector<4x1xf32>
    %373 = arith.addf %370, %367 : vector<4x1xf32>
    %374 = math.log %373 : vector<4x1xf32>
    %375 = arith.subf %372, %374 : vector<4x1xf32>
    %cst_115 = arith.constant dense<0.000000e+00> : vector<1xf32>
    %376 = vector.multi_reduction <add>, %375, %cst_115 [0] : vector<4x1xf32> to vector<1xf32>
    %377 = vector.shape_cast %376 : vector<1xf32> to vector<1x1xf32>
    %cst_116 = arith.constant 0.000000e+00 : f32
    %378 = vector.broadcast %cst_116 : f32 to vector<1x1xf32>
    %379 = arith.subf %378, %377 : vector<1x1xf32>
    %cst_117 = arith.constant 4.000000e+00 : f32
    %380 = vector.broadcast %cst_117 : f32 to vector<1x1xf32>
    %381 = arith.divf %379, %380 : vector<1x1xf32>
    %382 = arith.cmpf oge, %310, %315 : vector<4x1xf32>
    %383 = arith.extui %382 : vector<4x1xi1> to vector<4x1xi32>
    %384 = arith.sitofp %383 : vector<4x1xi32> to vector<4x1xf32>
    %cst_118 = arith.constant dense<0.000000e+00> : vector<1xf32>
    %385 = vector.multi_reduction <add>, %384, %cst_118 [0] : vector<4x1xf32> to vector<1xf32>
    %386 = vector.shape_cast %385 : vector<1xf32> to vector<1x1xf32>
    %cst_119 = arith.constant 4.000000e+00 : f32
    %387 = vector.broadcast %cst_119 : f32 to vector<1x1xf32>
    %388 = arith.divf %386, %387 : vector<1x1xf32>
    %c0_120 = arith.constant 0 : index
    %c0_121 = arith.constant 0 : index
    %389 = vector.load %arg6[%c0_120, %c0_121] : memref<1x2xf32, #tpu.memory_space<vmem>>, vector<1x1xf32>
    tpu.vector_store %arg6[%c0_120, %c0_121], %381 {strides = array<i32>} : memref<1x2xf32, #tpu.memory_space<vmem>>, vector<1x1xf32>,
    %c0_122 = arith.constant 0 : index
    %c1_123 = arith.constant 1 : index
    %390 = vector.load %arg6[%c0_122, %c1_123] : memref<1x2xf32, #tpu.memory_space<vmem>>, vector<1x1xf32>
    tpu.vector_store %arg6[%c0_122, %c1_123], %388 {strides = array<i32>} : memref<1x2xf32, #tpu.memory_space<vmem>>, vector<1x1xf32>,
    return
  }
}

</mosaic_0001>

<llo_original>
// kernel: cos.7
$region0: #{cos.7}
  #allocation0 [shape = 's32[1]{0}', space=sflag, size = 0x4, scoped, tag = 'scoped memory for cos.7']
  %s0 = inlined_call_operand.vmem [shape: f32[32,1], index: 0, kind: input, shape index: {}]
  %s1 = inlined_call_operand.vmem [shape: f32[32,1], index: 1, kind: output, shape index: {}]
  %v2 = vld [vmem:[%s0] sm:$0x1]
  %v3 = vand.u32 2147483647, %v2
  %vm4 = vcmp.le.f32.partialorder %v3, 0.7853982
  %vm5 = vcmp.lt.s32.totalorder %v2, 0
  %v6 = vand.u32 %v2, 2139095040
  %v7 = vshrl.u32 %v6, 23
  %v8 = vsub.s32 %v7, 127
  %v9 = vand.u32 2147483647, %v2
  %v10 = vand.u32 %v9, 8388607
  %v11 = vor.u32 %v10, 8388608
  %v12 = vsub.s32 0, %v11
  %v13 = vadd.s32 %v8, 1
  %vm14 = vcmp.gt.s32.totalorder %v13, 0
  %v15 = vsel %vm14, %v13, 0
  %v16 = vshrl.u32 %v15, 5
  %v17 = vand.u32 %v15, 31
  %v18 = vsub.s32 32, %v17
  %v19 = vshrl.u32 683565275, %v18
  %v20 = vshll.u32 683565275, %v17
  %v21 = vshrl.u32 2475754826, %v18
  %v22 = vor.u32 %v20, %v21
  %v23 = vshll.u32 2475754826, %v17
  %v24 = vshrl.u32 2131351028, %v18
  %v25 = vor.u32 %v23, %v24
  %v26 = vshll.u32 2131351028, %v17
  %v27 = vshrl.u32 2102212464, %v18
  %v28 = vor.u32 %v26, %v27
  %v29 = vshll.u32 2102212464, %v17
  %v30 = vshrl.u32 920167782, %v18
  %v31 = vor.u32 %v29, %v30
  %v32 = vshll.u32 920167782, %v17
  %v33 = vshrl.u32 1326507024, %v18
  %v34 = vor.u32 %v32, %v33
  %vm35 = vcmp.lt.s32.totalorder %v16, 1
  %vm36 = vcmp.lt.s32.totalorder %v16, 2
  %vm37 = vcmp.lt.s32.totalorder %v16, 3
  %vm38 = vcmp.lt.s32.totalorder %v16, 4
  %v39 = vsel %vm35, %v19, %v22
  %v40 = vsel %vm38, %v28, 2102212464
  %v41 = vsel %vm37, %v25, %v40
  %v42 = vsel %vm36, %v39, %v41
  %v43 = vsel %vm35, %v22, %v25
  %v44 = vsel %vm38, %v31, 920167782
  %v45 = vsel %vm37, %v28, %v44
  %v46 = vsel %vm36, %v43, %v45
  %v47 = vsel %vm35, %v25, %v28
  %v48 = vsel %vm38, %v34, 1326507024
  %v49 = vsel %vm37, %v31, %v48
  %v50 = vsel %vm36, %v47, %v49
  %v51 = vshll.u32 %v11, 8
  %v52 = vmul.u32.u64.compose %v51, %v50
  %v53 = vextract.low.u32 %v52
  %v54 = vextract.high.u32 %v52
  %v55 = vmul.u32.u64.compose %v51, %v46
  %v56 = vextract.low.u32 %v55
  %v57 = vextract.high.u32 %v55
  %v58 = vmul.u32 %v51, %v42
  %v59 = vadd.s32 %v54, %v56
  %vm60 = vc.u32 %v54, %v56
  %v61 = vadd.s32 %v57, 1
  %v62 = vsel %vm60, %v61, %v57
  %v63 = vadd.s32 %v58, %v62
  %v64 = vadd.s32 %v63, 536870912
  %v65 = vshrl.u32 %v64, 30
  %v66 = vshll.u32 %v65, 30
  %v67 = vsub.s32 %v63, %v66
  %vm68 = vcmp.lt.s32.totalorder %v67, 0
  %v69 = vsub.s32 0, %v67
  %v70 = vsel %vm68, %v69, %v67
  %v71 = vclz %v70
  %v72 = vsub.s32 %v71, 2
  %vm73 = vcmp.gt.s32.totalorder 0, %v72
  %v74 = vsel %vm73, 0, %v72
  %v75 = vsub.s32 32, %v74
  %v76 = vshll.u32 %v67, %v74
  %v77 = vshrl.u32 %v59, %v75
  %v78 = vor.u32 %v76, %v77
  %v79 = vsub.s32 4294967266, %v74
  %v80 = vadd.s32 %v79, 127
  %v81 = vshll.u32 %v80, 23
  %v82 = vor.u32 4788187, %v81
  %v83 = vand.u32 2147483647, %v82
  %v85 = vcvt.s32.f32 %v78
  %v86 = vmul.f32 %v85, %v83
  %v87 = vxor.u32 %v86, 2147483648
  %v88 = vsel %vm5, %v87, %v86
  %v89 = vsub.s32 4, %v65
  %v90 = vsel %vm5, %v89, %v65
  %v91 = vsel %vm4, %v2, %v88
  %v92 = vsel %vm4, 0, %v90
  %v93 = vcosq.f32.pop %v91
  %v94 = vsinq.f32.pop %v91
  %vm95 = vweird.f32 %v2
  %v96 = vand.u32 %v92, 3
  %vm97 = vcmp.lt.s32.totalorder %v96, 2
  %vm98 = vcmp.eq.s32.totalorder %v96, 0
  %v99 = vxor.u32 %v94, 2147483648
  %v100 = vsel %vm98, %v93, %v99
  %vm101 = vcmp.eq.s32.totalorder %v96, 2
  %v102 = vxor.u32 %v93, 2147483648
  %v103 = vsel %vm101, %v102, %v94
  %v104 = vsel %vm97, %v100, %v103
  %v105 = vsel %vm95, nan, %v104
  %106 = vst [vmem:[%s1] sm:$0x1] %v105

// kernel: encoder_forward.1
$region0: #{encoder_forward.1}
  #allocation0 [shape = 'u32[]', space=smem, size = 0x4, offset = 0x4, fixed_abs, tag = 'smem constant byte address 0x4 - core index']
  #allocation1 [shape = 'u32[144,128]{1,0:T(1,128)}', space=vmem, size = 0x12000, scoped, tag = 'internal scratch']
  %s0 = inlined_call_operand.vmem [shape: s32[64,10], index: 0, kind: input, shape index: {}]
  %s1 = inlined_call_operand.vmem [shape: f32[32,3], index: 1, kind: input, shape index: {}]
  %s2 = inlined_call_operand.vmem [shape: f32[4,4,64], index: 2, kind: input, shape index: {}]
  %s3 = inlined_call_operand.vmem [shape: f32[512,32], index: 3, kind: input, shape index: {}]
  %s4 = inlined_call_operand.vmem [shape: f32[280,32], index: 4, kind: input, shape index: {}]
  %s5 = inlined_call_operand.vmem [shape: f32[16,64], index: 5, kind: input, shape index: {}]
  %s6 = inlined_call_operand.vmem [shape: f32[1,2], index: 6, kind: output, shape index: {}]
  %s7 = sld [smem:[#allocation0]]
  $region34: #{encoder_forward.1} parent=0
    _
  %s9 = ssub.s32 1, %s7
  %s10 = scalar_select 0, %s9, %s7
  // Predicated region
  $region2: #{encoder_forward.1} parent=0 // pred_check
    _
  $region3: #{encoder_forward.1} parent=0 // pred_check_branch
    %12 = sbr.rel (0) target = $region5
  $region4: #{encoder_forward.1} parent=0 // pred_region
    _
  $region5: #{encoder_forward.1} parent=0 // pred_fallthru
    _
  // Predicated region
  $region6: #{encoder_forward.1} parent=0 // pred_check
    _
  $region7: #{encoder_forward.1} parent=0 // pred_check_branch
    %14 = sbr.rel (0) target = $region9
  $region8: #{encoder_forward.1} parent=0 // pred_region
    _
  $region9: #{encoder_forward.1} parent=0 // pred_fallthru
    _
  // Predicated region
  $region10: #{encoder_forward.1} parent=0 // pred_check
    _
  $region11: #{encoder_forward.1} parent=0 // pred_check_branch
    %16 = sbr.rel (0) target = $region13
  $region12: #{encoder_forward.1} parent=0 // pred_region
    _
  $region13: #{encoder_forward.1} parent=0 // pred_fallthru
    _
  // Predicated region
  $region14: #{encoder_forward.1} parent=0 // pred_check
    _
  $region15: #{encoder_forward.1} parent=0 // pred_check_branch
    %18 = sbr.rel (0) target = $region17
  $region16: #{encoder_forward.1} parent=0 // pred_region
    _
  $region17: #{encoder_forward.1} parent=0 // pred_fallthru
    _
  // Predicated region
  $region18: #{encoder_forward.1} parent=0 // pred_check
    _
  $region19: #{encoder_forward.1} parent=0 // pred_check_branch
    %20 = sbr.rel (0) target = $region21
  $region20: #{encoder_forward.1} parent=0 // pred_region
    _
  $region21: #{encoder_forward.1} parent=0 // pred_fallthru
    _
  // Predicated region
  $region22: #{encoder_forward.1} parent=0 // pred_check
    _
  $region23: #{encoder_forward.1} parent=0 // pred_check_branch
    %22 = sbr.rel (0) target = $region25
  $region24: #{encoder_forward.1} parent=0 // pred_region
    _
  $region25: #{encoder_forward.1} parent=0 // pred_fallthru
    _
  %v23 = vld [vmem:[%s0] sm:$0xff]
  %v24 = vld [vmem:[%s0 + $0x8] sm:$0xff]
  %v25 = vld [vmem:[%s0 + $0x10] sm:$0xff]
  %v26 = vld [vmem:[%s0 + $0x18] sm:$0xff]
  %v27 = vld [vmem:[%s0] sm:$0xf]
  %vm28 = vcmp.ne.s32.totalorder %v23, 511
  %vm29 = vcmp.ne.s32.totalorder %v24, 511
  %vm30 = vcmp.ne.s32.totalorder %v25, 511
  %vm31 = vcmp.ne.s32.totalorder %v26, 511
  %v32 = vsel %vm28, 1, 0
  %v33 = vsel %vm29, 1, 0
  %v34 = vsel %vm30, 1, 0
  %v35 = vsel %vm31, 1, 0
  %v36 = vcvt.s32.f32 %v32
  %v37 = vcvt.s32.f32 %v33
  %v38 = vcvt.s32.f32 %v34
  %v39 = vcvt.s32.f32 %v35
  %v40 = vld [vmem:[%s0 + $0x20] sm:$0xff]
  %v41 = vld [vmem:[%s0 + $0x28] sm:$0xff]
  %v42 = vld [vmem:[%s0 + $0x30] sm:$0xff]
  %v43 = vld [vmem:[%s0 + $0x38] sm:$0xff]
  %v44 = vlaneseq
  %v45 = vand.u32 %v44, 127
  %v46 = vadd.s32 %v45, 128
  %v47 = vadd.s32 %v45, 256
  %v48 = vadd.s32 %v45, 384
  %49 = vset.pattern.permute.xlu0 0
  %50 = vperm.xlu0 %49, %v23
  %v51 = vpop.permute.xlu0 %50
  %52 = vset.pattern.permute.xlu0 0
  %53 = vperm.xlu0 %52, %v24
  %v54 = vpop.permute.xlu0 %53
  %55 = vset.pattern.permute.xlu0 0
  %56 = vperm.xlu0 %55, %v25
  %v57 = vpop.permute.xlu0 %56
  %58 = vset.pattern.permute.xlu0 0
  %59 = vperm.xlu0 %58, %v26
  %v60 = vpop.permute.xlu0 %59
  %61 = vset.pattern.permute.xlu0 0
  %62 = vperm.xlu0 %61, %v40
  %v63 = vpop.permute.xlu0 %62
  %64 = vset.pattern.permute.xlu0 0
  %65 = vperm.xlu0 %64, %v41
  %v66 = vpop.permute.xlu0 %65
  %67 = vset.pattern.permute.xlu0 0
  %68 = vperm.xlu0 %67, %v42
  %v69 = vpop.permute.xlu0 %68
  %70 = vset.pattern.permute.xlu0 0
  %71 = vperm.xlu0 %70, %v43
  %v72 = vpop.permute.xlu0 %71
  %vm73 = vcmp.eq.s32.totalorder %v45, %v51
  %vm74 = vcmp.eq.s32.totalorder %v46, %v51
  %vm75 = vcmp.eq.s32.totalorder %v47, %v51
  %vm76 = vcmp.eq.s32.totalorder %v48, %v51
  %vm77 = vcmp.eq.s32.totalorder %v45, %v54
  %vm78 = vcmp.eq.s32.totalorder %v46, %v54
  %vm79 = vcmp.eq.s32.totalorder %v47, %v54
  %vm80 = vcmp.eq.s32.totalorder %v48, %v54
  %vm81 = vcmp.eq.s32.totalorder %v45, %v57
  %vm82 = vcmp.eq.s32.totalorder %v46, %v57
  %vm83 = vcmp.eq.s32.totalorder %v47, %v57
  %vm84 = vcmp.eq.s32.totalorder %v48, %v57
  %vm85 = vcmp.eq.s32.totalorder %v45, %v60
  %vm86 = vcmp.eq.s32.totalorder %v46, %v60
  %vm87 = vcmp.eq.s32.totalorder %v47, %v60
  %vm88 = vcmp.eq.s32.totalorder %v48, %v60
  %vm89 = vcmp.eq.s32.totalorder %v45, %v63
  %vm90 = vcmp.eq.s32.totalorder %v46, %v63
  %vm91 = vcmp.eq.s32.totalorder %v47, %v63
  %vm92 = vcmp.eq.s32.totalorder %v48, %v63
  %vm93 = vcmp.eq.s32.totalorder %v45, %v66
  %vm94 = vcmp.eq.s32.totalorder %v46, %v66
  %vm95 = vcmp.eq.s32.totalorder %v47, %v66
  %vm96 = vcmp.eq.s32.totalorder %v48, %v66
  %vm97 = vcmp.eq.s32.totalorder %v45, %v69
  %vm98 = vcmp.eq.s32.totalorder %v46, %v69
  %vm99 = vcmp.eq.s32.totalorder %v47, %v69
  %vm100 = vcmp.eq.s32.totalorder %v48, %v69
  %vm101 = vcmp.eq.s32.totalorder %v45, %v72
  %vm102 = vcmp.eq.s32.totalorder %v46, %v72
  %vm103 = vcmp.eq.s32.totalorder %v47, %v72
  %vm104 = vcmp.eq.s32.totalorder %v48, %v72
  %v105 = vsel %vm73, 1, 0
  %v106 = vsel %vm74, 1, 0
  %v107 = vsel %vm75, 1, 0
  %v108 = vsel %vm76, 1, 0
  %v109 = vsel %vm77, 1, 0
  %v110 = vsel %vm78, 1, 0
  %v111 = vsel %vm79, 1, 0
  %v112 = vsel %vm80, 1, 0
  %v113 = vsel %vm81, 1, 0
  %v114 = vsel %vm82, 1, 0
  %v115 = vsel %vm83, 1, 0
  %v116 = vsel %vm84, 1, 0
  %v117 = vsel %vm85, 1, 0
  %v118 = vsel %vm86, 1, 0
  %v119 = vsel %vm87, 1, 0
  %v120 = vsel %vm88, 1, 0
  %v121 = vsel %vm89, 1, 0
  %v122 = vsel %vm90, 1, 0
  %v123 = vsel %vm91, 1, 0
  %v124 = vsel %vm92, 1, 0
  %v125 = vsel %vm93, 1, 0
  %v126 = vsel %vm94, 1, 0
  %v127 = vsel %vm95, 1, 0
  %v128 = vsel %vm96, 1, 0
  %v129 = vsel %vm97, 1, 0
  %v130 = vsel %vm98, 1, 0
  %v131 = vsel %vm99, 1, 0
  %v132 = vsel %vm100, 1, 0
  %v133 = vsel %vm101, 1, 0
  %v134 = vsel %vm102, 1, 0
  %v135 = vsel %vm103, 1, 0
  %v136 = vsel %vm104, 1, 0
  %v137 = vcvt.s32.f32 %v105
  %v138 = vcvt.s32.f32 %v106
  %v139 = vcvt.s32.f32 %v107
  %v140 = vcvt.s32.f32 %v108
  %v141 = vcvt.s32.f32 %v109
  %v142 = vcvt.s32.f32 %v110
  %v143 = vcvt.s32.f32 %v111
  %v144 = vcvt.s32.f32 %v112
  %v145 = vcvt.s32.f32 %v113
  %v146 = vcvt.s32.f32 %v114
  %v147 = vcvt.s32.f32 %v115
  %v148 = vcvt.s32.f32 %v116
  %v149 = vcvt.s32.f32 %v117
  %v150 = vcvt.s32.f32 %v118
  %v151 = vcvt.s32.f32 %v119
  %v152 = vcvt.s32.f32 %v120
  %v153 = vcvt.s32.f32 %v121
  %v154 = vcvt.s32.f32 %v122
  %v155 = vcvt.s32.f32 %v123
  %v156 = vcvt.s32.f32 %v124
  %v157 = vcvt.s32.f32 %v125
  %v158 = vcvt.s32.f32 %v126
  %v159 = vcvt.s32.f32 %v127
  %v160 = vcvt.s32.f32 %v128
  %v161 = vcvt.s32.f32 %v129
  %v162 = vcvt.s32.f32 %v130
  %v163 = vcvt.s32.f32 %v131
  %v164 = vcvt.s32.f32 %v132
  %v165 = vcvt.s32.f32 %v133
  %v166 = vcvt.s32.f32 %v134
  %v167 = vcvt.s32.f32 %v135
  %v168 = vcvt.s32.f32 %v136
  %v169 = vld [vmem:[%s3] sm:$0xff]
  %v170 = vld [vmem:[%s3 + $0x8] sm:$0xff]
  %v171 = vld [vmem:[%s3 + $0x10] sm:$0xff]
  %v172 = vld [vmem:[%s3 + $0x18] sm:$0xff]
  %v173 = vld [vmem:[%s3 + $0x20] sm:$0xff]
  %v174 = vld [vmem:[%s3 + $0x28] sm:$0xff]
  %v175 = vld [vmem:[%s3 + $0x30] sm:$0xff]
  %v176 = vld [vmem:[%s3 + $0x38] sm:$0xff]
  %v177 = vld [vmem:[%s3 + $0x40] sm:$0xff]
  %v178 = vld [vmem:[%s3 + $0x48] sm:$0xff]
  %v179 = vld [vmem:[%s3 + $0x50] sm:$0xff]
  %v180 = vld [vmem:[%s3 + $0x58] sm:$0xff]
  %v181 = vld [vmem:[%s3 + $0x60] sm:$0xff]
  %v182 = vld [vmem:[%s3 + $0x68] sm:$0xff]
  %v183 = vld [vmem:[%s3 + $0x70] sm:$0xff]
  %v184 = vld [vmem:[%s3 + $0x78] sm:$0xff]
  %v185 = vld [vmem:[%s3 + $0x80] sm:$0xff]
  %v186 = vld [vmem:[%s3 + $0x88] sm:$0xff]
  %v187 = vld [vmem:[%s3 + $0x90] sm:$0xff]
  %v188 = vld [vmem:[%s3 + $0x98] sm:$0xff]
  %v189 = vld [vmem:[%s3 + $0xa0] sm:$0xff]
  %v190 = vld [vmem:[%s3 + $0xa8] sm:$0xff]
  %v191 = vld [vmem:[%s3 + $0xb0] sm:$0xff]
  %v192 = vld [vmem:[%s3 + $0xb8] sm:$0xff]
  %v193 = vld [vmem:[%s3 + $0xc0] sm:$0xff]
  %v194 = vld [vmem:[%s3 + $0xc8] sm:$0xff]
  %v195 = vld [vmem:[%s3 + $0xd0] sm:$0xff]
  %v196 = vld [vmem:[%s3 + $0xd8] sm:$0xff]
  %v197 = vld [vmem:[%s3 + $0xe0] sm:$0xff]
  %v198 = vld [vmem:[%s3 + $0xe8] sm:$0xff]
  %v199 = vld [vmem:[%s3 + $0xf0] sm:$0xff]
  %v200 = vld [vmem:[%s3 + $0xf8] sm:$0xff]
  %v201 = vld [vmem:[%s3 + $0x100] sm:$0xff]
  %v202 = vld [vmem:[%s3 + $0x108] sm:$0xff]
  %v203 = vld [vmem:[%s3 + $0x110] sm:$0xff]
  %v204 = vld [vmem:[%s3 + $0x118] sm:$0xff]
  %v205 = vld [vmem:[%s3 + $0x120] sm:$0xff]
  %v206 = vld [vmem:[%s3 + $0x128] sm:$0xff]
  %v207 = vld [vmem:[%s3 + $0x130] sm:$0xff]
  %v208 = vld [vmem:[%s3 + $0x138] sm:$0xff]
  %v209 = vld [vmem:[%s3 + $0x140] sm:$0xff]
  %v210 = vld [vmem:[%s3 + $0x148] sm:$0xff]
  %v211 = vld [vmem:[%s3 + $0x150] sm:$0xff]
  %v212 = vld [vmem:[%s3 + $0x158] sm:$0xff]
  %v213 = vld [vmem:[%s3 + $0x160] sm:$0xff]
  %v214 = vld [vmem:[%s3 + $0x168] sm:$0xff]
  %v215 = vld [vmem:[%s3 + $0x170] sm:$0xff]
  %v216 = vld [vmem:[%s3 + $0x178] sm:$0xff]
  %v217 = vld [vmem:[%s3 + $0x180] sm:$0xff]
  %v218 = vld [vmem:[%s3 + $0x188] sm:$0xff]
  %v219 = vld [vmem:[%s3 + $0x190] sm:$0xff]
  %v220 = vld [vmem:[%s3 + $0x198] sm:$0xff]
  %v221 = vld [vmem:[%s3 + $0x1a0] sm:$0xff]
  %v222 = vld [vmem:[%s3 + $0x1a8] sm:$0xff]
  %v223 = vld [vmem:[%s3 + $0x1b0] sm:$0xff]
  %v224 = vld [vmem:[%s3 + $0x1b8] sm:$0xff]
  %v225 = vld [vmem:[%s3 + $0x1c0] sm:$0xff]
  %v226 = vld [vmem:[%s3 + $0x1c8] sm:$0xff]
  %v227 = vld [vmem:[%s3 + $0x1d0] sm:$0xff]
  %v228 = vld [vmem:[%s3 + $0x1d8] sm:$0xff]
  %v229 = vld [vmem:[%s3 + $0x1e0] sm:$0xff]
  %v230 = vld [vmem:[%s3 + $0x1e8] sm:$0xff]
  %v231 = vld [vmem:[%s3 + $0x1f0] sm:$0xff]
  %v232 = vld [vmem:[%s3 + $0x1f8] sm:$0xff]
  %233 = vmatprep.subr.mxu0 0.0
  %234 = vmatpush1.msra.mxu0 %v169
  %235 = vmatprep.subr.mxu0 0.0
  %236 = vmatpush1.msra.mxu0 %v170
  %237 = vmatprep.subr.mxu0 0.0
  %238 = vmatpush1.msra.mxu0 %v171
  %239 = vmatprep.subr.mxu0 0.0
  %240 = vmatpush1.msra.mxu0 %v172
  %241 = vmatprep.subr.mxu0 0.0
  %242 = vmatpush1.msra.mxu0 %v173
  %243 = vmatprep.subr.mxu0 0.0
  %244 = vmatpush1.msra.mxu0 %v174
  %245 = vmatprep.subr.mxu0 0.0
  %246 = vmatpush1.msra.mxu0 %v175
  %247 = vmatprep.subr.mxu0 0.0
  %248 = vmatpush1.msra.mxu0 %v176
  %249 = vmatprep.subr.mxu0 0.0
  %250 = vmatpush1.msra.mxu0 %v177
  %251 = vmatprep.subr.mxu0 0.0
  %252 = vmatpush1.msra.mxu0 %v178
  %253 = vmatprep.subr.mxu0 0.0
  %254 = vmatpush1.msra.mxu0 %v179
  %255 = vmatprep.subr.mxu0 0.0
  %256 = vmatpush1.msra.mxu0 %v180
  %257 = vmatprep.subr.mxu0 0.0
  %258 = vmatpush1.msra.mxu0 %v181
  %259 = vmatprep.subr.mxu0 0.0
  %260 = vmatpush1.msra.mxu0 %v182
  %261 = vmatprep.subr.mxu0 0.0
  %262 = vmatpush1.msra.mxu0 %v183
  %263 = vmatprep.subr.mxu0 0.0
  %264 = vmatpush1.msra.mxu0 %v184
  %265 = vmatprep.subr.mxu0 0.0
  %266 = vmatpush1.msra.mxu0 %v185
  %267 = vmatprep.subr.mxu0 0.0
  %268 = vmatpush1.msra.mxu0 %v186
  %269 = vmatprep.subr.mxu0 0.0
  %270 = vmatpush1.msra.mxu0 %v187
  %271 = vmatprep.subr.mxu0 0.0
  %272 = vmatpush1.msra.mxu0 %v188
  %273 = vmatprep.subr.mxu0 0.0
  %274 = vmatpush1.msra.mxu0 %v189
  %275 = vmatprep.subr.mxu0 0.0
  %276 = vmatpush1.msra.mxu0 %v190
  %277 = vmatprep.subr.mxu0 0.0
  %278 = vmatpush1.msra.mxu0 %v191
  %279 = vmatprep.subr.mxu0 0.0
  %280 = vmatpush1.msra.mxu0 %v192
  %281 = vmatprep.subr.mxu0 0.0
  %282 = vmatpush1.msra.mxu0 %v193
  %283 = vmatprep.subr.mxu0 0.0
  %284 = vmatpush1.msra.mxu0 %v194
  %285 = vmatprep.subr.mxu0 0.0
  %286 = vmatpush1.msra.mxu0 %v195
  %287 = vmatprep.subr.mxu0 0.0
  %288 = vmatpush1.msra.mxu0 %v196
  %289 = vmatprep.subr.mxu0 0.0
  %290 = vmatpush1.msra.mxu0 %v197
  %291 = vmatprep.subr.mxu0 0.0
  %292 = vmatpush1.msra.mxu0 %v198
  %293 = vmatprep.subr.mxu0 0.0
  %294 = vmatpush1.msra.mxu0 %v199
  %295 = vmatprep.subr.mxu0 0.0
  %296 = vmatpush1.msra.mxu0 %v200
  %297 = vmatprep.mubr.f32.mxu0 %v138
  %298 = vmatmul.mubr.f32.gmra.mrb[0].mxu0 %v137
  %v299 = vpop.f32.mrb[0].mxu0
  %v300 = vadd.f32 0.0, %v299
  %v301 = vpop.f32.mrb[0].mxu0
  %302 = vmatprep.mubr.f32.mxu0 %v142
  %303 = vmatmul.mubr.f32.gmra.mrb[0].mxu0 %v141
  %v304 = vpop.f32.mrb[0].mxu0
  %v305 = vadd.f32 0.0, %v304
  %v306 = vpop.f32.mrb[0].mxu0
  %307 = vmatprep.mubr.f32.mxu0 %v146
  %308 = vmatmul.mubr.f32.gmra.mrb[0].mxu0 %v145
  %v309 = vpop.f32.mrb[0].mxu0
  %v310 = vadd.f32 0.0, %v309
  %v311 = vpop.f32.mrb[0].mxu0
  %312 = vmatprep.mubr.f32.mxu0 %v150
  %313 = vmatmul.mubr.f32.gmra.mrb[0].mxu0 %v149
  %v314 = vpop.f32.mrb[0].mxu0
  %v315 = vadd.f32 0.0, %v314
  %v316 = vpop.f32.mrb[0].mxu0
  %317 = vmatprep.mubr.f32.mxu0 %v154
  %318 = vmatmul.mubr.f32.gmra.mrb[0].mxu0 %v153
  %v319 = vpop.f32.mrb[0].mxu0
  %v320 = vadd.f32 0.0, %v319
  %v321 = vpop.f32.mrb[0].mxu0
  %322 = vmatprep.mubr.f32.mxu0 %v158
  %323 = vmatmul.mubr.f32.gmra.mrb[0].mxu0 %v157
  %v324 = vpop.f32.mrb[0].mxu0
  %v325 = vadd.f32 0.0, %v324
  %v326 = vpop.f32.mrb[0].mxu0
  %327 = vmatprep.mubr.f32.mxu0 %v162
  %328 = vmatmul.mubr.f32.gmra.mrb[0].mxu0 %v161
  %v329 = vpop.f32.mrb[0].mxu0
  %v330 = vadd.f32 0.0, %v329
  %v331 = vpop.f32.mrb[0].mxu0
  %332 = vmatprep.mubr.f32.mxu0 %v166
  %333 = vmatmul.mubr.f32.gmra.mrb[0].mxu0 %v165
  %v334 = vpop.f32.mrb[0].mxu0
  %v335 = vadd.f32 0.0, %v334
  %v336 = vpop.f32.mrb[0].mxu0
  %337 = vdwg.mxu0
  %338 = vmatprep.subr.mxu0 0.0
  %339 = vmatpush1.msra.mxu0 %v201
  %340 = vmatprep.subr.mxu0 0.0
  %341 = vmatpush1.msra.mxu0 %v202
  %342 = vmatprep.subr.mxu0 0.0
  %343 = vmatpush1.msra.mxu0 %v203
  %344 = vmatprep.subr.mxu0 0.0
  %345 = vmatpush1.msra.mxu0 %v204
  %346 = vmatprep.subr.mxu0 0.0
  %347 = vmatpush1.msra.mxu0 %v205
  %348 = vmatprep.subr.mxu0 0.0
  %349 = vmatpush1.msra.mxu0 %v206
  %350 = vmatprep.subr.mxu0 0.0
  %351 = vmatpush1.msra.mxu0 %v207
  %352 = vmatprep.subr.mxu0 0.0
  %353 = vmatpush1.msra.mxu0 %v208
  %354 = vmatprep.subr.mxu0 0.0
  %355 = vmatpush1.msra.mxu0 %v209
  %356 = vmatprep.subr.mxu0 0.0
  %357 = vmatpush1.msra.mxu0 %v210
  %358 = vmatprep.subr.mxu0 0.0
  %359 = vmatpush1.msra.mxu0 %v211
  %360 = vmatprep.subr.mxu0 0.0
  %361 = vmatpush1.msra.mxu0 %v212
  %362 = vmatprep.subr.mxu0 0.0
  %363 = vmatpush1.msra.mxu0 %v213
  %364 = vmatprep.subr.mxu0 0.0
  %365 = vmatpush1.msra.mxu0 %v214
  %366 = vmatprep.subr.mxu0 0.0
  %367 = vmatpush1.msra.mxu0 %v215
  %368 = vmatprep.subr.mxu0 0.0
  %369 = vmatpush1.msra.mxu0 %v216
  %370 = vmatprep.subr.mxu0 0.0
  %371 = vmatpush1.msra.mxu0 %v217
  %372 = vmatprep.subr.mxu0 0.0
  %373 = vmatpush1.msra.mxu0 %v218
  %374 = vmatprep.subr.mxu0 0.0
  %375 = vmatpush1.msra.mxu0 %v219
  %376 = vmatprep.subr.mxu0 0.0
  %377 = vmatpush1.msra.mxu0 %v220
  %378 = vmatprep.subr.mxu0 0.0
  %379 = vmatpush1.msra.mxu0 %v221
  %380 = vmatprep.subr.mxu0 0.0
  %381 = vmatpush1.msra.mxu0 %v222
  %382 = vmatprep.subr.mxu0 0.0
  %383 = vmatpush1.msra.mxu0 %v223
  %384 = vmatprep.subr.mxu0 0.0
  %385 = vmatpush1.msra.mxu0 %v224
  %386 = vmatprep.subr.mxu0 0.0
  %387 = vmatpush1.msra.mxu0 %v225
  %388 = vmatprep.subr.mxu0 0.0
  %389 = vmatpush1.msra.mxu0 %v226
  %390 = vmatprep.subr.mxu0 0.0
  %391 = vmatpush1.msra.mxu0 %v227
  %392 = vmatprep.subr.mxu0 0.0
  %393 = vmatpush1.msra.mxu0 %v228
  %394 = vmatprep.subr.mxu0 0.0
  %395 = vmatpush1.msra.mxu0 %v229
  %396 = vmatprep.subr.mxu0 0.0
  %397 = vmatpush1.msra.mxu0 %v230
  %398 = vmatprep.subr.mxu0 0.0
  %399 = vmatpush1.msra.mxu0 %v231
  %400 = vmatprep.subr.mxu0 0.0
  %401 = vmatpush1.msra.mxu0 %v232
  %402 = vmatprep.mubr.f32.mxu0 %v140
  %403 = vmatmul.mubr.f32.gmra.mrb[0].mxu0 %v139
  %v404 = vpop.f32.mrb[0].mxu0
  %v405 = vadd.f32 %v300, %v404
  %v406 = vpop.f32.mrb[0].mxu0
  %407 = vmatprep.mubr.f32.mxu0 %v144
  %408 = vmatmul.mubr.f32.gmra.mrb[0].mxu0 %v143
  %v409 = vpop.f32.mrb[0].mxu0
  %v410 = vadd.f32 %v305, %v409
  %v411 = vpop.f32.mrb[0].mxu0
  %412 = vmatprep.mubr.f32.mxu0 %v148
  %413 = vmatmul.mubr.f32.gmra.mrb[0].mxu0 %v147
  %v414 = vpop.f32.mrb[0].mxu0
  %v415 = vadd.f32 %v310, %v414
  %v416 = vpop.f32.mrb[0].mxu0
  %417 = vmatprep.mubr.f32.mxu0 %v152
  %418 = vmatmul.mubr.f32.gmra.mrb[0].mxu0 %v151
  %v419 = vpop.f32.mrb[0].mxu0
  %v420 = vadd.f32 %v315, %v419
  %v421 = vpop.f32.mrb[0].mxu0
  %422 = vmatprep.mubr.f32.mxu0 %v156
  %423 = vmatmul.mubr.f32.gmra.mrb[0].mxu0 %v155
  %v424 = vpop.f32.mrb[0].mxu0
  %v425 = vadd.f32 %v320, %v424
  %v426 = vpop.f32.mrb[0].mxu0
  %427 = vmatprep.mubr.f32.mxu0 %v160
  %428 = vmatmul.mubr.f32.gmra.mrb[0].mxu0 %v159
  %v429 = vpop.f32.mrb[0].mxu0
  %v430 = vadd.f32 %v325, %v429
  %v431 = vpop.f32.mrb[0].mxu0
  %432 = vmatprep.mubr.f32.mxu0 %v164
  %433 = vmatmul.mubr.f32.gmra.mrb[0].mxu0 %v163
  %v434 = vpop.f32.mrb[0].mxu0
  %v435 = vadd.f32 %v330, %v434
  %v436 = vpop.f32.mrb[0].mxu0
  %437 = vmatprep.mubr.f32.mxu0 %v168
  %438 = vmatmul.mubr.f32.gmra.mrb[0].mxu0 %v167
  %v439 = vpop.f32.mrb[0].mxu0
  %v440 = vadd.f32 %v335, %v439
  %v441 = vpop.f32.mrb[0].mxu0
  %442 = vdwg.mxu0
  %443 = vset.pattern.permute.xlu0 1
  %444 = vperm.xlu0 %443, %v23
  %v445 = vpop.permute.xlu0 %444
  %446 = vset.pattern.permute.xlu0 1
  %447 = vperm.xlu0 %446, %v24
  %v448 = vpop.permute.xlu0 %447
  %449 = vset.pattern.permute.xlu0 1
  %450 = vperm.xlu0 %449, %v25
  %v451 = vpop.permute.xlu0 %450
  %452 = vset.pattern.permute.xlu0 1
  %453 = vperm.xlu0 %452, %v26
  %v454 = vpop.permute.xlu0 %453
  %vm455 = vcmp.eq.s32.totalorder %v45, %v445
  %vm456 = vcmp.eq.s32.totalorder %v45, %v448
  %vm457 = vcmp.eq.s32.totalorder %v45, %v451
  %vm458 = vcmp.eq.s32.totalorder %v45, %v454
  %v459 = vsel %vm455, 1, 0
  %v460 = vsel %vm456, 1, 0
  %v461 = vsel %vm457, 1, 0
  %v462 = vsel %vm458, 1, 0
  %v463 = vcvt.s32.f32 %v459
  %v464 = vcvt.s32.f32 %v460
  %v465 = vcvt.s32.f32 %v461
  %v466 = vcvt.s32.f32 %v462
  %v467 = vadd.s32 %v23, 1
  %v468 = vadd.s32 %v24, 1
  %v469 = vadd.s32 %v25, 1
  %v470 = vadd.s32 %v26, 1
  %vm471 = vcmp.lt.s32.totalorder %v467, 15
  %v472 = vsel %vm471, %v467, 15
  %vm473 = vcmp.lt.s32.totalorder %v468, 15
  %v474 = vsel %vm473, %v468, 15
  %vm475 = vcmp.lt.s32.totalorder %v469, 15
  %v476 = vsel %vm475, %v469, 15
  %vm477 = vcmp.lt.s32.totalorder %v470, 15
  %v478 = vsel %vm477, %v470, 15
  %479 = vset.pattern.permute.xlu0 1
  %480 = vperm.xlu0 %479, %v472
  %v481 = vpop.permute.xlu0 %480
  %482 = vset.pattern.permute.xlu0 1
  %483 = vperm.xlu0 %482, %v474
  %v484 = vpop.permute.xlu0 %483
  %485 = vset.pattern.permute.xlu0 1
  %486 = vperm.xlu0 %485, %v476
  %v487 = vpop.permute.xlu0 %486
  %488 = vset.pattern.permute.xlu0 1
  %489 = vperm.xlu0 %488, %v478
  %v490 = vpop.permute.xlu0 %489
  %vm491 = vcmp.eq.s32.totalorder %v45, %v481
  %vm492 = vcmp.eq.s32.totalorder %v45, %v484
  %vm493 = vcmp.eq.s32.totalorder %v45, %v487
  %vm494 = vcmp.eq.s32.totalorder %v45, %v490
  %v495 = vsel %vm491, 1, 0
  %v496 = vsel %vm492, 1, 0
  %v497 = vsel %vm493, 1, 0
  %v498 = vsel %vm494, 1, 0
  %v499 = vcvt.s32.f32 %v495
  %v500 = vcvt.s32.f32 %v496
  %v501 = vcvt.s32.f32 %v497
  %v502 = vcvt.s32.f32 %v498
  %v503 = vadd.f32 %v463, %v499
  %v504 = vadd.f32 %v464, %v500
  %v505 = vadd.f32 %v465, %v501
  %v506 = vadd.f32 %v466, %v502
  %v507 = vadd.s32 %v23, 2
  %v508 = vadd.s32 %v24, 2
  %v509 = vadd.s32 %v25, 2
  %v510 = vadd.s32 %v26, 2
  %vm511 = vcmp.lt.s32.totalorder %v507, 15
  %v512 = vsel %vm511, %v507, 15
  %vm513 = vcmp.lt.s32.totalorder %v508, 15
  %v514 = vsel %vm513, %v508, 15
  %vm515 = vcmp.lt.s32.totalorder %v509, 15
  %v516 = vsel %vm515, %v509, 15
  %vm517 = vcmp.lt.s32.totalorder %v510, 15
  %v518 = vsel %vm517, %v510, 15
  %519 = vset.pattern.permute.xlu0 1
  %520 = vperm.xlu0 %519, %v512
  %v521 = vpop.permute.xlu0 %520
  %522 = vset.pattern.permute.xlu0 1
  %523 = vperm.xlu0 %522, %v514
  %v524 = vpop.permute.xlu0 %523
  %525 = vset.pattern.permute.xlu0 1
  %526 = vperm.xlu0 %525, %v516
  %v527 = vpop.permute.xlu0 %526
  %528 = vset.pattern.permute.xlu0 1
  %529 = vperm.xlu0 %528, %v518
  %v530 = vpop.permute.xlu0 %529
  %vm531 = vcmp.eq.s32.totalorder %v45, %v521
  %vm532 = vcmp.eq.s32.totalorder %v45, %v524
  %vm533 = vcmp.eq.s32.totalorder %v45, %v527
  %vm534 = vcmp.eq.s32.totalorder %v45, %v530
  %v535 = vsel %vm531, 1, 0
  %v536 = vsel %vm532, 1, 0
  %v537 = vsel %vm533, 1, 0
  %v538 = vsel %vm534, 1, 0
  %v539 = vcvt.s32.f32 %v535
  %v540 = vcvt.s32.f32 %v536
  %v541 = vcvt.s32.f32 %v537
  %v542 = vcvt.s32.f32 %v538
  %v543 = vadd.f32 %v503, %v539
  %v544 = vadd.f32 %v504, %v540
  %v545 = vadd.f32 %v505, %v541
  %v546 = vadd.f32 %v506, %v542
  %v547 = vld [vmem:[%s5] sm:$0xff]
  %v548 = vld [vmem:[%s5 + $0x8] sm:$0xff]
  %551 = vrot.lane.b32.xlu0 %v547, 76
  %v552 = vpop.permute.xlu0 %551
  %553 = vrot.lane.b32.xlu0 %v548, 76
  %v554 = vpop.permute.xlu0 %553
  %vm557 = vcmask 130048
  %v559 = vsel %vm557, %v543, 0
  %v562 = vsel %vm557, %v544, 0
  %v565 = vsel %vm557, %v545, 0
  %v568 = vsel %vm557, %v546, 0
  %570 = vmatprep.subr.mxu0 0.0
  %571 = vmatpush1.msra.mxu0 %v552
  %572 = vmatprep.subr.mxu0 0.0
  %573 = vmatpush1.msra.mxu0 %v554
  %574 = vmatprep.subr.mxu0 0.0
  %575 = vmatpush1.msra.mxu0 0.0
  %576 = vmatprep.subr.mxu0 0.0
  %577 = vmatpush1.msra.mxu0 0.0
  %578 = vmatprep.subr.mxu0 0.0
  %579 = vmatpush1.msra.mxu0 0.0
  %580 = vmatprep.subr.mxu0 0.0
  %581 = vmatpush1.msra.mxu0 0.0
  %582 = vmatprep.subr.mxu0 0.0
  %583 = vmatpush1.msra.mxu0 0.0
  %584 = vmatprep.subr.mxu0 0.0
  %585 = vmatpush1.msra.mxu0 0.0
  %586 = vmatprep.subr.mxu0 0.0
  %587 = vmatpush1.msra.mxu0 0.0
  %588 = vmatprep.subr.mxu0 0.0
  %589 = vmatpush1.msra.mxu0 0.0
  %590 = vmatprep.subr.mxu0 0.0
  %591 = vmatpush1.msra.mxu0 0.0
  %592 = vmatprep.subr.mxu0 0.0
  %593 = vmatpush1.msra.mxu0 0.0
  %594 = vmatprep.subr.mxu0 0.0
  %595 = vmatpush1.msra.mxu0 0.0
  %596 = vmatprep.subr.mxu0 0.0
  %597 = vmatpush1.msra.mxu0 0.0
  %598 = vmatprep.subr.mxu0 0.0
  %599 = vmatpush1.msra.mxu0 0.0
  %600 = vmatprep.subr.mxu0 0.0
  %601 = vmatpush1.msra.mxu0 0.0
  %602 = vmatprep.subr.mxu0 0.0
  %603 = vmatpush1.msra.mxu0 0.0
  %604 = vmatprep.subr.mxu0 0.0
  %605 = vmatpush1.msra.mxu0 0.0
  %606 = vmatprep.subr.mxu0 0.0
  %607 = vmatpush1.msra.mxu0 0.0
  %608 = vmatprep.subr.mxu0 0.0
  %609 = vmatpush1.msra.mxu0 0.0
  %610 = vmatprep.subr.mxu0 0.0
  %611 = vmatpush1.msra.mxu0 0.0
  %612 = vmatprep.subr.mxu0 0.0
  %613 = vmatpush1.msra.mxu0 0.0
  %614 = vmatprep.subr.mxu0 0.0
  %615 = vmatpush1.msra.mxu0 0.0
  %616 = vmatprep.subr.mxu0 0.0
  %617 = vmatpush1.msra.mxu0 0.0
  %618 = vmatprep.subr.mxu0 0.0
  %619 = vmatpush1.msra.mxu0 0.0
  %620 = vmatprep.subr.mxu0 0.0
  %621 = vmatpush1.msra.mxu0 0.0
  %622 = vmatprep.subr.mxu0 0.0
  %623 = vmatpush1.msra.mxu0 0.0
  %624 = vmatprep.subr.mxu0 0.0
  %625 = vmatpush1.msra.mxu0 0.0
  %626 = vmatprep.subr.mxu0 0.0
  %627 = vmatpush1.msra.mxu0 0.0
  %628 = vmatprep.subr.mxu0 0.0
  %629 = vmatpush1.msra.mxu0 0.0
  %630 = vmatprep.subr.mxu0 0.0
  %631 = vmatpush1.msra.mxu0 0.0
  %632 = vmatprep.subr.mxu0 0.0
  %633 = vmatpush1.msra.mxu0 0.0
  %634 = vmatprep.mubr.f32.mxu0 0.0
  %635 = vmatmul.mubr.f32.gmra.mrb[0].mxu0 %v559
  %v636 = vpop.f32.mrb[0].mxu0
  %v637 = vadd.f32 0.0, %v636
  %v638 = vpop.f32.mrb[0].mxu0
  %639 = vmatprep.mubr.f32.mxu0 0.0
  %640 = vmatmul.mubr.f32.gmra.mrb[0].mxu0 %v562
  %v641 = vpop.f32.mrb[0].mxu0
  %v642 = vadd.f32 0.0, %v641
  %v643 = vpop.f32.mrb[0].mxu0
  %644 = vmatprep.mubr.f32.mxu0 0.0
  %645 = vmatmul.mubr.f32.gmra.mrb[0].mxu0 %v565
  %v646 = vpop.f32.mrb[0].mxu0
  %v647 = vadd.f32 0.0, %v646
  %v648 = vpop.f32.mrb[0].mxu0
  %649 = vmatprep.mubr.f32.mxu0 0.0
  %650 = vmatmul.mubr.f32.gmra.mrb[0].mxu0 %v568
  %v651 = vpop.f32.mrb[0].mxu0
  %v652 = vadd.f32 0.0, %v651
  %v653 = vpop.f32.mrb[0].mxu0
  %654 = vdwg.mxu0
  %v655 = vlaneseq
  %v656 = vshrl.u32 %v655, 7
  %v657 = vadd.s32 %v656, 8
  %v658 = vadd.s32 %v656, 16
  %v659 = vadd.s32 %v656, 24
  %v660 = vand.u32 %v656, 7
  %v661 = vand.u32 %v657, 7
  %v662 = vand.u32 %v658, 7
  %v663 = vand.u32 %v659, 7
  %vm664 = vcmp.eq.s32.totalorder %v45, %v660
  %vm665 = vcmp.eq.s32.totalorder %v45, %v661
  %vm666 = vcmp.eq.s32.totalorder %v45, %v662
  %vm667 = vcmp.eq.s32.totalorder %v45, %v663
  %v668 = vsel %vm664, 1, 0
  %v669 = vsel %vm665, 1, 0
  %v670 = vsel %vm666, 1, 0
  %v671 = vsel %vm667, 1, 0
  %v672 = vcvt.s32.f32 %v668
  %v673 = vcvt.s32.f32 %v669
  %v674 = vcvt.s32.f32 %v670
  %v675 = vcvt.s32.f32 %v671
  %v676 = vld [vmem:[%s1] sm:$0xff]
  %v677 = vld [vmem:[%s1 + $0x8] sm:$0xff]
  %v678 = vld [vmem:[%s1 + $0x10] sm:$0xff]
  %v679 = vld [vmem:[%s1 + $0x18] sm:$0xff]
  %684 = vrot.lane.b32.xlu0 %v676, 32
  %v685 = vpop.permute.xlu0 %684
  %686 = vrot.lane.b32.xlu0 %v677, 32
  %v687 = vpop.permute.xlu0 %686
  %688 = vrot.lane.b32.xlu0 %v678, 32
  %v689 = vpop.permute.xlu0 %688
  %690 = vrot.lane.b32.xlu0 %v679, 32
  %v691 = vpop.permute.xlu0 %690
  %700 = vrot.lane.b32.xlu0 %v637, 35
  %v701 = vpop.permute.xlu0 %700
  %702 = vrot.lane.b32.xlu0 %v642, 35
  %v703 = vpop.permute.xlu0 %702
  %704 = vrot.lane.b32.xlu0 %v647, 35
  %v705 = vpop.permute.xlu0 %704
  %706 = vrot.lane.b32.xlu0 %v652, 35
  %v707 = vpop.permute.xlu0 %706
  %716 = vrot.lane.b32.xlu0 %v672, 43
  %v717 = vpop.permute.xlu0 %716
  %718 = vrot.lane.b32.xlu0 %v673, 43
  %v719 = vpop.permute.xlu0 %718
  %720 = vrot.lane.b32.xlu0 %v674, 43
  %v721 = vpop.permute.xlu0 %720
  %722 = vrot.lane.b32.xlu0 %v675, 43
  %v723 = vpop.permute.xlu0 %722
  %vm728 = vcmask 261120
  %v729 = vsel %vm728, %v405, %v685
  %v730 = vsel %vm728, %v410, %v687
  %v731 = vsel %vm728, %v415, %v689
  %v732 = vsel %vm728, %v420, %v691
  %vm733 = vcmask 285696
  %v734 = vsel %vm733, %v729, %v701
  %v735 = vsel %vm733, %v730, %v703
  %v736 = vsel %vm733, %v731, %v705
  %v737 = vsel %vm733, %v732, %v707
  %vm738 = vcmask 351232
  %v739 = vsel %vm738, %v734, %v717
  %v740 = vsel %vm738, %v735, %v719
  %v741 = vsel %vm738, %v736, %v721
  %v742 = vsel %vm738, %v737, %v723
  %744 = vset.pattern.permute.xlu0 0
  %745 = vperm.xlu0 %744, %v36
  %v746 = vpop.permute.xlu0 %745
  %749 = vset.pattern.permute.xlu0 0
  %750 = vperm.xlu0 %749, %v37
  %v751 = vpop.permute.xlu0 %750
  %754 = vset.pattern.permute.xlu0 0
  %755 = vperm.xlu0 %754, %v38
  %v756 = vpop.permute.xlu0 %755
  %759 = vset.pattern.permute.xlu0 0
  %760 = vperm.xlu0 %759, %v39
  %v761 = vpop.permute.xlu0 %760
  %v763 = vmul.f32 %v739, %v746
  %v764 = vmul.f32 %v740, %v751
  %v765 = vmul.f32 %v741, %v756
  %v766 = vmul.f32 %v742, %v761
  %vm767 = vcmask 416768
  %v768 = vsel %vm767, %v763, 0.0
  %v769 = vsel %vm767, %v764, 0.0
  %v770 = vadd.f32 %v768, %v769
  %v771 = vsel %vm767, %v765, 0.0
  %v772 = vadd.f32 %v770, %v771
  %v773 = vsel %vm767, %v766, 0.0
  %v774 = vadd.f32 %v772, %v773
  %v775 = vrot.slane %v774, 4
  %v776 = vadd.f32 %v774, %v775
  %v777 = vrot.slane %v776, 2
  %v778 = vadd.f32 %v776, %v777
  %v779 = vrot.slane %v778, 1
  %v780 = vadd.f32 %v778, %v779
  %v781 = vrcp.pop 32.0
  %v782 = vmul.f32 %v780, %v781
  %v783 = vsub.f32 %v763, %v782
  %v784 = vsub.f32 %v764, %v782
  %v785 = vsub.f32 %v765, %v782
  %v786 = vsub.f32 %v766, %v782
  %v787 = vmul.f32 %v783, %v783
  %v788 = vmul.f32 %v784, %v784
  %v789 = vmul.f32 %v785, %v785
  %v790 = vmul.f32 %v786, %v786
  %v791 = vsel %vm767, %v787, 0.0
  %v792 = vsel %vm767, %v788, 0.0
  %v793 = vadd.f32 %v791, %v792
  %v794 = vsel %vm767, %v789, 0.0
  %v795 = vadd.f32 %v793, %v794
  %v796 = vsel %vm767, %v790, 0.0
  %v797 = vadd.f32 %v795, %v796
  %v798 = vrot.slane %v797, 4
  %v799 = vadd.f32 %v797, %v798
  %v800 = vrot.slane %v799, 2
  %v801 = vadd.f32 %v799, %v800
  %v802 = vrot.slane %v801, 1
  %v803 = vadd.f32 %v801, %v802
  %v804 = vmul.f32 %v803, %v781
  %v805 = vadd.f32 %v804, 1e-05
  %v806 = vrsqrt.pop %v805
  %v807 = vmul.f32 %v783, %v806
  %v808 = vmul.f32 %v784, %v806
  %v809 = vmul.f32 %v785, %v806
  %v810 = vmul.f32 %v786, %v806
  %v811 = vld [vmem:[%s5] sm:$0x1]
  %v812 = vlaneseq
  %v813 = vshrl.u32 %v812, 7
  %v814 = vsub.s32 0, %v813
  %v815 = vrot.slane %v811, %v814
  %v816 = vmul.f32 %v807, %v815
  %v817 = vmul.f32 %v808, %v815
  %v818 = vmul.f32 %v809, %v815
  %v819 = vmul.f32 %v810, %v815
  %v820 = vld [vmem:[%s5 + $0x1] sm:$0x1]
  %v821 = vlaneseq
  %v822 = vshrl.u32 %v821, 7
  %v823 = vsub.s32 0, %v822
  %v824 = vrot.slane %v820, %v823
  %v825 = vadd.f32 %v816, %v824
  %v826 = vadd.f32 %v817, %v824
  %v827 = vadd.f32 %v818, %v824
  %v828 = vadd.f32 %v819, %v824
  %v829 = vld [vmem:[%s4] sm:$0xff]
  %v830 = vld [vmem:[%s4 + $0x8] sm:$0xff]
  %v831 = vld [vmem:[%s4 + $0x10] sm:$0xff]
  %v832 = vld [vmem:[%s4 + $0x18] sm:$0xff]
  %v833 = vld [vmem:[%s4 + $0x20] sm:$0xff]
  %v834 = vld [vmem:[%s4 + $0x28] sm:$0xff]
  %v835 = vld [vmem:[%s4 + $0x30] sm:$0x7]
  %v836 = vld [vmem:[%s5 + $0x2] sm:$0x1]
  %v837 = vlaneseq
  %v838 = vshrl.u32 %v837, 7
  %v839 = vsub.s32 0, %v838
  %v840 = vrot.slane %v836, %v839
  %v842 = vsel %vm767, %v825, 0
  %v845 = vsel %vm767, %v826, 0
  %v848 = vsel %vm767, %v827, 0
  %v851 = vsel %vm767, %v828, 0
  %vm853 = vcmask 1042432
  %v855 = vsel %vm853, %v835, 0
  %857 = vmatprep.subr.mxu0 0.0
  %858 = vmatpush1.msra.mxu0 %v829
  %859 = vmatprep.subr.mxu0 0.0
  %860 = vmatpush1.msra.mxu0 %v830
  %861 = vmatprep.subr.mxu0 0.0
  %862 = vmatpush1.msra.mxu0 %v831
  %863 = vmatprep.subr.mxu0 0.0
  %864 = vmatpush1.msra.mxu0 %v832
  %865 = vmatprep.subr.mxu0 0.0
  %866 = vmatpush1.msra.mxu0 %v833
  %867 = vmatprep.subr.mxu0 0.0
  %868 = vmatpush1.msra.mxu0 %v834
  %869 = vmatprep.subr.mxu0 0.0
  %870 = vmatpush1.msra.mxu0 %v855
  %871 = vmatprep.subr.mxu0 0.0
  %872 = vmatpush1.msra.mxu0 0.0
  %873 = vmatprep.subr.mxu0 0.0
  %874 = vmatpush1.msra.mxu0 0.0
  %875 = vmatprep.subr.mxu0 0.0
  %876 = vmatpush1.msra.mxu0 0.0
  %877 = vmatprep.subr.mxu0 0.0
  %878 = vmatpush1.msra.mxu0 0.0
  %879 = vmatprep.subr.mxu0 0.0
  %880 = vmatpush1.msra.mxu0 0.0
  %881 = vmatprep.subr.mxu0 0.0
  %882 = vmatpush1.msra.mxu0 0.0
  %883 = vmatprep.subr.mxu0 0.0
  %884 = vmatpush1.msra.mxu0 0.0
  %885 = vmatprep.subr.mxu0 0.0
  %886 = vmatpush1.msra.mxu0 0.0
  %887 = vmatprep.subr.mxu0 0.0
  %888 = vmatpush1.msra.mxu0 0.0
  %889 = vmatprep.subr.mxu0 0.0
  %890 = vmatpush1.msra.mxu0 0.0
  %891 = vmatprep.subr.mxu0 0.0
  %892 = vmatpush1.msra.mxu0 0.0
  %893 = vmatprep.subr.mxu0 0.0
  %894 = vmatpush1.msra.mxu0 0.0
  %895 = vmatprep.subr.mxu0 0.0
  %896 = vmatpush1.msra.mxu0 0.0
  %897 = vmatprep.subr.mxu0 0.0
  %898 = vmatpush1.msra.mxu0 0.0
  %899 = vmatprep.subr.mxu0 0.0
  %900 = vmatpush1.msra.mxu0 0.0
  %901 = vmatprep.subr.mxu0 0.0
  %902 = vmatpush1.msra.mxu0 0.0
  %903 = vmatprep.subr.mxu0 0.0
  %904 = vmatpush1.msra.mxu0 0.0
  %905 = vmatprep.subr.mxu0 0.0
  %906 = vmatpush1.msra.mxu0 0.0
  %907 = vmatprep.subr.mxu0 0.0
  %908 = vmatpush1.msra.mxu0 0.0
  %909 = vmatprep.subr.mxu0 0.0
  %910 = vmatpush1.msra.mxu0 0.0
  %911 = vmatprep.subr.mxu0 0.0
  %912 = vmatpush1.msra.mxu0 0.0
  %913 = vmatprep.subr.mxu0 0.0
  %914 = vmatpush1.msra.mxu0 0.0
  %915 = vmatprep.subr.mxu0 0.0
  %916 = vmatpush1.msra.mxu0 0.0
  %917 = vmatprep.subr.mxu0 0.0
  %918 = vmatpush1.msra.mxu0 0.0
  %919 = vmatprep.subr.mxu0 0.0
  %920 = vmatpush1.msra.mxu0 0.0
  %921 = vmatprep.mubr.f32.mxu0 0.0
  %922 = vmatmul.mubr.f32.gmra.mrb[0].mxu0 %v842
  %v923 = vpop.f32.mrb[0].mxu0
  %v924 = vadd.f32 %v840, %v923
  %v925 = vpop.f32.mrb[0].mxu0
  %926 = vmatprep.mubr.f32.mxu0 0.0
  %927 = vmatmul.mubr.f32.gmra.mrb[0].mxu0 %v845
  %v928 = vpop.f32.mrb[0].mxu0
  %v929 = vadd.f32 %v840, %v928
  %v930 = vpop.f32.mrb[0].mxu0
  %931 = vmatprep.mubr.f32.mxu0 0.0
  %932 = vmatmul.mubr.f32.gmra.mrb[0].mxu0 %v848
  %v933 = vpop.f32.mrb[0].mxu0
  %v934 = vadd.f32 %v840, %v933
  %v935 = vpop.f32.mrb[0].mxu0
  %936 = vmatprep.mubr.f32.mxu0 0.0
  %937 = vmatmul.mubr.f32.gmra.mrb[0].mxu0 %v851
  %v938 = vpop.f32.mrb[0].mxu0
  %v939 = vadd.f32 %v840, %v938
  %v940 = vpop.f32.mrb[0].mxu0
  %941 = vdwg.mxu0
  %v942 = vmul.f32 %v924, %v924
  %v943 = vmul.f32 %v929, %v929
  %v944 = vmul.f32 %v934, %v934
  %v945 = vmul.f32 %v939, %v939
  %v946 = vmul.f32 %v924, %v942
  %v947 = vmul.f32 %v929, %v943
  %v948 = vmul.f32 %v934, %v944
  %v949 = vmul.f32 %v939, %v945
  %v950 = vmul.f32 %v946, 0.044715
  %v951 = vmul.f32 %v947, 0.044715
  %v952 = vmul.f32 %v948, 0.044715
  %v953 = vmul.f32 %v949, 0.044715
  %v954 = vadd.f32 %v924, %v950
  %v955 = vadd.f32 %v929, %v951
  %v956 = vadd.f32 %v934, %v952
  %v957 = vadd.f32 %v939, %v953
  %v958 = vmul.f32 %v954, 0.7978846
  %v959 = vmul.f32 %v955, 0.7978846
  %v960 = vmul.f32 %v956, 0.7978846
  %v961 = vmul.f32 %v957, 0.7978846
  %v962 = vtanh.pop %v958
  %v963 = vtanh.pop %v959
  %v964 = vtanh.pop %v960
  %v965 = vtanh.pop %v961
  %v966 = vadd.f32 %v962, 1.0
  %v967 = vadd.f32 %v963, 1.0
  %v968 = vadd.f32 %v964, 1.0
  %v969 = vadd.f32 %v965, 1.0
  %v970 = vmul.f32 %v966, 0.5
  %v971 = vmul.f32 %v967, 0.5
  %v972 = vmul.f32 %v968, 0.5
  %v973 = vmul.f32 %v969, 0.5
  %v974 = vmul.f32 %v924, %v970
  %v975 = vmul.f32 %v929, %v971
  %v976 = vmul.f32 %v934, %v972
  %v977 = vmul.f32 %v939, %v973
  %v978 = vld [vmem:[%s4 + $0x38] sm:$0xff]
  %v979 = vld [vmem:[%s4 + $0x40] sm:$0xff]
  %v980 = vld [vmem:[%s4 + $0x48] sm:$0xff]
  %v981 = vld [vmem:[%s4 + $0x50] sm:$0xff]
  %v982 = vld [vmem:[%s5 + $0x3] sm:$0x1]
  %v983 = vlaneseq
  %v984 = vshrl.u32 %v983, 7
  %v985 = vsub.s32 0, %v984
  %v986 = vrot.slane %v982, %v985
  %v988 = vsel %vm728, %v974, 0
  %v991 = vsel %vm728, %v975, 0
  %v994 = vsel %vm728, %v976, 0
  %v997 = vsel %vm728, %v977, 0
  %999 = vmatprep.subr.mxu0 0.0
  %1000 = vmatpush1.msra.mxu0 %v978
  %1001 = vmatprep.subr.mxu0 0.0
  %1002 = vmatpush1.msra.mxu0 %v979
  %1003 = vmatprep.subr.mxu0 0.0
  %1004 = vmatpush1.msra.mxu0 %v980
  %1005 = vmatprep.subr.mxu0 0.0
  %1006 = vmatpush1.msra.mxu0 %v981
  %1007 = vmatprep.subr.mxu0 0.0
  %1008 = vmatpush1.msra.mxu0 0.0
  %1009 = vmatprep.subr.mxu0 0.0
  %1010 = vmatpush1.msra.mxu0 0.0
  %1011 = vmatprep.subr.mxu0 0.0
  %1012 = vmatpush1.msra.mxu0 0.0
  %1013 = vmatprep.subr.mxu0 0.0
  %1014 = vmatpush1.msra.mxu0 0.0
  %1015 = vmatprep.subr.mxu0 0.0
  %1016 = vmatpush1.msra.mxu0 0.0
  %1017 = vmatprep.subr.mxu0 0.0
  %1018 = vmatpush1.msra.mxu0 0.0
  %1019 = vmatprep.subr.mxu0 0.0
  %1020 = vmatpush1.msra.mxu0 0.0
  %1021 = vmatprep.subr.mxu0 0.0
  %1022 = vmatpush1.msra.mxu0 0.0
  %1023 = vmatprep.subr.mxu0 0.0
  %1024 = vmatpush1.msra.mxu0 0.0
  %1025 = vmatprep.subr.mxu0 0.0
  %1026 = vmatpush1.msra.mxu0 0.0
  %1027 = vmatprep.subr.mxu0 0.0
  %1028 = vmatpush1.msra.mxu0 0.0
  %1029 = vmatprep.subr.mxu0 0.0
  %1030 = vmatpush1.msra.mxu0 0.0
  %1031 = vmatprep.subr.mxu0 0.0
  %1032 = vmatpush1.msra.mxu0 0.0
  %1033 = vmatprep.subr.mxu0 0.0
  %1034 = vmatpush1.msra.mxu0 0.0
  %1035 = vmatprep.subr.mxu0 0.0
  %1036 = vmatpush1.msra.mxu0 0.0
  %1037 = vmatprep.subr.mxu0 0.0
  %1038 = vmatpush1.msra.mxu0 0.0
  %1039 = vmatprep.subr.mxu0 0.0
  %1040 = vmatpush1.msra.mxu0 0.0
  %1041 = vmatprep.subr.mxu0 0.0
  %1042 = vmatpush1.msra.mxu0 0.0
  %1043 = vmatprep.subr.mxu0 0.0
  %1044 = vmatpush1.msra.mxu0 0.0
  %1045 = vmatprep.subr.mxu0 0.0
  %1046 = vmatpush1.msra.mxu0 0.0
  %1047 = vmatprep.subr.mxu0 0.0
  %1048 = vmatpush1.msra.mxu0 0.0
  %1049 = vmatprep.subr.mxu0 0.0
  %1050 = vmatpush1.msra.mxu0 0.0
  %1051 = vmatprep.subr.mxu0 0.0
  %1052 = vmatpush1.msra.mxu0 0.0
  %1053 = vmatprep.subr.mxu0 0.0
  %1054 = vmatpush1.msra.mxu0 0.0
  %1055 = vmatprep.subr.mxu0 0.0
  %1056 = vmatpush1.msra.mxu0 0.0
  %1057 = vmatprep.subr.mxu0 0.0
  %1058 = vmatpush1.msra.mxu0 0.0
  %1059 = vmatprep.subr.mxu0 0.0
  %1060 = vmatpush1.msra.mxu0 0.0
  %1061 = vmatprep.subr.mxu0 0.0
  %1062 = vmatpush1.msra.mxu0 0.0
  %1063 = vmatprep.mubr.f32.mxu0 0.0
  %1064 = vmatmul.mubr.f32.gmra.mrb[0].mxu0 %v988
  %v1065 = vpop.f32.mrb[0].mxu0
  %v1066 = vadd.f32 %v986, %v1065
  %v1067 = vpop.f32.mrb[0].mxu0
  %1068 = vmatprep.mubr.f32.mxu0 0.0
  %1069 = vmatmul.mubr.f32.gmra.mrb[0].mxu0 %v991
  %v1070 = vpop.f32.mrb[0].mxu0
  %v1071 = vadd.f32 %v986, %v1070
  %v1072 = vpop.f32.mrb[0].mxu0
  %1073 = vmatprep.mubr.f32.mxu0 0.0
  %1074 = vmatmul.mubr.f32.gmra.mrb[0].mxu0 %v994
  %v1075 = vpop.f32.mrb[0].mxu0
  %v1076 = vadd.f32 %v986, %v1075
  %v1077 = vpop.f32.mrb[0].mxu0
  %1078 = vmatprep.mubr.f32.mxu0 0.0
  %1079 = vmatmul.mubr.f32.gmra.mrb[0].mxu0 %v997
  %v1080 = vpop.f32.mrb[0].mxu0
  %v1081 = vadd.f32 %v986, %v1080
  %v1082 = vpop.f32.mrb[0].mxu0
  %1083 = vdwg.mxu0
  %v1084 = vmul.f32 %v1066, %v746
  %v1085 = vmul.f32 %v1071, %v751
  %v1086 = vmul.f32 %v1076, %v756
  %v1087 = vmul.f32 %v1081, %v761
  %v1088 = vsel %vm728, %v1084, 0.0
  %1089 = vadd.xlane.f32.xlu0 %v1088
  %v1090 = vpop.xlane.xlu0 %1089
  %v1091 = vsel %vm728, %v1085, 0.0
  %1092 = vadd.xlane.f32.xlu0 %v1091
  %v1093 = vpop.xlane.xlu0 %1092
  %v1094 = vsel %vm728, %v1086, 0.0
  %1095 = vadd.xlane.f32.xlu0 %v1094
  %v1096 = vpop.xlane.xlu0 %1095
  %v1097 = vsel %vm728, %v1087, 0.0
  %1098 = vadd.xlane.f32.xlu0 %v1097
  %v1099 = vpop.xlane.xlu0 %1098
  %v1100 = vmul.f32 %v1090, %v781
  %v1101 = vmul.f32 %v1093, %v781
  %v1102 = vmul.f32 %v1096, %v781
  %v1103 = vmul.f32 %v1099, %v781
  %v1104 = vsub.f32 %v1084, %v1100
  %v1105 = vsub.f32 %v1085, %v1101
  %v1106 = vsub.f32 %v1086, %v1102
  %v1107 = vsub.f32 %v1087, %v1103
  %v1108 = vmul.f32 %v1104, %v1104
  %v1109 = vmul.f32 %v1105, %v1105
  %v1110 = vmul.f32 %v1106, %v1106
  %v1111 = vmul.f32 %v1107, %v1107
  %v1112 = vsel %vm728, %v1108, 0.0
  %1113 = vadd.xlane.f32.xlu0 %v1112
  %v1114 = vpop.xlane.xlu0 %1113
  %v1115 = vsel %vm728, %v1109, 0.0
  %1116 = vadd.xlane.f32.xlu0 %v1115
  %v1117 = vpop.xlane.xlu0 %1116
  %v1118 = vsel %vm728, %v1110, 0.0
  %1119 = vadd.xlane.f32.xlu0 %v1118
  %v1120 = vpop.xlane.xlu0 %1119
  %v1121 = vsel %vm728, %v1111, 0.0
  %1122 = vadd.xlane.f32.xlu0 %v1121
  %v1123 = vpop.xlane.xlu0 %1122
  %v1124 = vmul.f32 %v1114, %v781
  %v1125 = vmul.f32 %v1117, %v781
  %v1126 = vmul.f32 %v1120, %v781
  %v1127 = vmul.f32 %v1123, %v781
  %v1128 = vadd.f32 %v1124, 1e-05
  %v1129 = vadd.f32 %v1125, 1e-05
  %v1130 = vadd.f32 %v1126, 1e-05
  %v1131 = vadd.f32 %v1127, 1e-05
  %v1132 = vrsqrt.pop %v1128
  %v1133 = vrsqrt.pop %v1129
  %v1134 = vrsqrt.pop %v1130
  %v1135 = vrsqrt.pop %v1131
  %v1136 = vmul.f32 %v1104, %v1132
  %v1137 = vmul.f32 %v1105, %v1133
  %v1138 = vmul.f32 %v1106, %v1134
  %v1139 = vmul.f32 %v1107, %v1135
  %v1140 = vld [vmem:[%s5 + $0x4] sm:$0x1]
  %v1141 = vlaneseq
  %v1142 = vshrl.u32 %v1141, 7
  %v1143 = vsub.s32 0, %v1142
  %v1144 = vrot.slane %v1140, %v1143
  %v1145 = vmul.f32 %v1136, %v1144
  %v1146 = vmul.f32 %v1137, %v1144
  %v1147 = vmul.f32 %v1138, %v1144
  %v1148 = vmul.f32 %v1139, %v1144
  %v1149 = vld [vmem:[%s5 + $0x7] sm:$0x1]
  %v1150 = vlaneseq
  %v1151 = vshrl.u32 %v1150, 7
  %v1152 = vsub.s32 0, %v1151
  %v1153 = vrot.slane %v1149, %v1152
  %v1154 = vadd.f32 %v1145, %v1153
  %v1155 = vadd.f32 %v1146, %v1153
  %v1156 = vadd.f32 %v1147, %v1153
  %v1157 = vadd.f32 %v1148, %v1153
  %v1158 = vld [vmem:[%s4 + $0x58] sm:$0xff]
  %v1159 = vld [vmem:[%s4 + $0x60] sm:$0xff]
  %v1160 = vld [vmem:[%s4 + $0x68] sm:$0xff]
  %v1161 = vld [vmem:[%s4 + $0x70] sm:$0xff]
  %v1162 = vld [vmem:[%s4 + $0x78] sm:$0xff]
  %v1163 = vld [vmem:[%s4 + $0x80] sm:$0xff]
  %v1164 = vld [vmem:[%s4 + $0x88] sm:$0xff]
  %v1165 = vld [vmem:[%s4 + $0x90] sm:$0xff]
  %v1166 = vld [vmem:[%s5 + $0xa] sm:$0x1]
  %v1167 = vlaneseq
  %v1168 = vshrl.u32 %v1167, 7
  %v1169 = vsub.s32 0, %v1168
  %v1170 = vrot.slane %v1166, %v1169
  %v1172 = vsel %vm728, %v1154, 0
  %v1175 = vsel %vm728, %v1155, 0
  %v1178 = vsel %vm728, %v1156, 0
  %v1181 = vsel %vm728, %v1157, 0
  %1183 = vmatprep.subr.mxu0 0.0
  %1184 = vmatpush1.msra.mxu0 %v1158
  %1185 = vmatprep.subr.mxu0 0.0
  %1186 = vmatpush1.msra.mxu0 %v1159
  %1187 = vmatprep.subr.mxu0 0.0
  %1188 = vmatpush1.msra.mxu0 %v1160
  %1189 = vmatprep.subr.mxu0 0.0
  %1190 = vmatpush1.msra.mxu0 %v1161
  %1191 = vmatprep.subr.mxu0 0.0
  %1192 = vmatpush1.msra.mxu0 0.0
  %1193 = vmatprep.subr.mxu0 0.0
  %1194 = vmatpush1.msra.mxu0 0.0
  %1195 = vmatprep.subr.mxu0 0.0
  %1196 = vmatpush1.msra.mxu0 0.0
  %1197 = vmatprep.subr.mxu0 0.0
  %1198 = vmatpush1.msra.mxu0 0.0
  %1199 = vmatprep.subr.mxu0 0.0
  %1200 = vmatpush1.msra.mxu0 0.0
  %1201 = vmatprep.subr.mxu0 0.0
  %1202 = vmatpush1.msra.mxu0 0.0
  %1203 = vmatprep.subr.mxu0 0.0
  %1204 = vmatpush1.msra.mxu0 0.0
  %1205 = vmatprep.subr.mxu0 0.0
  %1206 = vmatpush1.msra.mxu0 0.0
  %1207 = vmatprep.subr.mxu0 0.0
  %1208 = vmatpush1.msra.mxu0 0.0
  %1209 = vmatprep.subr.mxu0 0.0
  %1210 = vmatpush1.msra.mxu0 0.0
  %1211 = vmatprep.subr.mxu0 0.0
  %1212 = vmatpush1.msra.mxu0 0.0
  %1213 = vmatprep.subr.mxu0 0.0
  %1214 = vmatpush1.msra.mxu0 0.0
  %1215 = vmatprep.subr.mxu0 0.0
  %1216 = vmatpush1.msra.mxu0 0.0
  %1217 = vmatprep.subr.mxu0 0.0
  %1218 = vmatpush1.msra.mxu0 0.0
  %1219 = vmatprep.subr.mxu0 0.0
  %1220 = vmatpush1.msra.mxu0 0.0
  %1221 = vmatprep.subr.mxu0 0.0
  %1222 = vmatpush1.msra.mxu0 0.0
  %1223 = vmatprep.subr.mxu0 0.0
  %1224 = vmatpush1.msra.mxu0 0.0
  %1225 = vmatprep.subr.mxu0 0.0
  %1226 = vmatpush1.msra.mxu0 0.0
  %1227 = vmatprep.subr.mxu0 0.0
  %1228 = vmatpush1.msra.mxu0 0.0
  %1229 = vmatprep.subr.mxu0 0.0
  %1230 = vmatpush1.msra.mxu0 0.0
  %1231 = vmatprep.subr.mxu0 0.0
  %1232 = vmatpush1.msra.mxu0 0.0
  %1233 = vmatprep.subr.mxu0 0.0
  %1234 = vmatpush1.msra.mxu0 0.0
  %1235 = vmatprep.subr.mxu0 0.0
  %1236 = vmatpush1.msra.mxu0 0.0
  %1237 = vmatprep.subr.mxu0 0.0
  %1238 = vmatpush1.msra.mxu0 0.0
  %1239 = vmatprep.subr.mxu0 0.0
  %1240 = vmatpush1.msra.mxu0 0.0
  %1241 = vmatprep.subr.mxu0 0.0
  %1242 = vmatpush1.msra.mxu0 0.0
  %1243 = vmatprep.subr.mxu0 0.0
  %1244 = vmatpush1.msra.mxu0 0.0
  %1245 = vmatprep.subr.mxu0 0.0
  %1246 = vmatpush1.msra.mxu0 0.0
  %1247 = vmatprep.mubr.f32.mxu0 0.0
  %1248 = vmatmul.mubr.f32.gmra.mrb[0].mxu0 %v1172
  %v1249 = vpop.f32.mrb[0].mxu0
  %v1250 = vadd.f32 %v1170, %v1249
  %v1251 = vpop.f32.mrb[0].mxu0
  %1252 = vmatprep.mubr.f32.mxu0 0.0
  %1253 = vmatmul.mubr.f32.gmra.mrb[0].mxu0 %v1175
  %v1254 = vpop.f32.mrb[0].mxu0
  %v1255 = vadd.f32 %v1170, %v1254
  %v1256 = vpop.f32.mrb[0].mxu0
  %1257 = vmatprep.mubr.f32.mxu0 0.0
  %1258 = vmatmul.mubr.f32.gmra.mrb[0].mxu0 %v1178
  %v1259 = vpop.f32.mrb[0].mxu0
  %v1260 = vadd.f32 %v1170, %v1259
  %v1261 = vpop.f32.mrb[0].mxu0
  %1262 = vmatprep.mubr.f32.mxu0 0.0
  %1263 = vmatmul.mubr.f32.gmra.mrb[0].mxu0 %v1181
  %v1264 = vpop.f32.mrb[0].mxu0
  %v1265 = vadd.f32 %v1170, %v1264
  %v1266 = vpop.f32.mrb[0].mxu0
  %1267 = vdwg.mxu0
  %v1268 = vmul.f32 %v1250, %v1250
  %v1269 = vmul.f32 %v1255, %v1255
  %v1270 = vmul.f32 %v1260, %v1260
  %v1271 = vmul.f32 %v1265, %v1265
  %v1272 = vmul.f32 %v1250, %v1268
  %v1273 = vmul.f32 %v1255, %v1269
  %v1274 = vmul.f32 %v1260, %v1270
  %v1275 = vmul.f32 %v1265, %v1271
  %v1276 = vmul.f32 %v1272, 0.044715
  %v1277 = vmul.f32 %v1273, 0.044715
  %v1278 = vmul.f32 %v1274, 0.044715
  %v1279 = vmul.f32 %v1275, 0.044715
  %v1280 = vadd.f32 %v1250, %v1276
  %v1281 = vadd.f32 %v1255, %v1277
  %v1282 = vadd.f32 %v1260, %v1278
  %v1283 = vadd.f32 %v1265, %v1279
  %v1284 = vmul.f32 %v1280, 0.7978846
  %v1285 = vmul.f32 %v1281, 0.7978846
  %v1286 = vmul.f32 %v1282, 0.7978846
  %v1287 = vmul.f32 %v1283, 0.7978846
  %v1288 = vtanh.pop %v1284
  %v1289 = vtanh.pop %v1285
  %v1290 = vtanh.pop %v1286
  %v1291 = vtanh.pop %v1287
  %v1292 = vadd.f32 %v1288, 1.0
  %v1293 = vadd.f32 %v1289, 1.0
  %v1294 = vadd.f32 %v1290, 1.0
  %v1295 = vadd.f32 %v1291, 1.0
  %v1296 = vmul.f32 %v1292, 0.5
  %v1297 = vmul.f32 %v1293, 0.5
  %v1298 = vmul.f32 %v1294, 0.5
  %v1299 = vmul.f32 %v1295, 0.5
  %v1300 = vmul.f32 %v1250, %v1296
  %v1301 = vmul.f32 %v1255, %v1297
  %v1302 = vmul.f32 %v1260, %v1298
  %v1303 = vmul.f32 %v1265, %v1299
  %v1304 = vld [vmem:[%s5 + $0xd] sm:$0x1]
  %v1305 = vlaneseq
  %v1306 = vshrl.u32 %v1305, 7
  %v1307 = vsub.s32 0, %v1306
  %v1308 = vrot.slane %v1304, %v1307
  %v1310 = vsel %vm728, %v1300, 0
  %v1313 = vsel %vm728, %v1301, 0
  %v1316 = vsel %vm728, %v1302, 0
  %v1319 = vsel %vm728, %v1303, 0
  %1321 = vmatprep.subr.mxu0 0.0
  %1322 = vmatpush1.msra.mxu0 %v1162
  %1323 = vmatprep.subr.mxu0 0.0
  %1324 = vmatpush1.msra.mxu0 %v1163
  %1325 = vmatprep.subr.mxu0 0.0
  %1326 = vmatpush1.msra.mxu0 %v1164
  %1327 = vmatprep.subr.mxu0 0.0
  %1328 = vmatpush1.msra.mxu0 %v1165
  %1329 = vmatprep.subr.mxu0 0.0
  %1330 = vmatpush1.msra.mxu0 0.0
  %1331 = vmatprep.subr.mxu0 0.0
  %1332 = vmatpush1.msra.mxu0 0.0
  %1333 = vmatprep.subr.mxu0 0.0
  %1334 = vmatpush1.msra.mxu0 0.0
  %1335 = vmatprep.subr.mxu0 0.0
  %1336 = vmatpush1.msra.mxu0 0.0
  %1337 = vmatprep.subr.mxu0 0.0
  %1338 = vmatpush1.msra.mxu0 0.0
  %1339 = vmatprep.subr.mxu0 0.0
  %1340 = vmatpush1.msra.mxu0 0.0
  %1341 = vmatprep.subr.mxu0 0.0
  %1342 = vmatpush1.msra.mxu0 0.0
  %1343 = vmatprep.subr.mxu0 0.0
  %1344 = vmatpush1.msra.mxu0 0.0
  %1345 = vmatprep.subr.mxu0 0.0
  %1346 = vmatpush1.msra.mxu0 0.0
  %1347 = vmatprep.subr.mxu0 0.0
  %1348 = vmatpush1.msra.mxu0 0.0
  %1349 = vmatprep.subr.mxu0 0.0
  %1350 = vmatpush1.msra.mxu0 0.0
  %1351 = vmatprep.subr.mxu0 0.0
  %1352 = vmatpush1.msra.mxu0 0.0
  %1353 = vmatprep.subr.mxu0 0.0
  %1354 = vmatpush1.msra.mxu0 0.0
  %1355 = vmatprep.subr.mxu0 0.0
  %1356 = vmatpush1.msra.mxu0 0.0
  %1357 = vmatprep.subr.mxu0 0.0
  %1358 = vmatpush1.msra.mxu0 0.0
  %1359 = vmatprep.subr.mxu0 0.0
  %1360 = vmatpush1.msra.mxu0 0.0
  %1361 = vmatprep.subr.mxu0 0.0
  %1362 = vmatpush1.msra.mxu0 0.0
  %1363 = vmatprep.subr.mxu0 0.0
  %1364 = vmatpush1.msra.mxu0 0.0
  %1365 = vmatprep.subr.mxu0 0.0
  %1366 = vmatpush1.msra.mxu0 0.0
  %1367 = vmatprep.subr.mxu0 0.0
  %1368 = vmatpush1.msra.mxu0 0.0
  %1369 = vmatprep.subr.mxu0 0.0
  %1370 = vmatpush1.msra.mxu0 0.0
  %1371 = vmatprep.subr.mxu0 0.0
  %1372 = vmatpush1.msra.mxu0 0.0
  %1373 = vmatprep.subr.mxu0 0.0
  %1374 = vmatpush1.msra.mxu0 0.0
  %1375 = vmatprep.subr.mxu0 0.0
  %1376 = vmatpush1.msra.mxu0 0.0
  %1377 = vmatprep.subr.mxu0 0.0
  %1378 = vmatpush1.msra.mxu0 0.0
  %1379 = vmatprep.subr.mxu0 0.0
  %1380 = vmatpush1.msra.mxu0 0.0
  %1381 = vmatprep.subr.mxu0 0.0
  %1382 = vmatpush1.msra.mxu0 0.0
  %1383 = vmatprep.subr.mxu0 0.0
  %1384 = vmatpush1.msra.mxu0 0.0
  %1385 = vmatprep.mubr.f32.mxu0 0.0
  %1386 = vmatmul.mubr.f32.gmra.mrb[0].mxu0 %v1310
  %v1387 = vpop.f32.mrb[0].mxu0
  %v1388 = vadd.f32 %v1308, %v1387
  %v1389 = vpop.f32.mrb[0].mxu0
  %1390 = vmatprep.mubr.f32.mxu0 0.0
  %1391 = vmatmul.mubr.f32.gmra.mrb[0].mxu0 %v1313
  %v1392 = vpop.f32.mrb[0].mxu0
  %v1393 = vadd.f32 %v1308, %v1392
  %v1394 = vpop.f32.mrb[0].mxu0
  %1395 = vmatprep.mubr.f32.mxu0 0.0
  %1396 = vmatmul.mubr.f32.gmra.mrb[0].mxu0 %v1316
  %v1397 = vpop.f32.mrb[0].mxu0
  %v1398 = vadd.f32 %v1308, %v1397
  %v1399 = vpop.f32.mrb[0].mxu0
  %1400 = vmatprep.mubr.f32.mxu0 0.0
  %1401 = vmatmul.mubr.f32.gmra.mrb[0].mxu0 %v1319
  %v1402 = vpop.f32.mrb[0].mxu0
  %v1403 = vadd.f32 %v1308, %v1402
  %v1404 = vpop.f32.mrb[0].mxu0
  %1405 = vdwg.mxu0
  %v1406 = vadd.f32 %v1154, %v1388
  %v1407 = vadd.f32 %v1155, %v1393
  %v1408 = vadd.f32 %v1156, %v1398
  %v1409 = vadd.f32 %v1157, %v1403
  %v1410 = vsel %vm728, %v1406, 0.0
  %1411 = vadd.xlane.f32.xlu0 %v1410
  %v1412 = vpop.xlane.xlu0 %1411
  %v1413 = vsel %vm728, %v1407, 0.0
  %1414 = vadd.xlane.f32.xlu0 %v1413
  %v1415 = vpop.xlane.xlu0 %1414
  %v1416 = vsel %vm728, %v1408, 0.0
  %1417 = vadd.xlane.f32.xlu0 %v1416
  %v1418 = vpop.xlane.xlu0 %1417
  %v1419 = vsel %vm728, %v1409, 0.0
  %1420 = vadd.xlane.f32.xlu0 %v1419
  %v1421 = vpop.xlane.xlu0 %1420
  %v1422 = vmul.f32 %v1412, %v781
  %v1423 = vmul.f32 %v1415, %v781
  %v1424 = vmul.f32 %v1418, %v781
  %v1425 = vmul.f32 %v1421, %v781
  %v1426 = vsub.f32 %v1406, %v1422
  %v1427 = vsub.f32 %v1407, %v1423
  %v1428 = vsub.f32 %v1408, %v1424
  %v1429 = vsub.f32 %v1409, %v1425
  %v1430 = vmul.f32 %v1426, %v1426
  %v1431 = vmul.f32 %v1427, %v1427
  %v1432 = vmul.f32 %v1428, %v1428
  %v1433 = vmul.f32 %v1429, %v1429
  %v1434 = vsel %vm728, %v1430, 0.0
  %1435 = vadd.xlane.f32.xlu0 %v1434
  %v1436 = vpop.xlane.xlu0 %1435
  %v1437 = vsel %vm728, %v1431, 0.0
  %1438 = vadd.xlane.f32.xlu0 %v1437
  %v1439 = vpop.xlane.xlu0 %1438
  %v1440 = vsel %vm728, %v1432, 0.0
  %1441 = vadd.xlane.f32.xlu0 %v1440
  %v1442 = vpop.xlane.xlu0 %1441
  %v1443 = vsel %vm728, %v1433, 0.0
  %1444 = vadd.xlane.f32.xlu0 %v1443
  %v1445 = vpop.xlane.xlu0 %1444
  %v1446 = vmul.f32 %v1436, %v781
  %v1447 = vmul.f32 %v1439, %v781
  %v1448 = vmul.f32 %v1442, %v781
  %v1449 = vmul.f32 %v1445, %v781
  %v1450 = vadd.f32 %v1446, 1e-05
  %v1451 = vadd.f32 %v1447, 1e-05
  %v1452 = vadd.f32 %v1448, 1e-05
  %v1453 = vadd.f32 %v1449, 1e-05
  %v1454 = vrsqrt.pop %v1450
  %v1455 = vrsqrt.pop %v1451
  %v1456 = vrsqrt.pop %v1452
  %v1457 = vrsqrt.pop %v1453
  %v1458 = vmul.f32 %v1426, %v1454
  %v1459 = vmul.f32 %v1427, %v1455
  %v1460 = vmul.f32 %v1428, %v1456
  %v1461 = vmul.f32 %v1429, %v1457
  %v1462 = vld [vmem:[%s5 + $0x5] sm:$0x1]
  %v1463 = vlaneseq
  %v1464 = vshrl.u32 %v1463, 7
  %v1465 = vsub.s32 0, %v1464
  %v1466 = vrot.slane %v1462, %v1465
  %v1467 = vmul.f32 %v1458, %v1466
  %v1468 = vmul.f32 %v1459, %v1466
  %v1469 = vmul.f32 %v1460, %v1466
  %v1470 = vmul.f32 %v1461, %v1466
  %v1471 = vld [vmem:[%s5 + $0x8] sm:$0x1]
  %v1472 = vlaneseq
  %v1473 = vshrl.u32 %v1472, 7
  %v1474 = vsub.s32 0, %v1473
  %v1475 = vrot.slane %v1471, %v1474
  %v1476 = vadd.f32 %v1467, %v1475
  %v1477 = vadd.f32 %v1468, %v1475
  %v1478 = vadd.f32 %v1469, %v1475
  %v1479 = vadd.f32 %v1470, %v1475
  %v1480 = vld [vmem:[%s4 + $0x98] sm:$0xff]
  %v1481 = vld [vmem:[%s4 + $0xa0] sm:$0xff]
  %v1482 = vld [vmem:[%s4 + $0xa8] sm:$0xff]
  %v1483 = vld [vmem:[%s4 + $0xb0] sm:$0xff]
  %v1484 = vld [vmem:[%s4 + $0xb8] sm:$0xff]
  %v1485 = vld [vmem:[%s4 + $0xc0] sm:$0xff]
  %v1486 = vld [vmem:[%s4 + $0xc8] sm:$0xff]
  %v1487 = vld [vmem:[%s4 + $0xd0] sm:$0xff]
  %v1488 = vld [vmem:[%s5 + $0xb] sm:$0x1]
  %v1489 = vlaneseq
  %v1490 = vshrl.u32 %v1489, 7
  %v1491 = vsub.s32 0, %v1490
  %v1492 = vrot.slane %v1488, %v1491
  %v1494 = vsel %vm728, %v1476, 0
  %v1497 = vsel %vm728, %v1477, 0
  %v1500 = vsel %vm728, %v1478, 0
  %v1503 = vsel %vm728, %v1479, 0
  %1505 = vmatprep.subr.mxu0 0.0
  %1506 = vmatpush1.msra.mxu0 %v1480
  %1507 = vmatprep.subr.mxu0 0.0
  %1508 = vmatpush1.msra.mxu0 %v1481
  %1509 = vmatprep.subr.mxu0 0.0
  %1510 = vmatpush1.msra.mxu0 %v1482
  %1511 = vmatprep.subr.mxu0 0.0
  %1512 = vmatpush1.msra.mxu0 %v1483
  %1513 = vmatprep.subr.mxu0 0.0
  %1514 = vmatpush1.msra.mxu0 0.0
  %1515 = vmatprep.subr.mxu0 0.0
  %1516 = vmatpush1.msra.mxu0 0.0
  %1517 = vmatprep.subr.mxu0 0.0
  %1518 = vmatpush1.msra.mxu0 0.0
  %1519 = vmatprep.subr.mxu0 0.0
  %1520 = vmatpush1.msra.mxu0 0.0
  %1521 = vmatprep.subr.mxu0 0.0
  %1522 = vmatpush1.msra.mxu0 0.0
  %1523 = vmatprep.subr.mxu0 0.0
  %1524 = vmatpush1.msra.mxu0 0.0
  %1525 = vmatprep.subr.mxu0 0.0
  %1526 = vmatpush1.msra.mxu0 0.0
  %1527 = vmatprep.subr.mxu0 0.0
  %1528 = vmatpush1.msra.mxu0 0.0
  %1529 = vmatprep.subr.mxu0 0.0
  %1530 = vmatpush1.msra.mxu0 0.0
  %1531 = vmatprep.subr.mxu0 0.0
  %1532 = vmatpush1.msra.mxu0 0.0
  %1533 = vmatprep.subr.mxu0 0.0
  %1534 = vmatpush1.msra.mxu0 0.0
  %1535 = vmatprep.subr.mxu0 0.0
  %1536 = vmatpush1.msra.mxu0 0.0
  %1537 = vmatprep.subr.mxu0 0.0
  %1538 = vmatpush1.msra.mxu0 0.0
  %1539 = vmatprep.subr.mxu0 0.0
  %1540 = vmatpush1.msra.mxu0 0.0
  %1541 = vmatprep.subr.mxu0 0.0
  %1542 = vmatpush1.msra.mxu0 0.0
  %1543 = vmatprep.subr.mxu0 0.0
  %1544 = vmatpush1.msra.mxu0 0.0
  %1545 = vmatprep.subr.mxu0 0.0
  %1546 = vmatpush1.msra.mxu0 0.0
  %1547 = vmatprep.subr.mxu0 0.0
  %1548 = vmatpush1.msra.mxu0 0.0
  %1549 = vmatprep.subr.mxu0 0.0
  %1550 = vmatpush1.msra.mxu0 0.0
  %1551 = vmatprep.subr.mxu0 0.0
  %1552 = vmatpush1.msra.mxu0 0.0
  %1553 = vmatprep.subr.mxu0 0.0
  %1554 = vmatpush1.msra.mxu0 0.0
  %1555 = vmatprep.subr.mxu0 0.0
  %1556 = vmatpush1.msra.mxu0 0.0
  %1557 = vmatprep.subr.mxu0 0.0
  %1558 = vmatpush1.msra.mxu0 0.0
  %1559 = vmatprep.subr.mxu0 0.0
  %1560 = vmatpush1.msra.mxu0 0.0
  %1561 = vmatprep.subr.mxu0 0.0
  %1562 = vmatpush1.msra.mxu0 0.0
  %1563 = vmatprep.subr.mxu0 0.0
  %1564 = vmatpush1.msra.mxu0 0.0
  %1565 = vmatprep.subr.mxu0 0.0
  %1566 = vmatpush1.msra.mxu0 0.0
  %1567 = vmatprep.subr.mxu0 0.0
  %1568 = vmatpush1.msra.mxu0 0.0
  %1569 = vmatprep.mubr.f32.mxu0 0.0
  %1570 = vmatmul.mubr.f32.gmra.mrb[0].mxu0 %v1494
  %v1571 = vpop.f32.mrb[0].mxu0
  %v1572 = vadd.f32 %v1492, %v1571
  %v1573 = vpop.f32.mrb[0].mxu0
  %1574 = vmatprep.mubr.f32.mxu0 0.0
  %1575 = vmatmul.mubr.f32.gmra.mrb[0].mxu0 %v1497
  %v1576 = vpop.f32.mrb[0].mxu0
  %v1577 = vadd.f32 %v1492, %v1576
  %v1578 = vpop.f32.mrb[0].mxu0
  %1579 = vmatprep.mubr.f32.mxu0 0.0
  %1580 = vmatmul.mubr.f32.gmra.mrb[0].mxu0 %v1500
  %v1581 = vpop.f32.mrb[0].mxu0
  %v1582 = vadd.f32 %v1492, %v1581
  %v1583 = vpop.f32.mrb[0].mxu0
  %1584 = vmatprep.mubr.f32.mxu0 0.0
  %1585 = vmatmul.mubr.f32.gmra.mrb[0].mxu0 %v1503
  %v1586 = vpop.f32.mrb[0].mxu0
  %v1587 = vadd.f32 %v1492, %v1586
  %v1588 = vpop.f32.mrb[0].mxu0
  %1589 = vdwg.mxu0
  %v1590 = vmul.f32 %v1572, %v1572
  %v1591 = vmul.f32 %v1577, %v1577
  %v1592 = vmul.f32 %v1582, %v1582
  %v1593 = vmul.f32 %v1587, %v1587
  %v1594 = vmul.f32 %v1572, %v1590
  %v1595 = vmul.f32 %v1577, %v1591
  %v1596 = vmul.f32 %v1582, %v1592
  %v1597 = vmul.f32 %v1587, %v1593
  %v1598 = vmul.f32 %v1594, 0.044715
  %v1599 = vmul.f32 %v1595, 0.044715
  %v1600 = vmul.f32 %v1596, 0.044715
  %v1601 = vmul.f32 %v1597, 0.044715
  %v1602 = vadd.f32 %v1572, %v1598
  %v1603 = vadd.f32 %v1577, %v1599
  %v1604 = vadd.f32 %v1582, %v1600
  %v1605 = vadd.f32 %v1587, %v1601
  %v1606 = vmul.f32 %v1602, 0.7978846
  %v1607 = vmul.f32 %v1603, 0.7978846
  %v1608 = vmul.f32 %v1604, 0.7978846
  %v1609 = vmul.f32 %v1605, 0.7978846
  %v1610 = vtanh.pop %v1606
  %v1611 = vtanh.pop %v1607
  %v1612 = vtanh.pop %v1608
  %v1613 = vtanh.pop %v1609
  %v1614 = vadd.f32 %v1610, 1.0
  %v1615 = vadd.f32 %v1611, 1.0
  %v1616 = vadd.f32 %v1612, 1.0
  %v1617 = vadd.f32 %v1613, 1.0
  %v1618 = vmul.f32 %v1614, 0.5
  %v1619 = vmul.f32 %v1615, 0.5
  %v1620 = vmul.f32 %v1616, 0.5
  %v1621 = vmul.f32 %v1617, 0.5
  %v1622 = vmul.f32 %v1572, %v1618
  %v1623 = vmul.f32 %v1577, %v1619
  %v1624 = vmul.f32 %v1582, %v1620
  %v1625 = vmul.f32 %v1587, %v1621
  %v1626 = vld [vmem:[%s5 + $0xe] sm:$0x1]
  %v1627 = vlaneseq
  %v1628 = vshrl.u32 %v1627, 7
  %v1629 = vsub.s32 0, %v1628
  %v1630 = vrot.slane %v1626, %v1629
  %v1632 = vsel %vm728, %v1622, 0
  %v1635 = vsel %vm728, %v1623, 0
  %v1638 = vsel %vm728, %v1624, 0
  %v1641 = vsel %vm728, %v1625, 0
  %1643 = vmatprep.subr.mxu0 0.0
  %1644 = vmatpush1.msra.mxu0 %v1484
  %1645 = vmatprep.subr.mxu0 0.0
  %1646 = vmatpush1.msra.mxu0 %v1485
  %1647 = vmatprep.subr.mxu0 0.0
  %1648 = vmatpush1.msra.mxu0 %v1486
  %1649 = vmatprep.subr.mxu0 0.0
  %1650 = vmatpush1.msra.mxu0 %v1487
  %1651 = vmatprep.subr.mxu0 0.0
  %1652 = vmatpush1.msra.mxu0 0.0
  %1653 = vmatprep.subr.mxu0 0.0
  %1654 = vmatpush1.msra.mxu0 0.0
  %1655 = vmatprep.subr.mxu0 0.0
  %1656 = vmatpush1.msra.mxu0 0.0
  %1657 = vmatprep.subr.mxu0 0.0
  %1658 = vmatpush1.msra.mxu0 0.0
  %1659 = vmatprep.subr.mxu0 0.0
  %1660 = vmatpush1.msra.mxu0 0.0
  %1661 = vmatprep.subr.mxu0 0.0
  %1662 = vmatpush1.msra.mxu0 0.0
  %1663 = vmatprep.subr.mxu0 0.0
  %1664 = vmatpush1.msra.mxu0 0.0
  %1665 = vmatprep.subr.mxu0 0.0
  %1666 = vmatpush1.msra.mxu0 0.0
  %1667 = vmatprep.subr.mxu0 0.0
  %1668 = vmatpush1.msra.mxu0 0.0
  %1669 = vmatprep.subr.mxu0 0.0
  %1670 = vmatpush1.msra.mxu0 0.0
  %1671 = vmatprep.subr.mxu0 0.0
  %1672 = vmatpush1.msra.mxu0 0.0
  %1673 = vmatprep.subr.mxu0 0.0
  %1674 = vmatpush1.msra.mxu0 0.0
  %1675 = vmatprep.subr.mxu0 0.0
  %1676 = vmatpush1.msra.mxu0 0.0
  %1677 = vmatprep.subr.mxu0 0.0
  %1678 = vmatpush1.msra.mxu0 0.0
  %1679 = vmatprep.subr.mxu0 0.0
  %1680 = vmatpush1.msra.mxu0 0.0
  %1681 = vmatprep.subr.mxu0 0.0
  %1682 = vmatpush1.msra.mxu0 0.0
  %1683 = vmatprep.subr.mxu0 0.0
  %1684 = vmatpush1.msra.mxu0 0.0
  %1685 = vmatprep.subr.mxu0 0.0
  %1686 = vmatpush1.msra.mxu0 0.0
  %1687 = vmatprep.subr.mxu0 0.0
  %1688 = vmatpush1.msra.mxu0 0.0
  %1689 = vmatprep.subr.mxu0 0.0
  %1690 = vmatpush1.msra.mxu0 0.0
  %1691 = vmatprep.subr.mxu0 0.0
  %1692 = vmatpush1.msra.mxu0 0.0
  %1693 = vmatprep.subr.mxu0 0.0
  %1694 = vmatpush1.msra.mxu0 0.0
  %1695 = vmatprep.subr.mxu0 0.0
  %1696 = vmatpush1.msra.mxu0 0.0
  %1697 = vmatprep.subr.mxu0 0.0
  %1698 = vmatpush1.msra.mxu0 0.0
  %1699 = vmatprep.subr.mxu0 0.0
  %1700 = vmatpush1.msra.mxu0 0.0
  %1701 = vmatprep.subr.mxu0 0.0
  %1702 = vmatpush1.msra.mxu0 0.0
  %1703 = vmatprep.subr.mxu0 0.0
  %1704 = vmatpush1.msra.mxu0 0.0
  %1705 = vmatprep.subr.mxu0 0.0
  %1706 = vmatpush1.msra.mxu0 0.0
  %1707 = vmatprep.mubr.f32.mxu0 0.0
  %1708 = vmatmul.mubr.f32.gmra.mrb[0].mxu0 %v1632
  %v1709 = vpop.f32.mrb[0].mxu0
  %v1710 = vadd.f32 %v1630, %v1709
  %v1711 = vpop.f32.mrb[0].mxu0
  %1712 = vmatprep.mubr.f32.mxu0 0.0
  %1713 = vmatmul.mubr.f32.gmra.mrb[0].mxu0 %v1635
  %v1714 = vpop.f32.mrb[0].mxu0
  %v1715 = vadd.f32 %v1630, %v1714
  %v1716 = vpop.f32.mrb[0].mxu0
  %1717 = vmatprep.mubr.f32.mxu0 0.0
  %1718 = vmatmul.mubr.f32.gmra.mrb[0].mxu0 %v1638
  %v1719 = vpop.f32.mrb[0].mxu0
  %v1720 = vadd.f32 %v1630, %v1719
  %v1721 = vpop.f32.mrb[0].mxu0
  %1722 = vmatprep.mubr.f32.mxu0 0.0
  %1723 = vmatmul.mubr.f32.gmra.mrb[0].mxu0 %v1641
  %v1724 = vpop.f32.mrb[0].mxu0
  %v1725 = vadd.f32 %v1630, %v1724
  %v1726 = vpop.f32.mrb[0].mxu0
  %1727 = vdwg.mxu0
  %v1728 = vadd.f32 %v1476, %v1710
  %v1729 = vadd.f32 %v1477, %v1715
  %v1730 = vadd.f32 %v1478, %v1720
  %v1731 = vadd.f32 %v1479, %v1725
  %v1732 = vsel %vm728, %v1728, 0.0
  %1733 = vadd.xlane.f32.xlu0 %v1732
  %v1734 = vpop.xlane.xlu0 %1733
  %v1735 = vsel %vm728, %v1729, 0.0
  %1736 = vadd.xlane.f32.xlu0 %v1735
  %v1737 = vpop.xlane.xlu0 %1736
  %v1738 = vsel %vm728, %v1730, 0.0
  %1739 = vadd.xlane.f32.xlu0 %v1738
  %v1740 = vpop.xlane.xlu0 %1739
  %v1741 = vsel %vm728, %v1731, 0.0
  %1742 = vadd.xlane.f32.xlu0 %v1741
  %v1743 = vpop.xlane.xlu0 %1742
  %v1744 = vmul.f32 %v1734, %v781
  %v1745 = vmul.f32 %v1737, %v781
  %v1746 = vmul.f32 %v1740, %v781
  %v1747 = vmul.f32 %v1743, %v781
  %v1748 = vsub.f32 %v1728, %v1744
  %v1749 = vsub.f32 %v1729, %v1745
  %v1750 = vsub.f32 %v1730, %v1746
  %v1751 = vsub.f32 %v1731, %v1747
  %v1752 = vmul.f32 %v1748, %v1748
  %v1753 = vmul.f32 %v1749, %v1749
  %v1754 = vmul.f32 %v1750, %v1750
  %v1755 = vmul.f32 %v1751, %v1751
  %v1756 = vsel %vm728, %v1752, 0.0
  %1757 = vadd.xlane.f32.xlu0 %v1756
  %v1758 = vpop.xlane.xlu0 %1757
  %v1759 = vsel %vm728, %v1753, 0.0
  %1760 = vadd.xlane.f32.xlu0 %v1759
  %v1761 = vpop.xlane.xlu0 %1760
  %v1762 = vsel %vm728, %v1754, 0.0
  %1763 = vadd.xlane.f32.xlu0 %v1762
  %v1764 = vpop.xlane.xlu0 %1763
  %v1765 = vsel %vm728, %v1755, 0.0
  %1766 = vadd.xlane.f32.xlu0 %v1765
  %v1767 = vpop.xlane.xlu0 %1766
  %v1768 = vmul.f32 %v1758, %v781
  %v1769 = vmul.f32 %v1761, %v781
  %v1770 = vmul.f32 %v1764, %v781
  %v1771 = vmul.f32 %v1767, %v781
  %v1772 = vadd.f32 %v1768, 1e-05
  %v1773 = vadd.f32 %v1769, 1e-05
  %v1774 = vadd.f32 %v1770, 1e-05
  %v1775 = vadd.f32 %v1771, 1e-05
  %v1776 = vrsqrt.pop %v1772
  %v1777 = vrsqrt.pop %v1773
  %v1778 = vrsqrt.pop %v1774
  %v1779 = vrsqrt.pop %v1775
  %v1780 = vmul.f32 %v1748, %v1776
  %v1781 = vmul.f32 %v1749, %v1777
  %v1782 = vmul.f32 %v1750, %v1778
  %v1783 = vmul.f32 %v1751, %v1779
  %v1784 = vld [vmem:[%s5 + $0x6] sm:$0x1]
  %v1785 = vlaneseq
  %v1786 = vshrl.u32 %v1785, 7
  %v1787 = vsub.s32 0, %v1786
  %v1788 = vrot.slane %v1784, %v1787
  %v1789 = vmul.f32 %v1780, %v1788
  %v1790 = vmul.f32 %v1781, %v1788
  %v1791 = vmul.f32 %v1782, %v1788
  %v1792 = vmul.f32 %v1783, %v1788
  %v1793 = vld [vmem:[%s5 + $0x9] sm:$0x1]
  %v1794 = vlaneseq
  %v1795 = vshrl.u32 %v1794, 7
  %v1796 = vsub.s32 0, %v1795
  %v1797 = vrot.slane %v1793, %v1796
  %v1798 = vadd.f32 %v1789, %v1797
  %v1799 = vadd.f32 %v1790, %v1797
  %v1800 = vadd.f32 %v1791, %v1797
  %v1801 = vadd.f32 %v1792, %v1797
  %v1802 = vld [vmem:[%s4 + $0xd8] sm:$0xff]
  %v1803 = vld [vmem:[%s4 + $0xe0] sm:$0xff]
  %v1804 = vld [vmem:[%s4 + $0xe8] sm:$0xff]
  %v1805 = vld [vmem:[%s4 + $0xf0] sm:$0xff]
  %v1806 = vld [vmem:[%s4 + $0xf8] sm:$0xff]
  %v1807 = vld [vmem:[%s4 + $0x100] sm:$0xff]
  %v1808 = vld [vmem:[%s4 + $0x108] sm:$0xff]
  %v1809 = vld [vmem:[%s4 + $0x110] sm:$0xff]
  %v1810 = vld [vmem:[%s5 + $0xc] sm:$0x1]
  %v1811 = vlaneseq
  %v1812 = vshrl.u32 %v1811, 7
  %v1813 = vsub.s32 0, %v1812
  %v1814 = vrot.slane %v1810, %v1813
  %v1816 = vsel %vm728, %v1798, 0
  %v1819 = vsel %vm728, %v1799, 0
  %v1822 = vsel %vm728, %v1800, 0
  %v1825 = vsel %vm728, %v1801, 0
  %1827 = vmatprep.subr.mxu0 0.0
  %1828 = vmatpush1.msra.mxu0 %v1802
  %1829 = vmatprep.subr.mxu0 0.0
  %1830 = vmatpush1.msra.mxu0 %v1803
  %1831 = vmatprep.subr.mxu0 0.0
  %1832 = vmatpush1.msra.mxu0 %v1804
  %1833 = vmatprep.subr.mxu0 0.0
  %1834 = vmatpush1.msra.mxu0 %v1805
  %1835 = vmatprep.subr.mxu0 0.0
  %1836 = vmatpush1.msra.mxu0 0.0
  %1837 = vmatprep.subr.mxu0 0.0
  %1838 = vmatpush1.msra.mxu0 0.0
  %1839 = vmatprep.subr.mxu0 0.0
  %1840 = vmatpush1.msra.mxu0 0.0
  %1841 = vmatprep.subr.mxu0 0.0
  %1842 = vmatpush1.msra.mxu0 0.0
  %1843 = vmatprep.subr.mxu0 0.0
  %1844 = vmatpush1.msra.mxu0 0.0
  %1845 = vmatprep.subr.mxu0 0.0
  %1846 = vmatpush1.msra.mxu0 0.0
  %1847 = vmatprep.subr.mxu0 0.0
  %1848 = vmatpush1.msra.mxu0 0.0
  %1849 = vmatprep.subr.mxu0 0.0
  %1850 = vmatpush1.msra.mxu0 0.0
  %1851 = vmatprep.subr.mxu0 0.0
  %1852 = vmatpush1.msra.mxu0 0.0
  %1853 = vmatprep.subr.mxu0 0.0
  %1854 = vmatpush1.msra.mxu0 0.0
  %1855 = vmatprep.subr.mxu0 0.0
  %1856 = vmatpush1.msra.mxu0 0.0
  %1857 = vmatprep.subr.mxu0 0.0
  %1858 = vmatpush1.msra.mxu0 0.0
  %1859 = vmatprep.subr.mxu0 0.0
  %1860 = vmatpush1.msra.mxu0 0.0
  %1861 = vmatprep.subr.mxu0 0.0
  %1862 = vmatpush1.msra.mxu0 0.0
  %1863 = vmatprep.subr.mxu0 0.0
  %1864 = vmatpush1.msra.mxu0 0.0
  %1865 = vmatprep.subr.mxu0 0.0
  %1866 = vmatpush1.msra.mxu0 0.0
  %1867 = vmatprep.subr.mxu0 0.0
  %1868 = vmatpush1.msra.mxu0 0.0
  %1869 = vmatprep.subr.mxu0 0.0
  %1870 = vmatpush1.msra.mxu0 0.0
  %1871 = vmatprep.subr.mxu0 0.0
  %1872 = vmatpush1.msra.mxu0 0.0
  %1873 = vmatprep.subr.mxu0 0.0
  %1874 = vmatpush1.msra.mxu0 0.0
  %1875 = vmatprep.subr.mxu0 0.0
  %1876 = vmatpush1.msra.mxu0 0.0
  %1877 = vmatprep.subr.mxu0 0.0
  %1878 = vmatpush1.msra.mxu0 0.0
  %1879 = vmatprep.subr.mxu0 0.0
  %1880 = vmatpush1.msra.mxu0 0.0
  %1881 = vmatprep.subr.mxu0 0.0
  %1882 = vmatpush1.msra.mxu0 0.0
  %1883 = vmatprep.subr.mxu0 0.0
  %1884 = vmatpush1.msra.mxu0 0.0
  %1885 = vmatprep.subr.mxu0 0.0
  %1886 = vmatpush1.msra.mxu0 0.0
  %1887 = vmatprep.subr.mxu0 0.0
  %1888 = vmatpush1.msra.mxu0 0.0
  %1889 = vmatprep.subr.mxu0 0.0
  %1890 = vmatpush1.msra.mxu0 0.0
  %1891 = vmatprep.mubr.f32.mxu0 0.0
  %1892 = vmatmul.mubr.f32.gmra.mrb[0].mxu0 %v1816
  %v1893 = vpop.f32.mrb[0].mxu0
  %v1894 = vadd.f32 %v1814, %v1893
  %v1895 = vpop.f32.mrb[0].mxu0
  %1896 = vmatprep.mubr.f32.mxu0 0.0
  %1897 = vmatmul.mubr.f32.gmra.mrb[0].mxu0 %v1819
  %v1898 = vpop.f32.mrb[0].mxu0
  %v1899 = vadd.f32 %v1814, %v1898
  %v1900 = vpop.f32.mrb[0].mxu0
  %1901 = vmatprep.mubr.f32.mxu0 0.0
  %1902 = vmatmul.mubr.f32.gmra.mrb[0].mxu0 %v1822
  %v1903 = vpop.f32.mrb[0].mxu0
  %v1904 = vadd.f32 %v1814, %v1903
  %v1905 = vpop.f32.mrb[0].mxu0
  %1906 = vmatprep.mubr.f32.mxu0 0.0
  %1907 = vmatmul.mubr.f32.gmra.mrb[0].mxu0 %v1825
  %v1908 = vpop.f32.mrb[0].mxu0
  %v1909 = vadd.f32 %v1814, %v1908
  %v1910 = vpop.f32.mrb[0].mxu0
  %1911 = vdwg.mxu0
  %v1912 = vmul.f32 %v1894, %v1894
  %v1913 = vmul.f32 %v1899, %v1899
  %v1914 = vmul.f32 %v1904, %v1904
  %v1915 = vmul.f32 %v1909, %v1909
  %v1916 = vmul.f32 %v1894, %v1912
  %v1917 = vmul.f32 %v1899, %v1913
  %v1918 = vmul.f32 %v1904, %v1914
  %v1919 = vmul.f32 %v1909, %v1915
  %v1920 = vmul.f32 %v1916, 0.044715
  %v1921 = vmul.f32 %v1917, 0.044715
  %v1922 = vmul.f32 %v1918, 0.044715
  %v1923 = vmul.f32 %v1919, 0.044715
  %v1924 = vadd.f32 %v1894, %v1920
  %v1925 = vadd.f32 %v1899, %v1921
  %v1926 = vadd.f32 %v1904, %v1922
  %v1927 = vadd.f32 %v1909, %v1923
  %v1928 = vmul.f32 %v1924, 0.7978846
  %v1929 = vmul.f32 %v1925, 0.7978846
  %v1930 = vmul.f32 %v1926, 0.7978846
  %v1931 = vmul.f32 %v1927, 0.7978846
  %v1932 = vtanh.pop %v1928
  %v1933 = vtanh.pop %v1929
  %v1934 = vtanh.pop %v1930
  %v1935 = vtanh.pop %v1931
  %v1936 = vadd.f32 %v1932, 1.0
  %v1937 = vadd.f32 %v1933, 1.0
  %v1938 = vadd.f32 %v1934, 1.0
  %v1939 = vadd.f32 %v1935, 1.0
  %v1940 = vmul.f32 %v1936, 0.5
  %v1941 = vmul.f32 %v1937, 0.5
  %v1942 = vmul.f32 %v1938, 0.5
  %v1943 = vmul.f32 %v1939, 0.5
  %v1944 = vmul.f32 %v1894, %v1940
  %v1945 = vmul.f32 %v1899, %v1941
  %v1946 = vmul.f32 %v1904, %v1942
  %v1947 = vmul.f32 %v1909, %v1943
  %v1948 = vld [vmem:[%s5 + $0xf] sm:$0x1]
  %v1949 = vlaneseq
  %v1950 = vshrl.u32 %v1949, 7
  %v1951 = vsub.s32 0, %v1950
  %v1952 = vrot.slane %v1948, %v1951
  %v1954 = vsel %vm728, %v1944, 0
  %v1957 = vsel %vm728, %v1945, 0
  %v1960 = vsel %vm728, %v1946, 0
  %v1963 = vsel %vm728, %v1947, 0
  %1965 = vmatprep.subr.mxu0 0.0
  %1966 = vmatpush1.msra.mxu0 %v1806
  %1967 = vmatprep.subr.mxu0 0.0
  %1968 = vmatpush1.msra.mxu0 %v1807
  %1969 = vmatprep.subr.mxu0 0.0
  %1970 = vmatpush1.msra.mxu0 %v1808
  %1971 = vmatprep.subr.mxu0 0.0
  %1972 = vmatpush1.msra.mxu0 %v1809
  %1973 = vmatprep.subr.mxu0 0.0
  %1974 = vmatpush1.msra.mxu0 0.0
  %1975 = vmatprep.subr.mxu0 0.0
  %1976 = vmatpush1.msra.mxu0 0.0
  %1977 = vmatprep.subr.mxu0 0.0
  %1978 = vmatpush1.msra.mxu0 0.0
  %1979 = vmatprep.subr.mxu0 0.0
  %1980 = vmatpush1.msra.mxu0 0.0
  %1981 = vmatprep.subr.mxu0 0.0
  %1982 = vmatpush1.msra.mxu0 0.0
  %1983 = vmatprep.subr.mxu0 0.0
  %1984 = vmatpush1.msra.mxu0 0.0
  %1985 = vmatprep.subr.mxu0 0.0
  %1986 = vmatpush1.msra.mxu0 0.0
  %1987 = vmatprep.subr.mxu0 0.0
  %1988 = vmatpush1.msra.mxu0 0.0
  %1989 = vmatprep.subr.mxu0 0.0
  %1990 = vmatpush1.msra.mxu0 0.0
  %1991 = vmatprep.subr.mxu0 0.0
  %1992 = vmatpush1.msra.mxu0 0.0
  %1993 = vmatprep.subr.mxu0 0.0
  %1994 = vmatpush1.msra.mxu0 0.0
  %1995 = vmatprep.subr.mxu0 0.0
  %1996 = vmatpush1.msra.mxu0 0.0
  %1997 = vmatprep.subr.mxu0 0.0
  %1998 = vmatpush1.msra.mxu0 0.0
  %1999 = vmatprep.subr.mxu0 0.0
  %2000 = vmatpush1.msra.mxu0 0.0
  %2001 = vmatprep.subr.mxu0 0.0
  %2002 = vmatpush1.msra.mxu0 0.0
  %2003 = vmatprep.subr.mxu0 0.0
  %2004 = vmatpush1.msra.mxu0 0.0
  %2005 = vmatprep.subr.mxu0 0.0
  %2006 = vmatpush1.msra.mxu0 0.0
  %2007 = vmatprep.subr.mxu0 0.0
  %2008 = vmatpush1.msra.mxu0 0.0
  %2009 = vmatprep.subr.mxu0 0.0
  %2010 = vmatpush1.msra.mxu0 0.0
  %2011 = vmatprep.subr.mxu0 0.0
  %2012 = vmatpush1.msra.mxu0 0.0
  %2013 = vmatprep.subr.mxu0 0.0
  %2014 = vmatpush1.msra.mxu0 0.0
  %2015 = vmatprep.subr.mxu0 0.0
  %2016 = vmatpush1.msra.mxu0 0.0
  %2017 = vmatprep.subr.mxu0 0.0
  %2018 = vmatpush1.msra.mxu0 0.0
  %2019 = vmatprep.subr.mxu0 0.0
  %2020 = vmatpush1.msra.mxu0 0.0
  %2021 = vmatprep.subr.mxu0 0.0
  %2022 = vmatpush1.msra.mxu0 0.0
  %2023 = vmatprep.subr.mxu0 0.0
  %2024 = vmatpush1.msra.mxu0 0.0
  %2025 = vmatprep.subr.mxu0 0.0
  %2026 = vmatpush1.msra.mxu0 0.0
  %2027 = vmatprep.subr.mxu0 0.0
  %2028 = vmatpush1.msra.mxu0 0.0
  %2029 = vmatprep.mubr.f32.mxu0 0.0
  %2030 = vmatmul.mubr.f32.gmra.mrb[0].mxu0 %v1954
  %v2031 = vpop.f32.mrb[0].mxu0
  %v2032 = vadd.f32 %v1952, %v2031
  %v2033 = vpop.f32.mrb[0].mxu0
  %2034 = vmatprep.mubr.f32.mxu0 0.0
  %2035 = vmatmul.mubr.f32.gmra.mrb[0].mxu0 %v1957
  %v2036 = vpop.f32.mrb[0].mxu0
  %v2037 = vadd.f32 %v1952, %v2036
  %v2038 = vpop.f32.mrb[0].mxu0
  %2039 = vmatprep.mubr.f32.mxu0 0.0
  %2040 = vmatmul.mubr.f32.gmra.mrb[0].mxu0 %v1960
  %v2041 = vpop.f32.mrb[0].mxu0
  %v2042 = vadd.f32 %v1952, %v2041
  %v2043 = vpop.f32.mrb[0].mxu0
  %2044 = vmatprep.mubr.f32.mxu0 0.0
  %2045 = vmatmul.mubr.f32.gmra.mrb[0].mxu0 %v1963
  %v2046 = vpop.f32.mrb[0].mxu0
  %v2047 = vadd.f32 %v1952, %v2046
  %v2048 = vpop.f32.mrb[0].mxu0
  %2049 = vdwg.mxu0
  %v2050 = vadd.f32 %v1798, %v2032
  %v2051 = vadd.f32 %v1799, %v2037
  %v2052 = vadd.f32 %v1800, %v2042
  %v2053 = vadd.f32 %v1801, %v2047
  %v2054 = vmul.u32 %v656, 8
  %v2055 = vsub.s32 %v45, %v2054
  %vm2056 = vcmp.ge.s32.totalorder %v2055, 0
  %vm2057 = vcmp.lt.s32.totalorder %v2055, 8
  %vm2058 = vmand %vm2056, %vm2057
  %v2059 = vsel %vm2058, 1, 0
  %v2060 = vcvt.s32.f32 %v2059
  %v2061 = vmul.f32 %v2050, %v746
  %v2062 = vmul.f32 %v2051, %v751
  %v2063 = vmul.f32 %v2052, %v756
  %v2064 = vmul.f32 %v2053, %v761
  %2065 = vrot.lane.b32.xlu0 %v36, 32
  %v2066 = vpop.permute.xlu0 %2065
  %2067 = vrot.lane.b32.xlu0 %v37, 32
  %v2068 = vpop.permute.xlu0 %2067
  %2069 = vrot.lane.b32.xlu0 %v38, 32
  %v2070 = vpop.permute.xlu0 %2069
  %2071 = vrot.lane.b32.xlu0 %v39, 32
  %v2072 = vpop.permute.xlu0 %2071
  %v2077 = vsel %vm728, %v2061, %v2066
  %v2078 = vsel %vm728, %v2062, %v2068
  %v2079 = vsel %vm728, %v2063, %v2070
  %v2080 = vsel %vm728, %v2064, %v2072
  %v2082 = vsel %vm728, %v2060, 0
  %2084 = vmatprep.subr.mxu0 0.0
  %2085 = vmatpush1.msra.mxu0 %v2077
  %2086 = vmatprep.subr.mxu0 0.0
  %2087 = vmatpush1.msra.mxu0 %v2078
  %2088 = vmatprep.subr.mxu0 0.0
  %2089 = vmatpush1.msra.mxu0 %v2079
  %2090 = vmatprep.subr.mxu0 0.0
  %2091 = vmatpush1.msra.mxu0 %v2080
  %2092 = vmatprep.subr.mxu0 0.0
  %2093 = vmatpush1.msra.mxu0 0.0
  %2094 = vmatprep.subr.mxu0 0.0
  %2095 = vmatpush1.msra.mxu0 0.0
  %2096 = vmatprep.subr.mxu0 0.0
  %2097 = vmatpush1.msra.mxu0 0.0
  %2098 = vmatprep.subr.mxu0 0.0
  %2099 = vmatpush1.msra.mxu0 0.0
  %2100 = vmatprep.subr.mxu0 0.0
  %2101 = vmatpush1.msra.mxu0 0.0
  %2102 = vmatprep.subr.mxu0 0.0
  %2103 = vmatpush1.msra.mxu0 0.0
  %2104 = vmatprep.subr.mxu0 0.0
  %2105 = vmatpush1.msra.mxu0 0.0
  %2106 = vmatprep.subr.mxu0 0.0
  %2107 = vmatpush1.msra.mxu0 0.0
  %2108 = vmatprep.subr.mxu0 0.0
  %2109 = vmatpush1.msra.mxu0 0.0
  %2110 = vmatprep.subr.mxu0 0.0
  %2111 = vmatpush1.msra.mxu0 0.0
  %2112 = vmatprep.subr.mxu0 0.0
  %2113 = vmatpush1.msra.mxu0 0.0
  %2114 = vmatprep.subr.mxu0 0.0
  %2115 = vmatpush1.msra.mxu0 0.0
  %2116 = vmatprep.subr.mxu0 0.0
  %2117 = vmatpush1.msra.mxu0 0.0
  %2118 = vmatprep.subr.mxu0 0.0
  %2119 = vmatpush1.msra.mxu0 0.0
  %2120 = vmatprep.subr.mxu0 0.0
  %2121 = vmatpush1.msra.mxu0 0.0
  %2122 = vmatprep.subr.mxu0 0.0
  %2123 = vmatpush1.msra.mxu0 0.0
  %2124 = vmatprep.subr.mxu0 0.0
  %2125 = vmatpush1.msra.mxu0 0.0
  %2126 = vmatprep.subr.mxu0 0.0
  %2127 = vmatpush1.msra.mxu0 0.0
  %2128 = vmatprep.subr.mxu0 0.0
  %2129 = vmatpush1.msra.mxu0 0.0
  %2130 = vmatprep.subr.mxu0 0.0
  %2131 = vmatpush1.msra.mxu0 0.0
  %2132 = vmatprep.subr.mxu0 0.0
  %2133 = vmatpush1.msra.mxu0 0.0
  %2134 = vmatprep.subr.mxu0 0.0
  %2135 = vmatpush1.msra.mxu0 0.0
  %2136 = vmatprep.subr.mxu0 0.0
  %2137 = vmatpush1.msra.mxu0 0.0
  %2138 = vmatprep.subr.mxu0 0.0
  %2139 = vmatpush1.msra.mxu0 0.0
  %2140 = vmatprep.subr.mxu0 0.0
  %2141 = vmatpush1.msra.mxu0 0.0
  %2142 = vmatprep.subr.mxu0 0.0
  %2143 = vmatpush1.msra.mxu0 0.0
  %2144 = vmatprep.subr.mxu0 0.0
  %2145 = vmatpush1.msra.mxu0 0.0
  %2146 = vmatprep.subr.mxu0 0.0
  %2147 = vmatpush1.msra.mxu0 0.0
  %2148 = vmatprep.mubr.f32.mxu0 0.0
  %2149 = vmatmul.mubr.f32.gmra.mrb[0].mxu0 %v2082
  %v2150 = vpop.f32.mrb[0].mxu0
  %v2151 = vadd.f32 0.0, %v2150
  %v2152 = vpop.f32.mrb[0].mxu0
  %2153 = vdwg.mxu0
  %2155 = vset.pattern.permute.xlu0 32
  %2156 = vperm.xlu0 %2155, %v2151
  %v2157 = vpop.permute.xlu0 %2156
  %v2159 = vrcp.pop %v2157
  %v2160 = vmul.f32 %v2151, %v2159
  %vm2161 = vcmp.eq.s32.totalorder %v27, 511
  %v2162 = vsel %vm2161, 1, 0
  %v2163 = vcvt.s32.f32 %v2162
  %v2164 = vcvt.s32.f32 %v27
  %v2165 = vld [vmem:[%s2] sm:$0xf]
  %v2166 = vld [vmem:[%s2 + $0x4] sm:$0xf]
  %v2167 = vld [vmem:[%s2 + $0x8] sm:$0xf]
  %v2168 = vld [vmem:[%s2 + $0xc] sm:$0xf]
  %v2171 = vunpack.c.l.s4 1966171168
  %v2172 = vunpack.c.0.s8 %v2171
  %v2173 = vlaneseq
  %v2174 = vshrl.u32 %v2173, 7
  %v2175 = vsub.s32 %v2172, %v2174
  %v2176 = vrot.slane %v2160, %v2175
  %v2177 = vcombine.high %v2176, %v2176
  %v2179 = vunpack.c.l.s4 1966171168
  %v2180 = vunpack.c.0.s8 %v2179
  %v2181 = vlaneseq
  %v2182 = vshrl.u32 %v2181, 7
  %v2183 = vsub.s32 %v2180, %v2182
  %v2184 = vrot.slane %v2176, %v2183
  %v2186 = vunpack.c.l.s4 1966171168
  %v2187 = vunpack.c.0.s8 %v2186
  %v2188 = vlaneseq
  %v2189 = vshrl.u32 %v2188, 7
  %v2190 = vsub.s32 %v2187, %v2189
  %v2191 = vrot.slane %v2177, %v2190
  %v2192 = vcombine.high %v2184, %v2184
  %v2193 = vcombine.high %v2191, %v2191
  %v2194 = vlaneseq
  %v2195 = vshrl.u32 %v2194, 7
  %v2196 = vsub.s32 0, %v2195
  %v2197 = vrot.slane %v2184, %v2196
  %v2198 = vlaneseq
  %v2199 = vshrl.u32 %v2198, 7
  %v2200 = vsub.s32 0, %v2199
  %v2201 = vrot.slane %v2191, %v2200
  %v2202 = vlaneseq
  %v2203 = vshrl.u32 %v2202, 7
  %v2204 = vsub.s32 0, %v2203
  %v2205 = vrot.slane %v2192, %v2204
  %v2206 = vlaneseq
  %v2207 = vshrl.u32 %v2206, 7
  %v2208 = vsub.s32 0, %v2207
  %v2209 = vrot.slane %v2193, %v2208
  %2218 = vrot.lane.b32.xlu0 %v2165, 96
  %v2219 = vpop.permute.xlu0 %2218
  %2220 = vrot.lane.b32.xlu0 %v2166, 96
  %v2221 = vpop.permute.xlu0 %2220
  %2222 = vrot.lane.b32.xlu0 %v2167, 96
  %v2223 = vpop.permute.xlu0 %2222
  %2224 = vrot.lane.b32.xlu0 %v2168, 96
  %v2225 = vpop.permute.xlu0 %2224
  %v2230 = vadd.f32 %v2197, %v2219
  %v2231 = vadd.f32 %v2201, %v2221
  %v2232 = vadd.f32 %v2205, %v2223
  %v2233 = vadd.f32 %v2209, %v2225
  %v2234 = vmul.f32 %v2230, %v2230
  %v2235 = vmul.f32 %v2231, %v2231
  %v2236 = vmul.f32 %v2232, %v2232
  %v2237 = vmul.f32 %v2233, %v2233
  %vm2238 = vcmask 257024
  %v2239 = vsel %vm2238, %v2234, 0.0
  %2240 = vadd.xlane.f32.xlu0 %v2239
  %v2241 = vpop.xlane.xlu0 %2240
  %v2242 = vsel %vm2238, %v2235, 0.0
  %2243 = vadd.xlane.f32.xlu0 %v2242
  %v2244 = vpop.xlane.xlu0 %2243
  %v2245 = vsel %vm2238, %v2236, 0.0
  %2246 = vadd.xlane.f32.xlu0 %v2245
  %v2247 = vpop.xlane.xlu0 %2246
  %v2248 = vsel %vm2238, %v2237, 0.0
  %2249 = vadd.xlane.f32.xlu0 %v2248
  %v2250 = vpop.xlane.xlu0 %2249
  %v2251 = vrsqrt.pop %v2241
  %v2252 = vrsqrt.pop %v2244
  %v2253 = vrsqrt.pop %v2247
  %v2254 = vrsqrt.pop %v2250
  %v2255 = vmul.f32 %v2230, %v2251
  %v2256 = vmul.f32 %v2231, %v2252
  %v2257 = vmul.f32 %v2232, %v2253
  %v2258 = vmul.f32 %v2233, %v2254
  %v2259 = vmul.f32 %v2165, %v2165
  %v2260 = vmul.f32 %v2166, %v2166
  %v2261 = vmul.f32 %v2167, %v2167
  %v2262 = vmul.f32 %v2168, %v2168
  %v2263 = vsel %vm2238, %v2259, 0.0
  %2264 = vadd.xlane.f32.xlu0 %v2263
  %v2265 = vpop.xlane.xlu0 %2264
  %v2266 = vsel %vm2238, %v2260, 0.0
  %2267 = vadd.xlane.f32.xlu0 %v2266
  %v2268 = vpop.xlane.xlu0 %2267
  %v2269 = vsel %vm2238, %v2261, 0.0
  %2270 = vadd.xlane.f32.xlu0 %v2269
  %v2271 = vpop.xlane.xlu0 %2270
  %v2272 = vsel %vm2238, %v2262, 0.0
  %2273 = vadd.xlane.f32.xlu0 %v2272
  %v2274 = vpop.xlane.xlu0 %2273
  %v2275 = vrsqrt.pop %v2265
  %v2276 = vrsqrt.pop %v2268
  %v2277 = vrsqrt.pop %v2271
  %v2278 = vrsqrt.pop %v2274
  %v2279 = vmul.f32 %v2165, %v2275
  %v2280 = vmul.f32 %v2166, %v2276
  %v2281 = vmul.f32 %v2167, %v2277
  %v2282 = vmul.f32 %v2168, %v2278
  %v2283 = vmul.f32 %v425, %v425
  %v2284 = vmul.f32 %v430, %v430
  %v2285 = vmul.f32 %v435, %v435
  %v2286 = vmul.f32 %v440, %v440
  %v2287 = vsel %vm728, %v2283, 0.0
  %2288 = vadd.xlane.f32.xlu0 %v2287
  %v2289 = vpop.xlane.xlu0 %2288
  %v2290 = vsel %vm728, %v2284, 0.0
  %2291 = vadd.xlane.f32.xlu0 %v2290
  %v2292 = vpop.xlane.xlu0 %2291
  %v2293 = vsel %vm728, %v2285, 0.0
  %2294 = vadd.xlane.f32.xlu0 %v2293
  %v2295 = vpop.xlane.xlu0 %2294
  %v2296 = vsel %vm728, %v2286, 0.0
  %2297 = vadd.xlane.f32.xlu0 %v2296
  %v2298 = vpop.xlane.xlu0 %2297
  %v2299 = vrsqrt.pop %v2289
  %v2300 = vrsqrt.pop %v2292
  %v2301 = vrsqrt.pop %v2295
  %v2302 = vrsqrt.pop %v2298
  %v2303 = vmul.f32 %v425, %v2299
  %v2304 = vmul.f32 %v430, %v2300
  %v2305 = vmul.f32 %v435, %v2301
  %v2306 = vmul.f32 %v440, %v2302
  %v2307 = vmul.f32 %v2255, %v2279
  %v2308 = vmul.f32 %v2256, %v2280
  %v2309 = vmul.f32 %v2257, %v2281
  %v2310 = vmul.f32 %v2258, %v2282
  %v2311 = vsel %vm2238, %v2307, 0.0
  %2312 = vadd.xlane.f32.xlu0 %v2311
  %v2313 = vpop.xlane.xlu0 %2312
  %v2314 = vsel %vm2238, %v2308, 0.0
  %2315 = vadd.xlane.f32.xlu0 %v2314
  %v2316 = vpop.xlane.xlu0 %2315
  %v2317 = vsel %vm2238, %v2309, 0.0
  %2318 = vadd.xlane.f32.xlu0 %v2317
  %v2319 = vpop.xlane.xlu0 %2318
  %v2320 = vsel %vm2238, %v2310, 0.0
  %2321 = vadd.xlane.f32.xlu0 %v2320
  %v2322 = vpop.xlane.xlu0 %2321
  %v2324 = vlaneseq
  %v2325 = vshrl.u32 %v2324, 7
  %v2326 = vsub.s32 0, %v2325
  %v2327 = vrot.slane %v2163, %v2326
  %s2329 = sor.u32 256, 2
  %2330 = vbcast.lane.b32.xlu0 %v2327, %s2329
  %v2331 = vpop.permute.xlu0 %2330
  %v2332 = vlaneseq
  %v2333 = vshrl.u32 %v2332, 7
  %v2334 = vsub.s32 1, %v2333
  %v2335 = vrot.slane %v2163, %v2334
  %s2337 = sor.u32 256, 2
  %2338 = vbcast.lane.b32.xlu0 %v2335, %s2337
  %v2339 = vpop.permute.xlu0 %2338
  %v2340 = vlaneseq
  %v2341 = vshrl.u32 %v2340, 7
  %v2342 = vsub.s32 2, %v2341
  %v2343 = vrot.slane %v2163, %v2342
  %s2345 = sor.u32 256, 2
  %2346 = vbcast.lane.b32.xlu0 %v2343, %s2345
  %v2347 = vpop.permute.xlu0 %2346
  %v2348 = vlaneseq
  %v2349 = vshrl.u32 %v2348, 7
  %v2350 = vsub.s32 3, %v2349
  %v2351 = vrot.slane %v2163, %v2350
  %s2353 = sor.u32 256, 2
  %2354 = vbcast.lane.b32.xlu0 %v2351, %s2353
  %v2355 = vpop.permute.xlu0 %2354
  %v2360 = vadd.f32 %v2313, %v2331
  %v2361 = vadd.f32 %v2316, %v2339
  %v2362 = vadd.f32 %v2319, %v2347
  %v2363 = vadd.f32 %v2322, %v2355
  %2368 = vset.pattern.permute.xlu0 0
  %2369 = vperm.xlu0 %2368, %v2360
  %v2370 = vpop.permute.xlu0 %2369
  %2371 = vset.pattern.permute.xlu0 0
  %2372 = vperm.xlu0 %2371, %v2361
  %v2373 = vpop.permute.xlu0 %2372
  %2374 = vset.pattern.permute.xlu0 0
  %2375 = vperm.xlu0 %2374, %v2362
  %v2376 = vpop.permute.xlu0 %2375
  %2377 = vset.pattern.permute.xlu0 0
  %2378 = vperm.xlu0 %2377, %v2363
  %v2379 = vpop.permute.xlu0 %2378
  %v2380 = vlaneseq
  %v2381 = vshrl.u32 %v2380, 7
  %v2382 = vsub.s32 %v45, %v2381
  %v2383 = vrot.slane %v2370, %v2382
  %v2384 = vlaneseq
  %v2385 = vshrl.u32 %v2384, 7
  %v2386 = vsub.s32 %v45, %v2385
  %v2387 = vrot.slane %v2373, %v2386
  %v2388 = vlaneseq
  %v2389 = vshrl.u32 %v2388, 7
  %v2390 = vsub.s32 %v45, %v2389
  %v2391 = vrot.slane %v2376, %v2390
  %v2392 = vlaneseq
  %v2393 = vshrl.u32 %v2392, 7
  %v2394 = vsub.s32 %v45, %v2393
  %v2395 = vrot.slane %v2379, %v2394
  %vm2396 = vcmask 1041409
  %v2397 = vsel %vm2396, %v2387, %v2383
  %vm2398 = vcmask 1042434
  %v2399 = vsel %vm2398, %v2391, %v2397
  %vm2400 = vcmask 1043459
  %v2401 = vsel %vm2400, %v2395, %v2399
  %vm2403 = vcmask 27648
  %v2404 = vsel %vm2403, %v2401, inf
  %2405 = vmin.xlane.f32.xlu0 %v2404
  %v2406 = vpop.xlane.xlu0 %2405
  %v2408 = vlaneseq
  %v2409 = vshrl.u32 %v2408, 7
  %v2410 = vsub.s32 0, %v2409
  %v2411 = vrot.slane %v2164, %v2410
  %s2413 = sor.u32 256, 6
  %2414 = vbcast.lane.b32.xlu0 %v2411, %s2413
  %v2415 = vpop.permute.xlu0 %2414
  %v2416 = vlaneseq
  %v2417 = vshrl.u32 %v2416, 7
  %v2418 = vsub.s32 1, %v2417
  %v2419 = vrot.slane %v2164, %v2418
  %s2421 = sor.u32 256, 6
  %2422 = vbcast.lane.b32.xlu0 %v2419, %s2421
  %v2423 = vpop.permute.xlu0 %2422
  %v2424 = vlaneseq
  %v2425 = vshrl.u32 %v2424, 7
  %v2426 = vsub.s32 2, %v2425
  %v2427 = vrot.slane %v2164, %v2426
  %s2429 = sor.u32 256, 6
  %2430 = vbcast.lane.b32.xlu0 %v2427, %s2429
  %v2431 = vpop.permute.xlu0 %2430
  %v2432 = vlaneseq
  %v2433 = vshrl.u32 %v2432, 7
  %v2434 = vsub.s32 3, %v2433
  %v2435 = vrot.slane %v2164, %v2434
  %s2437 = sor.u32 256, 6
  %2438 = vbcast.lane.b32.xlu0 %v2435, %s2437
  %v2439 = vpop.permute.xlu0 %2438
  %v2444 = vmul.f32 %v2313, %v2415
  %v2445 = vmul.f32 %v2316, %v2423
  %v2446 = vmul.f32 %v2319, %v2431
  %v2447 = vmul.f32 %v2322, %v2439
  %2452 = vset.pattern.permute.xlu0 0
  %2453 = vperm.xlu0 %2452, %v2444
  %v2454 = vpop.permute.xlu0 %2453
  %2455 = vset.pattern.permute.xlu0 0
  %2456 = vperm.xlu0 %2455, %v2445
  %v2457 = vpop.permute.xlu0 %2456
  %2458 = vset.pattern.permute.xlu0 0
  %2459 = vperm.xlu0 %2458, %v2446
  %v2460 = vpop.permute.xlu0 %2459
  %2461 = vset.pattern.permute.xlu0 0
  %2462 = vperm.xlu0 %2461, %v2447
  %v2463 = vpop.permute.xlu0 %2462
  %v2464 = vlaneseq
  %v2465 = vshrl.u32 %v2464, 7
  %v2466 = vsub.s32 %v45, %v2465
  %v2467 = vrot.slane %v2454, %v2466
  %v2468 = vlaneseq
  %v2469 = vshrl.u32 %v2468, 7
  %v2470 = vsub.s32 %v45, %v2469
  %v2471 = vrot.slane %v2457, %v2470
  %v2472 = vlaneseq
  %v2473 = vshrl.u32 %v2472, 7
  %v2474 = vsub.s32 %v45, %v2473
  %v2475 = vrot.slane %v2460, %v2474
  %v2476 = vlaneseq
  %v2477 = vshrl.u32 %v2476, 7
  %v2478 = vsub.s32 %v45, %v2477
  %v2479 = vrot.slane %v2463, %v2478
  %v2480 = vsel %vm2396, %v2471, %v2467
  %v2481 = vsel %vm2398, %v2475, %v2480
  %v2482 = vsel %vm2400, %v2479, %v2481
  %v2484 = vsel %vm2403, %v2482, 0.0
  %2485 = vadd.xlane.f32.xlu0 %v2484
  %v2486 = vpop.xlane.xlu0 %2485
  %2487 = vrot.lane.b32.xlu0 %v2164, 122
  %v2488 = vpop.permute.xlu0 %2487
  %v2490 = vsel %vm2403, %v2488, 0.0
  %2491 = vadd.xlane.f32.xlu0 %v2490
  %v2492 = vpop.xlane.xlu0 %2491
  %v2493 = vrcp.pop %v2492
  %v2494 = vmul.f32 %v2486, %v2493
  %v2495 = vadd.f32 %v2494, %v2406
  %v2496 = vmul.f32 %v2495, 0.5
  %v2501 = vrot.slane %v2256, 7
  %v2502 = vsel %vm2396, %v2501, %v2255
  %v2503 = vrot.slane %v2257, 6
  %v2504 = vsel %vm2398, %v2503, %v2502
  %v2505 = vrot.slane %v2258, 5
  %v2506 = vsel %vm2400, %v2505, %v2504
  %v2507 = vsel %vm728, %v2506, 0
  %v2510 = vsel %vm728, %v2303, 0
  %v2513 = vsel %vm728, %v2304, 0
  %v2516 = vsel %vm728, %v2305, 0
  %v2519 = vsel %vm728, %v2306, 0
  %2521 = vmatprep.subr.mxu0 0.0
  %2522 = vmatpush1.xpose.msra.mxu0 %v2510
  %2523 = vmatprep.subr.mxu0 0.0
  %2524 = vmatpush1.xpose.msra.mxu0 %v2513
  %2525 = vmatprep.subr.mxu0 0.0
  %2526 = vmatpush1.xpose.msra.mxu0 %v2516
  %2527 = vmatprep.subr.mxu0 0.0
  %2528 = vmatpush1.xpose.msra.mxu0 %v2519
  %2529 = vmatprep.subr.mxu0 0.0
  %2530 = vmatpush1.xpose.msra.mxu0 0.0
  %2531 = vmatprep.subr.mxu0 0.0
  %2532 = vmatpush1.xpose.msra.mxu0 0.0
  %2533 = vmatprep.subr.mxu0 0.0
  %2534 = vmatpush1.xpose.msra.mxu0 0.0
  %2535 = vmatprep.subr.mxu0 0.0
  %2536 = vmatpush1.xpose.msra.mxu0 0.0
  %2537 = vmatprep.subr.mxu0 0.0
  %2538 = vmatpush1.xpose.msra.mxu0 0.0
  %2539 = vmatprep.subr.mxu0 0.0
  %2540 = vmatpush1.xpose.msra.mxu0 0.0
  %2541 = vmatprep.subr.mxu0 0.0
  %2542 = vmatpush1.xpose.msra.mxu0 0.0
  %2543 = vmatprep.subr.mxu0 0.0
  %2544 = vmatpush1.xpose.msra.mxu0 0.0
  %2545 = vmatprep.subr.mxu0 0.0
  %2546 = vmatpush1.xpose.msra.mxu0 0.0
  %2547 = vmatprep.subr.mxu0 0.0
  %2548 = vmatpush1.xpose.msra.mxu0 0.0
  %2549 = vmatprep.subr.mxu0 0.0
  %2550 = vmatpush1.xpose.msra.mxu0 0.0
  %2551 = vmatprep.subr.mxu0 0.0
  %2552 = vmatpush1.xpose.msra.mxu0 0.0
  %2553 = vmatprep.subr.mxu0 0.0
  %2554 = vmatpush1.xpose.msra.mxu0 0.0
  %2555 = vmatprep.subr.mxu0 0.0
  %2556 = vmatpush1.xpose.msra.mxu0 0.0
  %2557 = vmatprep.subr.mxu0 0.0
  %2558 = vmatpush1.xpose.msra.mxu0 0.0
  %2559 = vmatprep.subr.mxu0 0.0
  %2560 = vmatpush1.xpose.msra.mxu0 0.0
  %2561 = vmatprep.subr.mxu0 0.0
  %2562 = vmatpush1.xpose.msra.mxu0 0.0
  %2563 = vmatprep.subr.mxu0 0.0
  %2564 = vmatpush1.xpose.msra.mxu0 0.0
  %2565 = vmatprep.subr.mxu0 0.0
  %2566 = vmatpush1.xpose.msra.mxu0 0.0
  %2567 = vmatprep.subr.mxu0 0.0
  %2568 = vmatpush1.xpose.msra.mxu0 0.0
  %2569 = vmatprep.subr.mxu0 0.0
  %2570 = vmatpush1.xpose.msra.mxu0 0.0
  %2571 = vmatprep.subr.mxu0 0.0
  %2572 = vmatpush1.xpose.msra.mxu0 0.0
  %2573 = vmatprep.subr.mxu0 0.0
  %2574 = vmatpush1.xpose.msra.mxu0 0.0
  %2575 = vmatprep.subr.mxu0 0.0
  %2576 = vmatpush1.xpose.msra.mxu0 0.0
  %2577 = vmatprep.subr.mxu0 0.0
  %2578 = vmatpush1.xpose.msra.mxu0 0.0
  %2579 = vmatprep.subr.mxu0 0.0
  %2580 = vmatpush1.xpose.msra.mxu0 0.0
  %2581 = vmatprep.subr.mxu0 0.0
  %2582 = vmatpush1.xpose.msra.mxu0 0.0
  %2583 = vmatprep.subr.mxu0 0.0
  %2584 = vmatpush1.xpose.msra.mxu0 0.0
  %2585 = vmatprep.mubr.f32.mxu0 0.0
  %2586 = vmatmul.mubr.f32.gmra.mrb[0].mxu0 %v2507
  %v2587 = vpop.f32.mrb[0].mxu0
  %v2588 = vadd.f32 0.0, %v2587
  %v2589 = vpop.f32.mrb[0].mxu0
  %2590 = vdwg.mxu0
  %v2591 = vsel %vm2238, %v2588, -inf
  %2592 = vmax.xlane.f32.xlu0 %v2591
  %v2593 = vpop.xlane.xlu0 %2592
  %v2594 = vadd.s32 %v656, 32
  %v2595 = vadd.s32 %v656, 40
  %v2596 = vadd.s32 %v656, 48
  %v2597 = vadd.s32 %v656, 56
  %v2598 = vadd.s32 %v656, 64
  %v2599 = vadd.s32 %v656, 72
  %v2600 = vadd.s32 %v656, 80
  %v2601 = vadd.s32 %v656, 88
  %v2602 = vadd.s32 %v656, 96
  %v2603 = vadd.s32 %v656, 104
  %v2604 = vadd.s32 %v656, 112
  %v2605 = vadd.s32 %v656, 120
  %v2606 = vmul.u32 %v45, 32
  %vm2607 = vcmp.ge.s32.totalorder %v656, %v2606
  %vm2608 = vcmp.ge.s32.totalorder %v657, %v2606
  %vm2609 = vcmp.ge.s32.totalorder %v658, %v2606
  %vm2610 = vcmp.ge.s32.totalorder %v659, %v2606
  %vm2611 = vcmp.ge.s32.totalorder %v2594, %v2606
  %vm2612 = vcmp.ge.s32.totalorder %v2595, %v2606
  %vm2613 = vcmp.ge.s32.totalorder %v2596, %v2606
  %vm2614 = vcmp.ge.s32.totalorder %v2597, %v2606
  %vm2615 = vcmp.ge.s32.totalorder %v2598, %v2606
  %vm2616 = vcmp.ge.s32.totalorder %v2599, %v2606
  %vm2617 = vcmp.ge.s32.totalorder %v2600, %v2606
  %vm2618 = vcmp.ge.s32.totalorder %v2601, %v2606
  %vm2619 = vcmp.ge.s32.totalorder %v2602, %v2606
  %vm2620 = vcmp.ge.s32.totalorder %v2603, %v2606
  %vm2621 = vcmp.ge.s32.totalorder %v2604, %v2606
  %vm2622 = vcmp.ge.s32.totalorder %v2605, %v2606
  %v2623 = vadd.s32 %v45, 1
  %v2624 = vmul.u32 %v2623, 32
  %vm2625 = vcmp.lt.s32.totalorder %v656, %v2624
  %vm2626 = vcmp.lt.s32.totalorder %v657, %v2624
  %vm2627 = vcmp.lt.s32.totalorder %v658, %v2624
  %vm2628 = vcmp.lt.s32.totalorder %v659, %v2624
  %vm2629 = vcmp.lt.s32.totalorder %v2594, %v2624
  %vm2630 = vcmp.lt.s32.totalorder %v2595, %v2624
  %vm2631 = vcmp.lt.s32.totalorder %v2596, %v2624
  %vm2632 = vcmp.lt.s32.totalorder %v2597, %v2624
  %vm2633 = vcmp.lt.s32.totalorder %v2598, %v2624
  %vm2634 = vcmp.lt.s32.totalorder %v2599, %v2624
  %vm2635 = vcmp.lt.s32.totalorder %v2600, %v2624
  %vm2636 = vcmp.lt.s32.totalorder %v2601, %v2624
  %vm2637 = vcmp.lt.s32.totalorder %v2602, %v2624
  %vm2638 = vcmp.lt.s32.totalorder %v2603, %v2624
  %vm2639 = vcmp.lt.s32.totalorder %v2604, %v2624
  %vm2640 = vcmp.lt.s32.totalorder %v2605, %v2624
  %vm2641 = vmand %vm2607, %vm2625
  %vm2642 = vmand %vm2608, %vm2626
  %vm2643 = vmand %vm2609, %vm2627
  %vm2644 = vmand %vm2610, %vm2628
  %vm2645 = vmand %vm2611, %vm2629
  %vm2646 = vmand %vm2612, %vm2630
  %vm2647 = vmand %vm2613, %vm2631
  %vm2648 = vmand %vm2614, %vm2632
  %vm2649 = vmand %vm2615, %vm2633
  %vm2650 = vmand %vm2616, %vm2634
  %vm2651 = vmand %vm2617, %vm2635
  %vm2652 = vmand %vm2618, %vm2636
  %vm2653 = vmand %vm2619, %vm2637
  %vm2654 = vmand %vm2620, %vm2638
  %vm2655 = vmand %vm2621, %vm2639
  %vm2656 = vmand %vm2622, %vm2640
  %v2657 = vsel %vm2641, 1, 0
  %v2658 = vsel %vm2642, 1, 0
  %v2659 = vsel %vm2643, 1, 0
  %v2660 = vsel %vm2644, 1, 0
  %v2661 = vsel %vm2645, 1, 0
  %v2662 = vsel %vm2646, 1, 0
  %v2663 = vsel %vm2647, 1, 0
  %v2664 = vsel %vm2648, 1, 0
  %v2665 = vsel %vm2649, 1, 0
  %v2666 = vsel %vm2650, 1, 0
  %v2667 = vsel %vm2651, 1, 0
  %v2668 = vsel %vm2652, 1, 0
  %v2669 = vsel %vm2653, 1, 0
  %v2670 = vsel %vm2654, 1, 0
  %v2671 = vsel %vm2655, 1, 0
  %v2672 = vsel %vm2656, 1, 0
  %v2673 = vcvt.s32.f32 %v2657
  %v2674 = vcvt.s32.f32 %v2658
  %v2675 = vcvt.s32.f32 %v2659
  %v2676 = vcvt.s32.f32 %v2660
  %v2677 = vcvt.s32.f32 %v2661
  %v2678 = vcvt.s32.f32 %v2662
  %v2679 = vcvt.s32.f32 %v2663
  %v2680 = vcvt.s32.f32 %v2664
  %v2681 = vcvt.s32.f32 %v2665
  %v2682 = vcvt.s32.f32 %v2666
  %v2683 = vcvt.s32.f32 %v2667
  %v2684 = vcvt.s32.f32 %v2668
  %v2685 = vcvt.s32.f32 %v2669
  %v2686 = vcvt.s32.f32 %v2670
  %v2687 = vcvt.s32.f32 %v2671
  %v2688 = vcvt.s32.f32 %v2672
  %vm2689 = vcmask 31744
  %v2691 = vsel %vm2689, %v2673, 0
  %v2694 = vsel %vm2689, %v2674, 0
  %v2697 = vsel %vm2689, %v2675, 0
  %v2700 = vsel %vm2689, %v2676, 0
  %v2703 = vsel %vm2689, %v2677, 0
  %v2706 = vsel %vm2689, %v2678, 0
  %v2709 = vsel %vm2689, %v2679, 0
  %v2712 = vsel %vm2689, %v2680, 0
  %v2715 = vsel %vm2689, %v2681, 0
  %v2718 = vsel %vm2689, %v2682, 0
  %v2721 = vsel %vm2689, %v2683, 0
  %v2724 = vsel %vm2689, %v2684, 0
  %v2727 = vsel %vm2689, %v2685, 0
  %v2730 = vsel %vm2689, %v2686, 0
  %v2733 = vsel %vm2689, %v2687, 0
  %v2736 = vsel %vm2689, %v2688, 0
  %vm2738 = vcmask 1043456
  %v2740 = vsel %vm2738, %v2588, 0
  %2742 = vmatprep.subr.mxu0 0.0
  %2743 = vmatpush1.msra.mxu0 %v2740
  %2744 = vmatprep.subr.mxu0 0.0
  %2745 = vmatpush1.msra.mxu0 0.0
  %2746 = vmatprep.subr.mxu0 0.0
  %2747 = vmatpush1.msra.mxu0 0.0
  %2748 = vmatprep.subr.mxu0 0.0
  %2749 = vmatpush1.msra.mxu0 0.0
  %2750 = vmatprep.subr.mxu0 0.0
  %2751 = vmatpush1.msra.mxu0 0.0
  %2752 = vmatprep.subr.mxu0 0.0
  %2753 = vmatpush1.msra.mxu0 0.0
  %2754 = vmatprep.subr.mxu0 0.0
  %2755 = vmatpush1.msra.mxu0 0.0
  %2756 = vmatprep.subr.mxu0 0.0
  %2757 = vmatpush1.msra.mxu0 0.0
  %2758 = vmatprep.subr.mxu0 0.0
  %2759 = vmatpush1.msra.mxu0 0.0
  %2760 = vmatprep.subr.mxu0 0.0
  %2761 = vmatpush1.msra.mxu0 0.0
  %2762 = vmatprep.subr.mxu0 0.0
  %2763 = vmatpush1.msra.mxu0 0.0
  %2764 = vmatprep.subr.mxu0 0.0
  %2765 = vmatpush1.msra.mxu0 0.0
  %2766 = vmatprep.subr.mxu0 0.0
  %2767 = vmatpush1.msra.mxu0 0.0
  %2768 = vmatprep.subr.mxu0 0.0
  %2769 = vmatpush1.msra.mxu0 0.0
  %2770 = vmatprep.subr.mxu0 0.0
  %2771 = vmatpush1.msra.mxu0 0.0
  %2772 = vmatprep.subr.mxu0 0.0
  %2773 = vmatpush1.msra.mxu0 0.0
  %2774 = vmatprep.subr.mxu0 0.0
  %2775 = vmatpush1.msra.mxu0 0.0
  %2776 = vmatprep.subr.mxu0 0.0
  %2777 = vmatpush1.msra.mxu0 0.0
  %2778 = vmatprep.subr.mxu0 0.0
  %2779 = vmatpush1.msra.mxu0 0.0
  %2780 = vmatprep.subr.mxu0 0.0
  %2781 = vmatpush1.msra.mxu0 0.0
  %2782 = vmatprep.subr.mxu0 0.0
  %2783 = vmatpush1.msra.mxu0 0.0
  %2784 = vmatprep.subr.mxu0 0.0
  %2785 = vmatpush1.msra.mxu0 0.0
  %2786 = vmatprep.subr.mxu0 0.0
  %2787 = vmatpush1.msra.mxu0 0.0
  %2788 = vmatprep.subr.mxu0 0.0
  %2789 = vmatpush1.msra.mxu0 0.0
  %2790 = vmatprep.subr.mxu0 0.0
  %2791 = vmatpush1.msra.mxu0 0.0
  %2792 = vmatprep.subr.mxu0 0.0
  %2793 = vmatpush1.msra.mxu0 0.0
  %2794 = vmatprep.subr.mxu0 0.0
  %2795 = vmatpush1.msra.mxu0 0.0
  %2796 = vmatprep.subr.mxu0 0.0
  %2797 = vmatpush1.msra.mxu0 0.0
  %2798 = vmatprep.subr.mxu0 0.0
  %2799 = vmatpush1.msra.mxu0 0.0
  %2800 = vmatprep.subr.mxu0 0.0
  %2801 = vmatpush1.msra.mxu0 0.0
  %2802 = vmatprep.subr.mxu0 0.0
  %2803 = vmatpush1.msra.mxu0 0.0
  %2804 = vmatprep.subr.mxu0 0.0
  %2805 = vmatpush1.msra.mxu0 0.0
  %2806 = vmatprep.mubr.f32.mxu0 0.0
  %2807 = vmatmul.mubr.f32.gmra.mrb[0].mxu0 %v2691
  %v2808 = vpop.f32.mrb[0].mxu0
  %v2809 = vadd.f32 0.0, %v2808
  %v2810 = vpop.f32.mrb[0].mxu0
  %2811 = vmatprep.mubr.f32.mxu0 0.0
  %2812 = vmatmul.mubr.f32.gmra.mrb[0].mxu0 %v2694
  %v2813 = vpop.f32.mrb[0].mxu0
  %v2814 = vadd.f32 0.0, %v2813
  %v2815 = vpop.f32.mrb[0].mxu0
  %2816 = vmatprep.mubr.f32.mxu0 0.0
  %2817 = vmatmul.mubr.f32.gmra.mrb[0].mxu0 %v2697
  %v2818 = vpop.f32.mrb[0].mxu0
  %v2819 = vadd.f32 0.0, %v2818
  %v2820 = vpop.f32.mrb[0].mxu0
  %2821 = vmatprep.mubr.f32.mxu0 0.0
  %2822 = vmatmul.mubr.f32.gmra.mrb[0].mxu0 %v2700
  %v2823 = vpop.f32.mrb[0].mxu0
  %v2824 = vadd.f32 0.0, %v2823
  %v2825 = vpop.f32.mrb[0].mxu0
  %2826 = vmatprep.mubr.f32.mxu0 0.0
  %2827 = vmatmul.mubr.f32.gmra.mrb[0].mxu0 %v2703
  %v2828 = vpop.f32.mrb[0].mxu0
  %v2829 = vadd.f32 0.0, %v2828
  %v2830 = vpop.f32.mrb[0].mxu0
  %2831 = vmatprep.mubr.f32.mxu0 0.0
  %2832 = vmatmul.mubr.f32.gmra.mrb[0].mxu0 %v2706
  %v2833 = vpop.f32.mrb[0].mxu0
  %v2834 = vadd.f32 0.0, %v2833
  %v2835 = vpop.f32.mrb[0].mxu0
  %2836 = vmatprep.mubr.f32.mxu0 0.0
  %2837 = vmatmul.mubr.f32.gmra.mrb[0].mxu0 %v2709
  %v2838 = vpop.f32.mrb[0].mxu0
  %v2839 = vadd.f32 0.0, %v2838
  %v2840 = vpop.f32.mrb[0].mxu0
  %2841 = vmatprep.mubr.f32.mxu0 0.0
  %2842 = vmatmul.mubr.f32.gmra.mrb[0].mxu0 %v2712
  %v2843 = vpop.f32.mrb[0].mxu0
  %v2844 = vadd.f32 0.0, %v2843
  %v2845 = vpop.f32.mrb[0].mxu0
  %2846 = vmatprep.mubr.f32.mxu0 0.0
  %2847 = vmatmul.mubr.f32.gmra.mrb[0].mxu0 %v2715
  %v2848 = vpop.f32.mrb[0].mxu0
  %v2849 = vadd.f32 0.0, %v2848
  %v2850 = vpop.f32.mrb[0].mxu0
  %2851 = vmatprep.mubr.f32.mxu0 0.0
  %2852 = vmatmul.mubr.f32.gmra.mrb[0].mxu0 %v2718
  %v2853 = vpop.f32.mrb[0].mxu0
  %v2854 = vadd.f32 0.0, %v2853
  %v2855 = vpop.f32.mrb[0].mxu0
  %2856 = vmatprep.mubr.f32.mxu0 0.0
  %2857 = vmatmul.mubr.f32.gmra.mrb[0].mxu0 %v2721
  %v2858 = vpop.f32.mrb[0].mxu0
  %v2859 = vadd.f32 0.0, %v2858
  %v2860 = vpop.f32.mrb[0].mxu0
  %2861 = vmatprep.mubr.f32.mxu0 0.0
  %2862 = vmatmul.mubr.f32.gmra.mrb[0].mxu0 %v2724
  %v2863 = vpop.f32.mrb[0].mxu0
  %v2864 = vadd.f32 0.0, %v2863
  %v2865 = vpop.f32.mrb[0].mxu0
  %2866 = vmatprep.mubr.f32.mxu0 0.0
  %2867 = vmatmul.mubr.f32.gmra.mrb[0].mxu0 %v2727
  %v2868 = vpop.f32.mrb[0].mxu0
  %v2869 = vadd.f32 0.0, %v2868
  %v2870 = vpop.f32.mrb[0].mxu0
  %2871 = vmatprep.mubr.f32.mxu0 0.0
  %2872 = vmatmul.mubr.f32.gmra.mrb[0].mxu0 %v2730
  %v2873 = vpop.f32.mrb[0].mxu0
  %v2874 = vadd.f32 0.0, %v2873
  %v2875 = vpop.f32.mrb[0].mxu0
  %2876 = vmatprep.mubr.f32.mxu0 0.0
  %2877 = vmatmul.mubr.f32.gmra.mrb[0].mxu0 %v2733
  %v2878 = vpop.f32.mrb[0].mxu0
  %v2879 = vadd.f32 0.0, %v2878
  %v2880 = vpop.f32.mrb[0].mxu0
  %2881 = vmatprep.mubr.f32.mxu0 0.0
  %2882 = vmatmul.mubr.f32.gmra.mrb[0].mxu0 %v2736
  %v2883 = vpop.f32.mrb[0].mxu0
  %v2884 = vadd.f32 0.0, %v2883
  %v2885 = vpop.f32.mrb[0].mxu0
  %2886 = vdwg.mxu0
  %v2887 = vand.u32 %v656, 31
  %v2888 = vand.u32 %v657, 31
  %v2889 = vand.u32 %v658, 31
  %v2890 = vand.u32 %v659, 31
  %v2891 = vand.u32 %v2594, 31
  %v2892 = vand.u32 %v2595, 31
  %v2893 = vand.u32 %v2596, 31
  %v2894 = vand.u32 %v2597, 31
  %v2895 = vand.u32 %v2598, 31
  %v2896 = vand.u32 %v2599, 31
  %v2897 = vand.u32 %v2600, 31
  %v2898 = vand.u32 %v2601, 31
  %v2899 = vand.u32 %v2602, 31
  %v2900 = vand.u32 %v2603, 31
  %v2901 = vand.u32 %v2604, 31
  %v2902 = vand.u32 %v2605, 31
  %vm2903 = vcmp.eq.s32.totalorder %v45, %v2887
  %vm2904 = vcmp.eq.s32.totalorder %v45, %v2888
  %vm2905 = vcmp.eq.s32.totalorder %v45, %v2889
  %vm2906 = vcmp.eq.s32.totalorder %v45, %v2890
  %vm2907 = vcmp.eq.s32.totalorder %v45, %v2891
  %vm2908 = vcmp.eq.s32.totalorder %v45, %v2892
  %vm2909 = vcmp.eq.s32.totalorder %v45, %v2893
  %vm2910 = vcmp.eq.s32.totalorder %v45, %v2894
  %vm2911 = vcmp.eq.s32.totalorder %v45, %v2895
  %vm2912 = vcmp.eq.s32.totalorder %v45, %v2896
  %vm2913 = vcmp.eq.s32.totalorder %v45, %v2897
  %vm2914 = vcmp.eq.s32.totalorder %v45, %v2898
  %vm2915 = vcmp.eq.s32.totalorder %v45, %v2899
  %vm2916 = vcmp.eq.s32.totalorder %v45, %v2900
  %vm2917 = vcmp.eq.s32.totalorder %v45, %v2901
  %vm2918 = vcmp.eq.s32.totalorder %v45, %v2902
  %v2919 = vsel %vm2903, 1, 0
  %v2920 = vsel %vm2904, 1, 0
  %v2921 = vsel %vm2905, 1, 0
  %v2922 = vsel %vm2906, 1, 0
  %v2923 = vsel %vm2907, 1, 0
  %v2924 = vsel %vm2908, 1, 0
  %v2925 = vsel %vm2909, 1, 0
  %v2926 = vsel %vm2910, 1, 0
  %v2927 = vsel %vm2911, 1, 0
  %v2928 = vsel %vm2912, 1, 0
  %v2929 = vsel %vm2913, 1, 0
  %v2930 = vsel %vm2914, 1, 0
  %v2931 = vsel %vm2915, 1, 0
  %v2932 = vsel %vm2916, 1, 0
  %v2933 = vsel %vm2917, 1, 0
  %v2934 = vsel %vm2918, 1, 0
  %v2935 = vcvt.s32.f32 %v2919
  %v2936 = vcvt.s32.f32 %v2920
  %v2937 = vcvt.s32.f32 %v2921
  %v2938 = vcvt.s32.f32 %v2922
  %v2939 = vcvt.s32.f32 %v2923
  %v2940 = vcvt.s32.f32 %v2924
  %v2941 = vcvt.s32.f32 %v2925
  %v2942 = vcvt.s32.f32 %v2926
  %v2943 = vcvt.s32.f32 %v2927
  %v2944 = vcvt.s32.f32 %v2928
  %v2945 = vcvt.s32.f32 %v2929
  %v2946 = vcvt.s32.f32 %v2930
  %v2947 = vcvt.s32.f32 %v2931
  %v2948 = vcvt.s32.f32 %v2932
  %v2949 = vcvt.s32.f32 %v2933
  %v2950 = vcvt.s32.f32 %v2934
  %v2951 = vmul.f32 %v2809, %v2935
  %v2952 = vmul.f32 %v2814, %v2936
  %v2953 = vmul.f32 %v2819, %v2937
  %v2954 = vmul.f32 %v2824, %v2938
  %v2955 = vmul.f32 %v2829, %v2939
  %v2956 = vmul.f32 %v2834, %v2940
  %v2957 = vmul.f32 %v2839, %v2941
  %v2958 = vmul.f32 %v2844, %v2942
  %v2959 = vmul.f32 %v2849, %v2943
  %v2960 = vmul.f32 %v2854, %v2944
  %v2961 = vmul.f32 %v2859, %v2945
  %v2962 = vmul.f32 %v2864, %v2946
  %v2963 = vmul.f32 %v2869, %v2947
  %v2964 = vmul.f32 %v2874, %v2948
  %v2965 = vmul.f32 %v2879, %v2949
  %v2966 = vmul.f32 %v2884, %v2950
  %v2967 = vsel %vm728, %v2951, 0.0
  %2968 = vadd.xlane.f32.xlu0 %v2967
  %v2969 = vpop.xlane.xlu0 %2968
  %v2970 = vsel %vm728, %v2952, 0.0
  %2971 = vadd.xlane.f32.xlu0 %v2970
  %v2972 = vpop.xlane.xlu0 %2971
  %v2973 = vsel %vm728, %v2953, 0.0
  %2974 = vadd.xlane.f32.xlu0 %v2973
  %v2975 = vpop.xlane.xlu0 %2974
  %v2976 = vsel %vm728, %v2954, 0.0
  %2977 = vadd.xlane.f32.xlu0 %v2976
  %v2978 = vpop.xlane.xlu0 %2977
  %v2979 = vsel %vm728, %v2955, 0.0
  %2980 = vadd.xlane.f32.xlu0 %v2979
  %v2981 = vpop.xlane.xlu0 %2980
  %v2982 = vsel %vm728, %v2956, 0.0
  %2983 = vadd.xlane.f32.xlu0 %v2982
  %v2984 = vpop.xlane.xlu0 %2983
  %v2985 = vsel %vm728, %v2957, 0.0
  %2986 = vadd.xlane.f32.xlu0 %v2985
  %v2987 = vpop.xlane.xlu0 %2986
  %v2988 = vsel %vm728, %v2958, 0.0
  %2989 = vadd.xlane.f32.xlu0 %v2988
  %v2990 = vpop.xlane.xlu0 %2989
  %v2991 = vsel %vm728, %v2959, 0.0
  %2992 = vadd.xlane.f32.xlu0 %v2991
  %v2993 = vpop.xlane.xlu0 %2992
  %v2994 = vsel %vm728, %v2960, 0.0
  %2995 = vadd.xlane.f32.xlu0 %v2994
  %v2996 = vpop.xlane.xlu0 %2995
  %v2997 = vsel %vm728, %v2961, 0.0
  %2998 = vadd.xlane.f32.xlu0 %v2997
  %v2999 = vpop.xlane.xlu0 %2998
  %v3000 = vsel %vm728, %v2962, 0.0
  %3001 = vadd.xlane.f32.xlu0 %v3000
  %v3002 = vpop.xlane.xlu0 %3001
  %v3003 = vsel %vm728, %v2963, 0.0
  %3004 = vadd.xlane.f32.xlu0 %v3003
  %v3005 = vpop.xlane.xlu0 %3004
  %v3006 = vsel %vm728, %v2964, 0.0
  %3007 = vadd.xlane.f32.xlu0 %v3006
  %v3008 = vpop.xlane.xlu0 %3007
  %v3009 = vsel %vm728, %v2965, 0.0
  %3010 = vadd.xlane.f32.xlu0 %v3009
  %v3011 = vpop.xlane.xlu0 %3010
  %v3012 = vsel %vm728, %v2966, 0.0
  %3013 = vadd.xlane.f32.xlu0 %v3012
  %v3014 = vpop.xlane.xlu0 %3013
  %vm3015 = vcmp.ge.f32.partialorder %v2809, %v2969
  %vm3016 = vcmp.ge.f32.partialorder %v2814, %v2972
  %vm3017 = vcmp.ge.f32.partialorder %v2819, %v2975
  %vm3018 = vcmp.ge.f32.partialorder %v2824, %v2978
  %vm3019 = vcmp.ge.f32.partialorder %v2829, %v2981
  %vm3020 = vcmp.ge.f32.partialorder %v2834, %v2984
  %vm3021 = vcmp.ge.f32.partialorder %v2839, %v2987
  %vm3022 = vcmp.ge.f32.partialorder %v2844, %v2990
  %vm3023 = vcmp.ge.f32.partialorder %v2849, %v2993
  %vm3024 = vcmp.ge.f32.partialorder %v2854, %v2996
  %vm3025 = vcmp.ge.f32.partialorder %v2859, %v2999
  %vm3026 = vcmp.ge.f32.partialorder %v2864, %v3002
  %vm3027 = vcmp.ge.f32.partialorder %v2869, %v3005
  %vm3028 = vcmp.ge.f32.partialorder %v2874, %v3008
  %vm3029 = vcmp.ge.f32.partialorder %v2879, %v3011
  %vm3030 = vcmp.ge.f32.partialorder %v2884, %v3014
  %v3031 = vsel %vm3015, 1, 0
  %v3032 = vsel %vm3016, 1, 0
  %v3033 = vsel %vm3017, 1, 0
  %v3034 = vsel %vm3018, 1, 0
  %v3035 = vsel %vm3019, 1, 0
  %v3036 = vsel %vm3020, 1, 0
  %v3037 = vsel %vm3021, 1, 0
  %v3038 = vsel %vm3022, 1, 0
  %v3039 = vsel %vm3023, 1, 0
  %v3040 = vsel %vm3024, 1, 0
  %v3041 = vsel %vm3025, 1, 0
  %v3042 = vsel %vm3026, 1, 0
  %v3043 = vsel %vm3027, 1, 0
  %v3044 = vsel %vm3028, 1, 0
  %v3045 = vsel %vm3029, 1, 0
  %v3046 = vsel %vm3030, 1, 0
  %v3047 = vcvt.s32.f32 %v3031
  %v3048 = vcvt.s32.f32 %v3032
  %v3049 = vcvt.s32.f32 %v3033
  %v3050 = vcvt.s32.f32 %v3034
  %v3051 = vcvt.s32.f32 %v3035
  %v3052 = vcvt.s32.f32 %v3036
  %v3053 = vcvt.s32.f32 %v3037
  %v3054 = vcvt.s32.f32 %v3038
  %v3055 = vcvt.s32.f32 %v3039
  %v3056 = vcvt.s32.f32 %v3040
  %v3057 = vcvt.s32.f32 %v3041
  %v3058 = vcvt.s32.f32 %v3042
  %v3059 = vcvt.s32.f32 %v3043
  %v3060 = vcvt.s32.f32 %v3044
  %v3061 = vcvt.s32.f32 %v3045
  %v3062 = vcvt.s32.f32 %v3046
  %v3063 = vsel %vm728, %v3047, 0.0
  %3064 = vadd.xlane.f32.xlu0 %v3063
  %v3065 = vpop.xlane.xlu0 %3064
  %v3066 = vsel %vm728, %v3048, 0.0
  %3067 = vadd.xlane.f32.xlu0 %v3066
  %v3068 = vpop.xlane.xlu0 %3067
  %v3069 = vsel %vm728, %v3049, 0.0
  %3070 = vadd.xlane.f32.xlu0 %v3069
  %v3071 = vpop.xlane.xlu0 %3070
  %v3072 = vsel %vm728, %v3050, 0.0
  %3073 = vadd.xlane.f32.xlu0 %v3072
  %v3074 = vpop.xlane.xlu0 %3073
  %v3075 = vsel %vm728, %v3051, 0.0
  %3076 = vadd.xlane.f32.xlu0 %v3075
  %v3077 = vpop.xlane.xlu0 %3076
  %v3078 = vsel %vm728, %v3052, 0.0
  %3079 = vadd.xlane.f32.xlu0 %v3078
  %v3080 = vpop.xlane.xlu0 %3079
  %v3081 = vsel %vm728, %v3053, 0.0
  %3082 = vadd.xlane.f32.xlu0 %v3081
  %v3083 = vpop.xlane.xlu0 %3082
  %v3084 = vsel %vm728, %v3054, 0.0
  %3085 = vadd.xlane.f32.xlu0 %v3084
  %v3086 = vpop.xlane.xlu0 %3085
  %v3087 = vsel %vm728, %v3055, 0.0
  %3088 = vadd.xlane.f32.xlu0 %v3087
  %v3089 = vpop.xlane.xlu0 %3088
  %v3090 = vsel %vm728, %v3056, 0.0
  %3091 = vadd.xlane.f32.xlu0 %v3090
  %v3092 = vpop.xlane.xlu0 %3091
  %v3093 = vsel %vm728, %v3057, 0.0
  %3094 = vadd.xlane.f32.xlu0 %v3093
  %v3095 = vpop.xlane.xlu0 %3094
  %v3096 = vsel %vm728, %v3058, 0.0
  %3097 = vadd.xlane.f32.xlu0 %v3096
  %v3098 = vpop.xlane.xlu0 %3097
  %v3099 = vsel %vm728, %v3059, 0.0
  %3100 = vadd.xlane.f32.xlu0 %v3099
  %v3101 = vpop.xlane.xlu0 %3100
  %v3102 = vsel %vm728, %v3060, 0.0
  %3103 = vadd.xlane.f32.xlu0 %v3102
  %v3104 = vpop.xlane.xlu0 %3103
  %v3105 = vsel %vm728, %v3061, 0.0
  %3106 = vadd.xlane.f32.xlu0 %v3105
  %v3107 = vpop.xlane.xlu0 %3106
  %v3108 = vsel %vm728, %v3062, 0.0
  %3109 = vadd.xlane.f32.xlu0 %v3108
  %v3110 = vpop.xlane.xlu0 %3109
  %vm3111 = vcmp.le.f32.partialorder %v3065, 8.0
  %vm3112 = vcmp.le.f32.partialorder %v3068, 8.0
  %vm3113 = vcmp.le.f32.partialorder %v3071, 8.0
  %vm3114 = vcmp.le.f32.partialorder %v3074, 8.0
  %vm3115 = vcmp.le.f32.partialorder %v3077, 8.0
  %vm3116 = vcmp.le.f32.partialorder %v3080, 8.0
  %vm3117 = vcmp.le.f32.partialorder %v3083, 8.0
  %vm3118 = vcmp.le.f32.partialorder %v3086, 8.0
  %vm3119 = vcmp.le.f32.partialorder %v3089, 8.0
  %vm3120 = vcmp.le.f32.partialorder %v3092, 8.0
  %vm3121 = vcmp.le.f32.partialorder %v3095, 8.0
  %vm3122 = vcmp.le.f32.partialorder %v3098, 8.0
  %vm3123 = vcmp.le.f32.partialorder %v3101, 8.0
  %vm3124 = vcmp.le.f32.partialorder %v3104, 8.0
  %vm3125 = vcmp.le.f32.partialorder %v3107, 8.0
  %vm3126 = vcmp.le.f32.partialorder %v3110, 8.0
  %v3127 = vsel %vm3111, 1, 0
  %v3128 = vsel %vm3112, 1, 0
  %v3129 = vsel %vm3113, 1, 0
  %v3130 = vsel %vm3114, 1, 0
  %v3131 = vsel %vm3115, 1, 0
  %v3132 = vsel %vm3116, 1, 0
  %v3133 = vsel %vm3117, 1, 0
  %v3134 = vsel %vm3118, 1, 0
  %v3135 = vsel %vm3119, 1, 0
  %v3136 = vsel %vm3120, 1, 0
  %v3137 = vsel %vm3121, 1, 0
  %v3138 = vsel %vm3122, 1, 0
  %v3139 = vsel %vm3123, 1, 0
  %v3140 = vsel %vm3124, 1, 0
  %v3141 = vsel %vm3125, 1, 0
  %v3142 = vsel %vm3126, 1, 0
  %v3143 = vcvt.s32.f32 %v3127
  %v3144 = vcvt.s32.f32 %v3128
  %v3145 = vcvt.s32.f32 %v3129
  %v3146 = vcvt.s32.f32 %v3130
  %v3147 = vcvt.s32.f32 %v3131
  %v3148 = vcvt.s32.f32 %v3132
  %v3149 = vcvt.s32.f32 %v3133
  %v3150 = vcvt.s32.f32 %v3134
  %v3151 = vcvt.s32.f32 %v3135
  %v3152 = vcvt.s32.f32 %v3136
  %v3153 = vcvt.s32.f32 %v3137
  %v3154 = vcvt.s32.f32 %v3138
  %v3155 = vcvt.s32.f32 %v3139
  %v3156 = vcvt.s32.f32 %v3140
  %v3157 = vcvt.s32.f32 %v3141
  %v3158 = vcvt.s32.f32 %v3142
  %v3159 = vmul.f32 %v2969, 20.0
  %v3160 = vmul.f32 %v2972, 20.0
  %v3161 = vmul.f32 %v2975, 20.0
  %v3162 = vmul.f32 %v2978, 20.0
  %v3163 = vmul.f32 %v2981, 20.0
  %v3164 = vmul.f32 %v2984, 20.0
  %v3165 = vmul.f32 %v2987, 20.0
  %v3166 = vmul.f32 %v2990, 20.0
  %v3167 = vmul.f32 %v2993, 20.0
  %v3168 = vmul.f32 %v2996, 20.0
  %v3169 = vmul.f32 %v2999, 20.0
  %v3170 = vmul.f32 %v3002, 20.0
  %v3171 = vmul.f32 %v3005, 20.0
  %v3172 = vmul.f32 %v3008, 20.0
  %v3173 = vmul.f32 %v3011, 20.0
  %v3174 = vmul.f32 %v3014, 20.0
  %v3175 = vmul.f32 %v3159, 1.442695
  %v3176 = vpow.pop %v3175
  %v3177 = vmul.f32 %v3160, 1.442695
  %v3178 = vpow.pop %v3177
  %v3179 = vmul.f32 %v3161, 1.442695
  %v3180 = vpow.pop %v3179
  %v3181 = vmul.f32 %v3162, 1.442695
  %v3182 = vpow.pop %v3181
  %v3183 = vmul.f32 %v3163, 1.442695
  %v3184 = vpow.pop %v3183
  %v3185 = vmul.f32 %v3164, 1.442695
  %v3186 = vpow.pop %v3185
  %v3187 = vmul.f32 %v3165, 1.442695
  %v3188 = vpow.pop %v3187
  %v3189 = vmul.f32 %v3166, 1.442695
  %v3190 = vpow.pop %v3189
  %v3191 = vmul.f32 %v3167, 1.442695
  %v3192 = vpow.pop %v3191
  %v3193 = vmul.f32 %v3168, 1.442695
  %v3194 = vpow.pop %v3193
  %v3195 = vmul.f32 %v3169, 1.442695
  %v3196 = vpow.pop %v3195
  %v3197 = vmul.f32 %v3170, 1.442695
  %v3198 = vpow.pop %v3197
  %v3199 = vmul.f32 %v3171, 1.442695
  %v3200 = vpow.pop %v3199
  %v3201 = vmul.f32 %v3172, 1.442695
  %v3202 = vpow.pop %v3201
  %v3203 = vmul.f32 %v3173, 1.442695
  %v3204 = vpow.pop %v3203
  %v3205 = vmul.f32 %v3174, 1.442695
  %v3206 = vpow.pop %v3205
  %v3207 = vmul.f32 %v3176, %v3143
  %v3208 = vmul.f32 %v3178, %v3144
  %v3209 = vmul.f32 %v3180, %v3145
  %v3210 = vmul.f32 %v3182, %v3146
  %v3211 = vmul.f32 %v3184, %v3147
  %v3212 = vmul.f32 %v3186, %v3148
  %v3213 = vmul.f32 %v3188, %v3149
  %v3214 = vmul.f32 %v3190, %v3150
  %v3215 = vmul.f32 %v3192, %v3151
  %v3216 = vmul.f32 %v3194, %v3152
  %v3217 = vmul.f32 %v3196, %v3153
  %v3218 = vmul.f32 %v3198, %v3154
  %v3219 = vmul.f32 %v3200, %v3155
  %v3220 = vmul.f32 %v3202, %v3156
  %v3221 = vmul.f32 %v3204, %v3157
  %v3222 = vmul.f32 %v3206, %v3158
  %v3223 = vmul.u32 %v656, 32
  %vm3224 = vcmp.ge.s32.totalorder %v45, %v3223
  %v3225 = vadd.s32 %v656, 1
  %v3226 = vmul.u32 %v3225, 32
  %vm3227 = vcmp.lt.s32.totalorder %v45, %v3226
  %vm3228 = vmand %vm3224, %vm3227
  %v3229 = vsel %vm3228, 1, 0
  %v3230 = vcvt.s32.f32 %v3229
  %3231 = vmatprep.subr.mxu0 0.0
  %3232 = vmatpush1.msra.mxu0 %v3207
  %3233 = vmatprep.subr.mxu0 0.0
  %3234 = vmatpush1.msra.mxu0 %v3208
  %3235 = vmatprep.subr.mxu0 0.0
  %3236 = vmatpush1.msra.mxu0 %v3209
  %3237 = vmatprep.subr.mxu0 0.0
  %3238 = vmatpush1.msra.mxu0 %v3210
  %3239 = vmatprep.subr.mxu0 0.0
  %3240 = vmatpush1.msra.mxu0 %v3211
  %3241 = vmatprep.subr.mxu0 0.0
  %3242 = vmatpush1.msra.mxu0 %v3212
  %3243 = vmatprep.subr.mxu0 0.0
  %3244 = vmatpush1.msra.mxu0 %v3213
  %3245 = vmatprep.subr.mxu0 0.0
  %3246 = vmatpush1.msra.mxu0 %v3214
  %3247 = vmatprep.subr.mxu0 0.0
  %3248 = vmatpush1.msra.mxu0 %v3215
  %3249 = vmatprep.subr.mxu0 0.0
  %3250 = vmatpush1.msra.mxu0 %v3216
  %3251 = vmatprep.subr.mxu0 0.0
  %3252 = vmatpush1.msra.mxu0 %v3217
  %3253 = vmatprep.subr.mxu0 0.0
  %3254 = vmatpush1.msra.mxu0 %v3218
  %3255 = vmatprep.subr.mxu0 0.0
  %3256 = vmatpush1.msra.mxu0 %v3219
  %3257 = vmatprep.subr.mxu0 0.0
  %3258 = vmatpush1.msra.mxu0 %v3220
  %3259 = vmatprep.subr.mxu0 0.0
  %3260 = vmatpush1.msra.mxu0 %v3221
  %3261 = vmatprep.subr.mxu0 0.0
  %3262 = vmatpush1.msra.mxu0 %v3222
  %3263 = vmatprep.subr.mxu0 0.0
  %3264 = vmatpush1.msra.mxu0 0.0
  %3265 = vmatprep.subr.mxu0 0.0
  %3266 = vmatpush1.msra.mxu0 0.0
  %3267 = vmatprep.subr.mxu0 0.0
  %3268 = vmatpush1.msra.mxu0 0.0
  %3269 = vmatprep.subr.mxu0 0.0
  %3270 = vmatpush1.msra.mxu0 0.0
  %3271 = vmatprep.subr.mxu0 0.0
  %3272 = vmatpush1.msra.mxu0 0.0
  %3273 = vmatprep.subr.mxu0 0.0
  %3274 = vmatpush1.msra.mxu0 0.0
  %3275 = vmatprep.subr.mxu0 0.0
  %3276 = vmatpush1.msra.mxu0 0.0
  %3277 = vmatprep.subr.mxu0 0.0
  %3278 = vmatpush1.msra.mxu0 0.0
  %3279 = vmatprep.subr.mxu0 0.0
  %3280 = vmatpush1.msra.mxu0 0.0
  %3281 = vmatprep.subr.mxu0 0.0
  %3282 = vmatpush1.msra.mxu0 0.0
  %3283 = vmatprep.subr.mxu0 0.0
  %3284 = vmatpush1.msra.mxu0 0.0
  %3285 = vmatprep.subr.mxu0 0.0
  %3286 = vmatpush1.msra.mxu0 0.0
  %3287 = vmatprep.subr.mxu0 0.0
  %3288 = vmatpush1.msra.mxu0 0.0
  %3289 = vmatprep.subr.mxu0 0.0
  %3290 = vmatpush1.msra.mxu0 0.0
  %3291 = vmatprep.subr.mxu0 0.0
  %3292 = vmatpush1.msra.mxu0 0.0
  %3293 = vmatprep.subr.mxu0 0.0
  %3294 = vmatpush1.msra.mxu0 0.0
  %3295 = vmatprep.mubr.f32.mxu0 0.0
  %3296 = vmatmul.mubr.f32.gmra.mrb[0].mxu0 %v3230
  %v3297 = vpop.f32.mrb[0].mxu0
  %v3298 = vadd.f32 0.0, %v3297
  %v3299 = vpop.f32.mrb[0].mxu0
  %3300 = vdwg.mxu0
  %v3301 = vmul.f32 %v2496, 20.0
  %v3302 = vmul.f32 %v3301, 1.442695
  %v3303 = vpow.pop %v3302
  %v3304 = vadd.f32 %v3303, %v3298
  %v3305 = vlog2.pop %v3304
  %v3306 = vmul.f32 %v3305, 0.6931472
  %v3307 = vsub.f32 %v3301, %v3306
  %vm3308 = vcmask 3072
  %v3309 = vsel %vm3308, %v3307, 0.0
  %v3310 = vrot.slane %v3309, 4
  %v3311 = vadd.f32 %v3309, %v3310
  %v3312 = vrot.slane %v3311, 2
  %v3313 = vadd.f32 %v3311, %v3312
  %v3314 = vrot.slane %v3313, 1
  %v3315 = vadd.f32 %v3313, %v3314
  %v3316 = vsub.f32 0.0, %v3315
  %v3317 = vrcp.pop 4.0
  %v3318 = vmul.f32 %v3316, %v3317
  %vm3319 = vcmp.ge.f32.partialorder %v2496, %v2593
  %v3320 = vsel %vm3319, 1, 0
  %v3321 = vcvt.s32.f32 %v3320
  %v3322 = vsel %vm2738, %v3321, 0.0
  %v3323 = vrot.slane %v3322, 4
  %v3324 = vadd.f32 %v3322, %v3323
  %v3325 = vrot.slane %v3324, 2
  %v3326 = vadd.f32 %v3324, %v3325
  %v3327 = vrot.slane %v3326, 1
  %v3328 = vadd.f32 %v3326, %v3327
  %v3329 = vmul.f32 %v3328, %v3317
  %vm3330 = vcmask 0
  %3331 = vst.msk [vmem:[%s6] sm:$0x1] %vm3330, %v3318
  %vm3332 = vcmask 8200
  %3333 = vst.msk [vmem:[%s6] sm:$0x1] %vm3332, %v3329
  // Predicated region
  $region26: #{encoder_forward.1} parent=0 // pred_check
    _
  $region27: #{encoder_forward.1} parent=0 // pred_check_branch
    %3335 = sbr.rel (0) target = $region29
  $region28: #{encoder_forward.1} parent=0 // pred_region
    _
  $region29: #{encoder_forward.1} parent=0 // pred_fallthru
    _
  // Predicated region
  $region30: #{encoder_forward.1} parent=0 // pred_check
    _
  $region31: #{encoder_forward.1} parent=0 // pred_check_branch
    %3337 = sbr.rel (0) target = $region33
  $region32: #{encoder_forward.1} parent=0 // pred_region
    _
  $region33: #{encoder_forward.1} parent=0 // pred_fallthru
    _

</llo_original>
